<compile_context>
chip_gen: v5e
topology: v5e:2x2
jax: 0.10.0
libtpu: 0.0.40
codegen_flags: <defaults>
</compile_context>

<pallas_src>
import jax
import jax.numpy as jnp
from jax.experimental import pallas as pl
from jax.experimental.pallas import tpu as pltpu

# ---- small, module-consistent hyper-parameters ------------------------------
BATCH = 2
IN_CHANNELS = 2
INPUT_DIM = 64          # must be divisible by 32 (five MaxPool1d(2) stages)
HIDDEN = 8
LATENT = 8
KSIZE = 3               # padding = KSIZE - 2 = 1  -> length-preserving convs
N_BLOCKS = 5
L_FINAL = INPUT_DIM // 32
NEG_SLOPE = 0.01
BN_EPS = 1e-5
NL = BATCH * INPUT_DIM  # 128 = lane width carried through the whole kernel


# ---- Pallas kernel -----------------------------------------------------------
def encoder_kernel(x_ref, w0_ref, b0_ref, dwf_ref, dbc_ref, dg_ref, dbt_ref,
                   wl_ref, bl_ref, out_ref):
    col = jax.lax.broadcasted_iota(jnp.int32, (1, NL), 1)   # lane index

    def conv_fused(x, wf, b, stride):
        """Conv1d(k=3, 'same') at element spacing `stride` as one MXU matmul."""
        # x[l-1]: roll right by stride, zero where l == 0 (per-sample padding)
        xm = jnp.where(col % INPUT_DIM == 0, 0.0,
                       jnp.roll(x, stride, axis=1))
        # x[l+1]: roll left by stride, zero where l == L-1
        xp = jnp.where(col % INPUT_DIM == INPUT_DIM - stride, 0.0,
                       jnp.roll(x, -stride, axis=1))
        xstk = jnp.concatenate([xm, x, xp], axis=0)          # (3*Ci, NL)
        return jnp.dot(wf, xstk, preferred_element_type=jnp.float32) + b

    def bn_apply(x, gamma, beta, stride):
        """Training-mode BatchNorm1d folded into one scale/shift (masked stats)."""
        if stride == 1:
            s1 = jnp.sum(x, axis=1, keepdims=True)
            s2 = jnp.sum(x * x, axis=1, keepdims=True)
        else:
            xv = jnp.where(col % stride == 0, x, 0.0)        # valid columns only
            s1 = jnp.sum(xv, axis=1, keepdims=True)
            s2 = jnp.sum(xv * x, axis=1, keepdims=True)
        inv_n = 1.0 / float(NL // stride)
        mean = s1 * inv_n
        var = s2 * inv_n - mean * mean
        scale = gamma * jax.lax.rsqrt(var + BN_EPS)
        shift = beta - mean * scale
        return x * scale + shift

    def leaky(x):
        return jnp.maximum(x, NEG_SLOPE * x)

    # Conv1d(in_channels -> hidden)
    x = conv_fused(x_ref[...], w0_ref[...], b0_ref[...], 1)

    stride = 1
    for blk in range(N_BLOCKS):                              # static unroll
        h = leaky(bn_apply(conv_fused(x, dwf_ref[blk, 0], dbc_ref[blk, 0], stride),
                           dg_ref[blk, 0], dbt_ref[blk, 0], stride))
        h = bn_apply(conv_fused(h, dwf_ref[blk, 1], dbc_ref[blk, 1], stride),
                     dg_ref[blk, 1], dbt_ref[blk, 1], stride)
        h = leaky(h + x)                                     # residual, then act
        # MaxPool1d(2): pooled value stored at the even column of each pair;
        # valid columns become multiples of 2*stride.
        x = jnp.maximum(h, jnp.roll(h, -stride, axis=1))
        stride *= 2

    # Flatten(start_dim=1) + Linear.  Valid columns: n*INPUT_DIM + l*stride.
    colL = jax.lax.broadcasted_iota(jnp.int32, (NL, BATCH), 0)
    nL = jax.lax.broadcasted_iota(jnp.int32, (NL, BATCH), 1)
    yT = bl_ref[...]                                         # (LATENT, 1)
    for l in range(L_FINAL):
        sel = (colL == nL * INPUT_DIM + l * stride).astype(jnp.float32)
        xl = jnp.dot(x, sel, preferred_element_type=jnp.float32)     # (H, N)
        yT = yT + jnp.dot(wl_ref[l], xl, preferred_element_type=jnp.float32)
    out_ref[...] = yT                                        # (LATENT, BATCH)


# ---- wrapper -----------------------------------------------------------------
@jax.jit
def encoder_pallas(x_flat, kparams):
    """x_flat: (n_batch, in_channels*input_dim), exactly like Encoder.forward."""
    w0f, b0k, dwf, dbk, dgk, dbtk, wlk, blin_k = kparams
    # reshape_input (identity rearrangement) + lane-dense (C, N*L) re-layout.
    x = x_flat.reshape(BATCH, IN_CHANNELS, INPUT_DIM)
    x = jnp.transpose(x, (1, 0, 2)).reshape(IN_CHANNELS, NL)
    vmem = pl.BlockSpec(memory_space=pltpu.MemorySpace.VMEM)
    yT = pl.pallas_call(
        encoder_kernel,
        out_shape=jax.ShapeDtypeStruct((LATENT, BATCH), jnp.float32),
        in_specs=[vmem] * 9,
        out_specs=vmem,
    )(x, w0f, b0k, dwf, dbk, dgk, dbtk, wlk, blin_k)
    return yT.T                                              # (BATCH, LATENT)


# ---- parameters (PyTorch shapes) and kernel re-layout (glue) -----------------
def make_torch_params(key):
    ks = jax.random.split(key, 8)
    w0 = 0.2 * jax.random.normal(ks[0], (HIDDEN, IN_CHANNELS, KSIZE), jnp.float32)
    b0 = 0.1 * jax.random.normal(ks[1], (HIDDEN,), jnp.float32)
    dw = 0.2 * jax.random.normal(ks[2], (N_BLOCKS, 2, HIDDEN, HIDDEN, KSIZE),
                                 jnp.float32)
    db = 0.1 * jax.random.normal(ks[3], (N_BLOCKS, 2, HIDDEN), jnp.float32)
    dg = 1.0 + 0.1 * jax.random.normal(ks[4], (N_BLOCKS, 2, HIDDEN), jnp.float32)
    dbt = 0.1 * jax.random.normal(ks[5], (N_BLOCKS, 2, HIDDEN), jnp.float32)
    wlin = 0.2 * jax.random.normal(ks[6], (LATENT, HIDDEN * L_FINAL), jnp.float32)
    blin = 0.1 * jax.random.normal(ks[7], (LATENT,), jnp.float32)
    return w0, b0, dw, db, dg, dbt, wlin, blin


def to_kernel_params(tp):
    w0, b0, dw, db, dg, dbt, wlin, blin = tp
    # conv weights (Co, Ci, K) -> fused-tap (Co, K*Ci), taps ordered [l-1, l, l+1]
    w0f = jnp.transpose(w0, (0, 2, 1)).reshape(HIDDEN, KSIZE * IN_CHANNELS)
    dwf = jnp.transpose(dw, (0, 1, 2, 4, 3)).reshape(N_BLOCKS, 2, HIDDEN,
                                                     KSIZE * HIDDEN)
    b0k = b0.reshape(HIDDEN, 1)
    dbk = db.reshape(N_BLOCKS, 2, HIDDEN, 1)
    dgk = dg.reshape(N_BLOCKS, 2, HIDDEN, 1)
    dbtk = dbt.reshape(N_BLOCKS, 2, HIDDEN, 1)
    # Linear weight W[o, c*L_FINAL + l] -> wlk[l, o, c]  (PyTorch Flatten order)
    wlk = jnp.transpose(wlin.reshape(LATENT, HIDDEN, L_FINAL), (2, 0, 1))
    blin_k = blin.reshape(LATENT, 1)
    return w0f, b0k, dwf, dbk, dgk, dbtk, wlk, blin_k


# ---- independent plain-JAX reference (faithful to the PyTorch module) --------
def torch_reference(x_flat, tp):
    w0, b0, dw, db, dg, dbt, wlin, blin = tp
    n = x_flat.shape[0]
    x = x_flat.reshape(n, IN_CHANNELS, INPUT_DIM)            # reshape_input

    def conv1d(x, w, b):                                     # x (N, C, L)
        L = x.shape[2]
        xp = jnp.pad(x, ((0, 0), (0, 0), (1, 1)))
        out = b[None, :, None]
        for t in range(KSIZE):
            out = out + jnp.einsum('ncl,oc->nol', xp[:, :, t:t + L], w[:, :, t])
        return out

    def bn(x, g, bta):
        mean = jnp.mean(x, axis=(0, 2), keepdims=True)
        var = jnp.mean(jnp.square(x - mean), axis=(0, 2), keepdims=True)
        xn = (x - mean) / jnp.sqrt(var + BN_EPS)
        return xn * g[None, :, None] + bta[None, :, None]

    def leaky(x):
        return jnp.where(x > 0, x, NEG_SLOPE * x)

    x = conv1d(x, w0, b0)
    for i in range(N_BLOCKS):
        h = leaky(bn(conv1d(x, dw[i, 0], db[i, 0]), dg[i, 0], dbt[i, 0]))
        h = bn(conv1d(h, dw[i, 1], db[i, 1]), dg[i, 1], dbt[i, 1]) + x
        h = leaky(h)
        nb, c, L = h.shape
        x = jnp.max(h.reshape(nb, c, L // 2, 2), axis=3)     # MaxPool1d(2)
    return x.reshape(n, -1) @ wlin.T + blin                  # Flatten + Linear


if __name__ == "__main__":
    key = jax.random.PRNGKey(0)
    pkey, xkey = jax.random.split(key)
    tparams = make_torch_params(pkey)
    kparams = to_kernel_params(tparams)

    # Encoder.forward input: (n_batch, in_channels * input_dim)
    x = jax.random.normal(xkey, (BATCH, IN_CHANNELS * INPUT_DIM), jnp.float32)

    out = jax.block_until_ready(encoder_pallas(x, kparams))
    assert out.shape == (BATCH, LATENT)

    ref = torch_reference(x, tparams)
    if not jnp.allclose(out, ref, atol=5e-3, rtol=5e-3):
        raise AssertionError(f"Pallas output mismatch: max abs diff "
                             f"{float(jnp.max(jnp.abs(out - ref)))}")
    print("KERNEL_OK")
</pallas_src>

<mosaic_0001>
module attributes {stable_mosaic.version = 11 : i64} {
  func.func @encoder_kernel(%arg0: memref<2x128xf32, #tpu.memory_space<vmem>>, %arg1: memref<8x6xf32, #tpu.memory_space<vmem>>, %arg2: memref<8x1xf32, #tpu.memory_space<vmem>>, %arg3: memref<5x2x8x24xf32, #tpu.memory_space<vmem>>, %arg4: memref<5x2x8x1xf32, #tpu.memory_space<vmem>>, %arg5: memref<5x2x8x1xf32, #tpu.memory_space<vmem>>, %arg6: memref<5x2x8x1xf32, #tpu.memory_space<vmem>>, %arg7: memref<2x8x8xf32, #tpu.memory_space<vmem>>, %arg8: memref<8x1xf32, #tpu.memory_space<vmem>>, %arg9: memref<8x2xf32, #tpu.memory_space<vmem>>) attributes {dimension_semantics = [], scalar_prefetch = 0 : i64, scratch_operands = 0 : i64, tpu.core_type = #tpu.core_type<tc>} {
    %0 = tpu.iota {dimensions = array<i32: 1>} : vector<1x128xi32>
    %c0 = arith.constant 0 : index
    %c0_0 = arith.constant 0 : index
    %1 = vector.load %arg0[%c0, %c0_0] : memref<2x128xf32, #tpu.memory_space<vmem>>, vector<2x128xf32>
    %c0_1 = arith.constant 0 : index
    %c0_2 = arith.constant 0 : index
    %2 = vector.load %arg1[%c0_1, %c0_2] : memref<8x6xf32, #tpu.memory_space<vmem>>, vector<8x6xf32>
    %c0_3 = arith.constant 0 : index
    %c0_4 = arith.constant 0 : index
    %3 = vector.load %arg2[%c0_3, %c0_4] : memref<8x1xf32, #tpu.memory_space<vmem>>, vector<8x1xf32>
    %c64_i32 = arith.constant 64 : i32
    %c0_i32 = arith.constant 0 : i32
    %4 = arith.cmpi eq, %c64_i32, %c0_i32 : i32
    %c1_i32 = arith.constant 1 : i32
    %5 = arith.select %4, %c1_i32, %c64_i32 : i32
    %6 = vector.broadcast %5 : i32 to vector<1x128xi32>
    %7 = arith.remsi %0, %6 : vector<1x128xi32>
    %c0_i32_5 = arith.constant 0 : i32
    %8 = vector.broadcast %c0_i32_5 : i32 to vector<1x128xi32>
    %9 = arith.cmpi ne, %7, %8 : vector<1x128xi32>
    %c0_i32_6 = arith.constant 0 : i32
    %10 = vector.broadcast %c0_i32_6 : i32 to vector<1x128xi32>
    %11 = arith.cmpi slt, %7, %10 : vector<1x128xi32>
    %c0_i32_7 = arith.constant 0 : i32
    %12 = arith.cmpi slt, %5, %c0_i32_7 : i32
    %13 = vector.broadcast %12 : i1 to vector<1x128xi1>
    %14 = vector.broadcast %13 : vector<1x128xi1> to vector<1x128xi1>
    %15 = arith.xori %11, %14 : vector<1x128xi1>
    %16 = arith.andi %15, %9 : vector<1x128xi1>
    %17 = vector.broadcast %5 : i32 to vector<1x128xi32>
    %18 = arith.addi %7, %17 : vector<1x128xi32>
    %19 = arith.select %16, %18, %7 : vector<1x128xi1>, vector<1x128xi32>
    %c0_i32_8 = arith.constant 0 : i32
    %20 = vector.broadcast %c0_i32_8 : i32 to vector<1x128xi32>
    %21 = arith.cmpi eq, %19, %20 : vector<1x128xi32>
    %22 = vector.extract_strided_slice %1 {offsets = [0, 127], sizes = [2, 1], strides = [1, 1]} : vector<2x128xf32> to vector<2x1xf32>
    %23 = vector.extract_strided_slice %1 {offsets = [0, 0], sizes = [2, 127], strides = [1, 1]} : vector<2x128xf32> to vector<2x127xf32>
    %24 = tpu.concatenate %22, %23 in 1 : vector<2x1xf32>, vector<2x127xf32> -> vector<2x128xf32>
    %cst = arith.constant 0.000000e+00 : f32
    %25 = vector.shape_cast %21 : vector<1x128xi1> to vector<1x128xi1>
    %26 = vector.broadcast %25 : vector<1x128xi1> to vector<2x128xi1>
    %27 = vector.broadcast %cst : f32 to vector<2x128xf32>
    %28 = arith.select %26, %27, %24 : vector<2x128xi1>, vector<2x128xf32>
    %c64_i32_9 = arith.constant 64 : i32
    %c0_i32_10 = arith.constant 0 : i32
    %29 = arith.cmpi eq, %c64_i32_9, %c0_i32_10 : i32
    %c1_i32_11 = arith.constant 1 : i32
    %30 = arith.select %29, %c1_i32_11, %c64_i32_9 : i32
    %31 = vector.broadcast %30 : i32 to vector<1x128xi32>
    %32 = arith.remsi %0, %31 : vector<1x128xi32>
    %c0_i32_12 = arith.constant 0 : i32
    %33 = vector.broadcast %c0_i32_12 : i32 to vector<1x128xi32>
    %34 = arith.cmpi ne, %32, %33 : vector<1x128xi32>
    %c0_i32_13 = arith.constant 0 : i32
    %35 = vector.broadcast %c0_i32_13 : i32 to vector<1x128xi32>
    %36 = arith.cmpi slt, %32, %35 : vector<1x128xi32>
    %c0_i32_14 = arith.constant 0 : i32
    %37 = arith.cmpi slt, %30, %c0_i32_14 : i32
    %38 = vector.broadcast %37 : i1 to vector<1x128xi1>
    %39 = vector.broadcast %38 : vector<1x128xi1> to vector<1x128xi1>
    %40 = arith.xori %36, %39 : vector<1x128xi1>
    %41 = arith.andi %40, %34 : vector<1x128xi1>
    %42 = vector.broadcast %30 : i32 to vector<1x128xi32>
    %43 = arith.addi %32, %42 : vector<1x128xi32>
    %44 = arith.select %41, %43, %32 : vector<1x128xi1>, vector<1x128xi32>
    %c63_i32 = arith.constant 63 : i32
    %45 = vector.broadcast %c63_i32 : i32 to vector<1x128xi32>
    %46 = arith.cmpi eq, %44, %45 : vector<1x128xi32>
    %47 = vector.extract_strided_slice %1 {offsets = [0, 1], sizes = [2, 127], strides = [1, 1]} : vector<2x128xf32> to vector<2x127xf32>
    %48 = vector.extract_strided_slice %1 {offsets = [0, 0], sizes = [2, 1], strides = [1, 1]} : vector<2x128xf32> to vector<2x1xf32>
    %49 = tpu.concatenate %47, %48 in 1 : vector<2x127xf32>, vector<2x1xf32> -> vector<2x128xf32>
    %cst_15 = arith.constant 0.000000e+00 : f32
    %50 = vector.shape_cast %46 : vector<1x128xi1> to vector<1x128xi1>
    %51 = vector.broadcast %50 : vector<1x128xi1> to vector<2x128xi1>
    %52 = vector.broadcast %cst_15 : f32 to vector<2x128xf32>
    %53 = arith.select %51, %52, %49 : vector<2x128xi1>, vector<2x128xf32>
    %54 = tpu.concatenate %28, %1, %53 in 0 : vector<2x128xf32>, vector<2x128xf32>, vector<2x128xf32> -> vector<6x128xf32>
    %cst_16 = arith.constant dense<0.000000e+00> : vector<8x128xf32>
    %55 = tpu.matmul %2, %54, %cst_16 {dimension_numbers = #tpu.dot_dimension_numbers<[1], [0], [0], [1], [0, 0, 1, 1], [], []>} : vector<8x6xf32>, vector<6x128xf32>, vector<8x128xf32> -> vector<8x128xf32>
    %56 = vector.broadcast %3 : vector<8x1xf32> to vector<8x128xf32>
    %57 = arith.addf %55, %56 : vector<8x128xf32>
    %c0_17 = arith.constant 0 : index
    %c0_18 = arith.constant 0 : index
    %c0_19 = arith.constant 0 : index
    %c0_20 = arith.constant 0 : index
    %58 = vector.load %arg3[%c0_17, %c0_18, %c0_19, %c0_20] : memref<5x2x8x24xf32, #tpu.memory_space<vmem>>, vector<1x1x8x24xf32>
    %59 = vector.shape_cast %58 : vector<1x1x8x24xf32> to vector<8x24xf32>
    %c0_21 = arith.constant 0 : index
    %c0_22 = arith.constant 0 : index
    %c0_23 = arith.constant 0 : index
    %c0_24 = arith.constant 0 : index
    %60 = vector.load %arg4[%c0_21, %c0_22, %c0_23, %c0_24] : memref<5x2x8x1xf32, #tpu.memory_space<vmem>>, vector<1x1x8x1xf32>
    %61 = vector.shape_cast %60 : vector<1x1x8x1xf32> to vector<8x1xf32>
    %c64_i32_25 = arith.constant 64 : i32
    %c0_i32_26 = arith.constant 0 : i32
    %62 = arith.cmpi eq, %c64_i32_25, %c0_i32_26 : i32
    %c1_i32_27 = arith.constant 1 : i32
    %63 = arith.select %62, %c1_i32_27, %c64_i32_25 : i32
    %64 = vector.broadcast %63 : i32 to vector<1x128xi32>
    %65 = arith.remsi %0, %64 : vector<1x128xi32>
    %c0_i32_28 = arith.constant 0 : i32
    %66 = vector.broadcast %c0_i32_28 : i32 to vector<1x128xi32>
    %67 = arith.cmpi ne, %65, %66 : vector<1x128xi32>
    %c0_i32_29 = arith.constant 0 : i32
    %68 = vector.broadcast %c0_i32_29 : i32 to vector<1x128xi32>
    %69 = arith.cmpi slt, %65, %68 : vector<1x128xi32>
    %c0_i32_30 = arith.constant 0 : i32
    %70 = arith.cmpi slt, %63, %c0_i32_30 : i32
    %71 = vector.broadcast %70 : i1 to vector<1x128xi1>
    %72 = vector.broadcast %71 : vector<1x128xi1> to vector<1x128xi1>
    %73 = arith.xori %69, %72 : vector<1x128xi1>
    %74 = arith.andi %73, %67 : vector<1x128xi1>
    %75 = vector.broadcast %63 : i32 to vector<1x128xi32>
    %76 = arith.addi %65, %75 : vector<1x128xi32>
    %77 = arith.select %74, %76, %65 : vector<1x128xi1>, vector<1x128xi32>
    %c0_i32_31 = arith.constant 0 : i32
    %78 = vector.broadcast %c0_i32_31 : i32 to vector<1x128xi32>
    %79 = arith.cmpi eq, %77, %78 : vector<1x128xi32>
    %80 = vector.extract_strided_slice %57 {offsets = [0, 127], sizes = [8, 1], strides = [1, 1]} : vector<8x128xf32> to vector<8x1xf32>
    %81 = vector.extract_strided_slice %57 {offsets = [0, 0], sizes = [8, 127], strides = [1, 1]} : vector<8x128xf32> to vector<8x127xf32>
    %82 = tpu.concatenate %80, %81 in 1 : vector<8x1xf32>, vector<8x127xf32> -> vector<8x128xf32>
    %cst_32 = arith.constant 0.000000e+00 : f32
    %83 = vector.shape_cast %79 : vector<1x128xi1> to vector<1x128xi1>
    %84 = vector.broadcast %83 : vector<1x128xi1> to vector<8x128xi1>
    %85 = vector.broadcast %cst_32 : f32 to vector<8x128xf32>
    %86 = arith.select %84, %85, %82 : vector<8x128xi1>, vector<8x128xf32>
    %c64_i32_33 = arith.constant 64 : i32
    %c0_i32_34 = arith.constant 0 : i32
    %87 = arith.cmpi eq, %c64_i32_33, %c0_i32_34 : i32
    %c1_i32_35 = arith.constant 1 : i32
    %88 = arith.select %87, %c1_i32_35, %c64_i32_33 : i32
    %89 = vector.broadcast %88 : i32 to vector<1x128xi32>
    %90 = arith.remsi %0, %89 : vector<1x128xi32>
    %c0_i32_36 = arith.constant 0 : i32
    %91 = vector.broadcast %c0_i32_36 : i32 to vector<1x128xi32>
    %92 = arith.cmpi ne, %90, %91 : vector<1x128xi32>
    %c0_i32_37 = arith.constant 0 : i32
    %93 = vector.broadcast %c0_i32_37 : i32 to vector<1x128xi32>
    %94 = arith.cmpi slt, %90, %93 : vector<1x128xi32>
    %c0_i32_38 = arith.constant 0 : i32
    %95 = arith.cmpi slt, %88, %c0_i32_38 : i32
    %96 = vector.broadcast %95 : i1 to vector<1x128xi1>
    %97 = vector.broadcast %96 : vector<1x128xi1> to vector<1x128xi1>
    %98 = arith.xori %94, %97 : vector<1x128xi1>
    %99 = arith.andi %98, %92 : vector<1x128xi1>
    %100 = vector.broadcast %88 : i32 to vector<1x128xi32>
    %101 = arith.addi %90, %100 : vector<1x128xi32>
    %102 = arith.select %99, %101, %90 : vector<1x128xi1>, vector<1x128xi32>
    %c63_i32_39 = arith.constant 63 : i32
    %103 = vector.broadcast %c63_i32_39 : i32 to vector<1x128xi32>
    %104 = arith.cmpi eq, %102, %103 : vector<1x128xi32>
    %105 = vector.extract_strided_slice %57 {offsets = [0, 1], sizes = [8, 127], strides = [1, 1]} : vector<8x128xf32> to vector<8x127xf32>
    %106 = vector.extract_strided_slice %57 {offsets = [0, 0], sizes = [8, 1], strides = [1, 1]} : vector<8x128xf32> to vector<8x1xf32>
    %107 = tpu.concatenate %105, %106 in 1 : vector<8x127xf32>, vector<8x1xf32> -> vector<8x128xf32>
    %cst_40 = arith.constant 0.000000e+00 : f32
    %108 = vector.shape_cast %104 : vector<1x128xi1> to vector<1x128xi1>
    %109 = vector.broadcast %108 : vector<1x128xi1> to vector<8x128xi1>
    %110 = vector.broadcast %cst_40 : f32 to vector<8x128xf32>
    %111 = arith.select %109, %110, %107 : vector<8x128xi1>, vector<8x128xf32>
    %112 = tpu.concatenate %86, %57, %111 in 0 : vector<8x128xf32>, vector<8x128xf32>, vector<8x128xf32> -> vector<24x128xf32>
    %cst_41 = arith.constant dense<0.000000e+00> : vector<8x128xf32>
    %113 = tpu.matmul %59, %112, %cst_41 {dimension_numbers = #tpu.dot_dimension_numbers<[1], [0], [0], [1], [0, 0, 1, 1], [], []>} : vector<8x24xf32>, vector<24x128xf32>, vector<8x128xf32> -> vector<8x128xf32>
    %114 = vector.broadcast %61 : vector<8x1xf32> to vector<8x128xf32>
    %115 = arith.addf %113, %114 : vector<8x128xf32>
    %c0_42 = arith.constant 0 : index
    %c0_43 = arith.constant 0 : index
    %c0_44 = arith.constant 0 : index
    %c0_45 = arith.constant 0 : index
    %116 = vector.load %arg5[%c0_42, %c0_43, %c0_44, %c0_45] : memref<5x2x8x1xf32, #tpu.memory_space<vmem>>, vector<1x1x8x1xf32>
    %117 = vector.shape_cast %116 : vector<1x1x8x1xf32> to vector<8x1xf32>
    %c0_46 = arith.constant 0 : index
    %c0_47 = arith.constant 0 : index
    %c0_48 = arith.constant 0 : index
    %c0_49 = arith.constant 0 : index
    %118 = vector.load %arg6[%c0_46, %c0_47, %c0_48, %c0_49] : memref<5x2x8x1xf32, #tpu.memory_space<vmem>>, vector<1x1x8x1xf32>
    %119 = vector.shape_cast %118 : vector<1x1x8x1xf32> to vector<8x1xf32>
    %cst_50 = arith.constant dense<0.000000e+00> : vector<8xf32>
    %120 = vector.multi_reduction <add>, %115, %cst_50 [1] : vector<8x128xf32> to vector<8xf32>
    %121 = vector.shape_cast %120 : vector<8xf32> to vector<8x1xf32>
    %122 = arith.mulf %115, %115 : vector<8x128xf32>
    %cst_51 = arith.constant dense<0.000000e+00> : vector<8xf32>
    %123 = vector.multi_reduction <add>, %122, %cst_51 [1] : vector<8x128xf32> to vector<8xf32>
    %124 = vector.shape_cast %123 : vector<8xf32> to vector<8x1xf32>
    %cst_52 = arith.constant 7.812500e-03 : f32
    %125 = vector.broadcast %cst_52 : f32 to vector<8x1xf32>
    %126 = arith.mulf %121, %125 : vector<8x1xf32>
    %cst_53 = arith.constant 7.812500e-03 : f32
    %127 = vector.broadcast %cst_53 : f32 to vector<8x1xf32>
    %128 = arith.mulf %124, %127 : vector<8x1xf32>
    %129 = arith.mulf %126, %126 : vector<8x1xf32>
    %130 = arith.subf %128, %129 : vector<8x1xf32>
    %cst_54 = arith.constant 9.99999974E-6 : f32
    %131 = vector.broadcast %cst_54 : f32 to vector<8x1xf32>
    %132 = arith.addf %130, %131 : vector<8x1xf32>
    %133 = math.rsqrt %132 : vector<8x1xf32>
    %134 = arith.mulf %117, %133 : vector<8x1xf32>
    %135 = arith.mulf %126, %134 : vector<8x1xf32>
    %136 = arith.subf %119, %135 : vector<8x1xf32>
    %137 = vector.broadcast %134 : vector<8x1xf32> to vector<8x128xf32>
    %138 = arith.mulf %115, %137 : vector<8x128xf32>
    %139 = vector.broadcast %136 : vector<8x1xf32> to vector<8x128xf32>
    %140 = arith.addf %138, %139 : vector<8x128xf32>
    %cst_55 = arith.constant 0.00999999977 : f32
    %141 = vector.broadcast %cst_55 : f32 to vector<8x128xf32>
    %142 = arith.mulf %141, %140 : vector<8x128xf32>
    %143 = arith.maximumf %140, %142 : vector<8x128xf32>
    %c0_56 = arith.constant 0 : index
    %c1 = arith.constant 1 : index
    %c0_57 = arith.constant 0 : index
    %c0_58 = arith.constant 0 : index
    %144 = vector.load %arg3[%c0_56, %c1, %c0_57, %c0_58] : memref<5x2x8x24xf32, #tpu.memory_space<vmem>>, vector<1x1x8x24xf32>
    %145 = vector.shape_cast %144 : vector<1x1x8x24xf32> to vector<8x24xf32>
    %c0_59 = arith.constant 0 : index
    %c1_60 = arith.constant 1 : index
    %c0_61 = arith.constant 0 : index
    %c0_62 = arith.constant 0 : index
    %146 = vector.load %arg4[%c0_59, %c1_60, %c0_61, %c0_62] : memref<5x2x8x1xf32, #tpu.memory_space<vmem>>, vector<1x1x8x1xf32>
    %147 = vector.shape_cast %146 : vector<1x1x8x1xf32> to vector<8x1xf32>
    %c64_i32_63 = arith.constant 64 : i32
    %c0_i32_64 = arith.constant 0 : i32
    %148 = arith.cmpi eq, %c64_i32_63, %c0_i32_64 : i32
    %c1_i32_65 = arith.constant 1 : i32
    %149 = arith.select %148, %c1_i32_65, %c64_i32_63 : i32
    %150 = vector.broadcast %149 : i32 to vector<1x128xi32>
    %151 = arith.remsi %0, %150 : vector<1x128xi32>
    %c0_i32_66 = arith.constant 0 : i32
    %152 = vector.broadcast %c0_i32_66 : i32 to vector<1x128xi32>
    %153 = arith.cmpi ne, %151, %152 : vector<1x128xi32>
    %c0_i32_67 = arith.constant 0 : i32
    %154 = vector.broadcast %c0_i32_67 : i32 to vector<1x128xi32>
    %155 = arith.cmpi slt, %151, %154 : vector<1x128xi32>
    %c0_i32_68 = arith.constant 0 : i32
    %156 = arith.cmpi slt, %149, %c0_i32_68 : i32
    %157 = vector.broadcast %156 : i1 to vector<1x128xi1>
    %158 = vector.broadcast %157 : vector<1x128xi1> to vector<1x128xi1>
    %159 = arith.xori %155, %158 : vector<1x128xi1>
    %160 = arith.andi %159, %153 : vector<1x128xi1>
    %161 = vector.broadcast %149 : i32 to vector<1x128xi32>
    %162 = arith.addi %151, %161 : vector<1x128xi32>
    %163 = arith.select %160, %162, %151 : vector<1x128xi1>, vector<1x128xi32>
    %c0_i32_69 = arith.constant 0 : i32
    %164 = vector.broadcast %c0_i32_69 : i32 to vector<1x128xi32>
    %165 = arith.cmpi eq, %163, %164 : vector<1x128xi32>
    %166 = vector.extract_strided_slice %143 {offsets = [0, 127], sizes = [8, 1], strides = [1, 1]} : vector<8x128xf32> to vector<8x1xf32>
    %167 = vector.extract_strided_slice %143 {offsets = [0, 0], sizes = [8, 127], strides = [1, 1]} : vector<8x128xf32> to vector<8x127xf32>
    %168 = tpu.concatenate %166, %167 in 1 : vector<8x1xf32>, vector<8x127xf32> -> vector<8x128xf32>
    %cst_70 = arith.constant 0.000000e+00 : f32
    %169 = vector.shape_cast %165 : vector<1x128xi1> to vector<1x128xi1>
    %170 = vector.broadcast %169 : vector<1x128xi1> to vector<8x128xi1>
    %171 = vector.broadcast %cst_70 : f32 to vector<8x128xf32>
    %172 = arith.select %170, %171, %168 : vector<8x128xi1>, vector<8x128xf32>
    %c64_i32_71 = arith.constant 64 : i32
    %c0_i32_72 = arith.constant 0 : i32
    %173 = arith.cmpi eq, %c64_i32_71, %c0_i32_72 : i32
    %c1_i32_73 = arith.constant 1 : i32
    %174 = arith.select %173, %c1_i32_73, %c64_i32_71 : i32
    %175 = vector.broadcast %174 : i32 to vector<1x128xi32>
    %176 = arith.remsi %0, %175 : vector<1x128xi32>
    %c0_i32_74 = arith.constant 0 : i32
    %177 = vector.broadcast %c0_i32_74 : i32 to vector<1x128xi32>
    %178 = arith.cmpi ne, %176, %177 : vector<1x128xi32>
    %c0_i32_75 = arith.constant 0 : i32
    %179 = vector.broadcast %c0_i32_75 : i32 to vector<1x128xi32>
    %180 = arith.cmpi slt, %176, %179 : vector<1x128xi32>
    %c0_i32_76 = arith.constant 0 : i32
    %181 = arith.cmpi slt, %174, %c0_i32_76 : i32
    %182 = vector.broadcast %181 : i1 to vector<1x128xi1>
    %183 = vector.broadcast %182 : vector<1x128xi1> to vector<1x128xi1>
    %184 = arith.xori %180, %183 : vector<1x128xi1>
    %185 = arith.andi %184, %178 : vector<1x128xi1>
    %186 = vector.broadcast %174 : i32 to vector<1x128xi32>
    %187 = arith.addi %176, %186 : vector<1x128xi32>
    %188 = arith.select %185, %187, %176 : vector<1x128xi1>, vector<1x128xi32>
    %c63_i32_77 = arith.constant 63 : i32
    %189 = vector.broadcast %c63_i32_77 : i32 to vector<1x128xi32>
    %190 = arith.cmpi eq, %188, %189 : vector<1x128xi32>
    %191 = vector.extract_strided_slice %143 {offsets = [0, 1], sizes = [8, 127], strides = [1, 1]} : vector<8x128xf32> to vector<8x127xf32>
    %192 = vector.extract_strided_slice %143 {offsets = [0, 0], sizes = [8, 1], strides = [1, 1]} : vector<8x128xf32> to vector<8x1xf32>
    %193 = tpu.concatenate %191, %192 in 1 : vector<8x127xf32>, vector<8x1xf32> -> vector<8x128xf32>
    %cst_78 = arith.constant 0.000000e+00 : f32
    %194 = vector.shape_cast %190 : vector<1x128xi1> to vector<1x128xi1>
    %195 = vector.broadcast %194 : vector<1x128xi1> to vector<8x128xi1>
    %196 = vector.broadcast %cst_78 : f32 to vector<8x128xf32>
    %197 = arith.select %195, %196, %193 : vector<8x128xi1>, vector<8x128xf32>
    %198 = tpu.concatenate %172, %143, %197 in 0 : vector<8x128xf32>, vector<8x128xf32>, vector<8x128xf32> -> vector<24x128xf32>
    %cst_79 = arith.constant dense<0.000000e+00> : vector<8x128xf32>
    %199 = tpu.matmul %145, %198, %cst_79 {dimension_numbers = #tpu.dot_dimension_numbers<[1], [0], [0], [1], [0, 0, 1, 1], [], []>} : vector<8x24xf32>, vector<24x128xf32>, vector<8x128xf32> -> vector<8x128xf32>
    %200 = vector.broadcast %147 : vector<8x1xf32> to vector<8x128xf32>
    %201 = arith.addf %199, %200 : vector<8x128xf32>
    %c0_80 = arith.constant 0 : index
    %c1_81 = arith.constant 1 : index
    %c0_82 = arith.constant 0 : index
    %c0_83 = arith.constant 0 : index
    %202 = vector.load %arg5[%c0_80, %c1_81, %c0_82, %c0_83] : memref<5x2x8x1xf32, #tpu.memory_space<vmem>>, vector<1x1x8x1xf32>
    %203 = vector.shape_cast %202 : vector<1x1x8x1xf32> to vector<8x1xf32>
    %c0_84 = arith.constant 0 : index
    %c1_85 = arith.constant 1 : index
    %c0_86 = arith.constant 0 : index
    %c0_87 = arith.constant 0 : index
    %204 = vector.load %arg6[%c0_84, %c1_85, %c0_86, %c0_87] : memref<5x2x8x1xf32, #tpu.memory_space<vmem>>, vector<1x1x8x1xf32>
    %205 = vector.shape_cast %204 : vector<1x1x8x1xf32> to vector<8x1xf32>
    %cst_88 = arith.constant dense<0.000000e+00> : vector<8xf32>
    %206 = vector.multi_reduction <add>, %201, %cst_88 [1] : vector<8x128xf32> to vector<8xf32>
    %207 = vector.shape_cast %206 : vector<8xf32> to vector<8x1xf32>
    %208 = arith.mulf %201, %201 : vector<8x128xf32>
    %cst_89 = arith.constant dense<0.000000e+00> : vector<8xf32>
    %209 = vector.multi_reduction <add>, %208, %cst_89 [1] : vector<8x128xf32> to vector<8xf32>
    %210 = vector.shape_cast %209 : vector<8xf32> to vector<8x1xf32>
    %cst_90 = arith.constant 7.812500e-03 : f32
    %211 = vector.broadcast %cst_90 : f32 to vector<8x1xf32>
    %212 = arith.mulf %207, %211 : vector<8x1xf32>
    %cst_91 = arith.constant 7.812500e-03 : f32
    %213 = vector.broadcast %cst_91 : f32 to vector<8x1xf32>
    %214 = arith.mulf %210, %213 : vector<8x1xf32>
    %215 = arith.mulf %212, %212 : vector<8x1xf32>
    %216 = arith.subf %214, %215 : vector<8x1xf32>
    %cst_92 = arith.constant 9.99999974E-6 : f32
    %217 = vector.broadcast %cst_92 : f32 to vector<8x1xf32>
    %218 = arith.addf %216, %217 : vector<8x1xf32>
    %219 = math.rsqrt %218 : vector<8x1xf32>
    %220 = arith.mulf %203, %219 : vector<8x1xf32>
    %221 = arith.mulf %212, %220 : vector<8x1xf32>
    %222 = arith.subf %205, %221 : vector<8x1xf32>
    %223 = vector.broadcast %220 : vector<8x1xf32> to vector<8x128xf32>
    %224 = arith.mulf %201, %223 : vector<8x128xf32>
    %225 = vector.broadcast %222 : vector<8x1xf32> to vector<8x128xf32>
    %226 = arith.addf %224, %225 : vector<8x128xf32>
    %227 = arith.addf %226, %57 : vector<8x128xf32>
    %cst_93 = arith.constant 0.00999999977 : f32
    %228 = vector.broadcast %cst_93 : f32 to vector<8x128xf32>
    %229 = arith.mulf %228, %227 : vector<8x128xf32>
    %230 = arith.maximumf %227, %229 : vector<8x128xf32>
    %231 = vector.extract_strided_slice %230 {offsets = [0, 1], sizes = [8, 127], strides = [1, 1]} : vector<8x128xf32> to vector<8x127xf32>
    %232 = vector.extract_strided_slice %230 {offsets = [0, 0], sizes = [8, 1], strides = [1, 1]} : vector<8x128xf32> to vector<8x1xf32>
    %233 = tpu.concatenate %231, %232 in 1 : vector<8x127xf32>, vector<8x1xf32> -> vector<8x128xf32>
    %234 = arith.maximumf %230, %233 : vector<8x128xf32>
    %c1_94 = arith.constant 1 : index
    %c0_95 = arith.constant 0 : index
    %c0_96 = arith.constant 0 : index
    %c0_97 = arith.constant 0 : index
    %235 = vector.load %arg3[%c1_94, %c0_95, %c0_96, %c0_97] : memref<5x2x8x24xf32, #tpu.memory_space<vmem>>, vector<1x1x8x24xf32>
    %236 = vector.shape_cast %235 : vector<1x1x8x24xf32> to vector<8x24xf32>
    %c1_98 = arith.constant 1 : index
    %c0_99 = arith.constant 0 : index
    %c0_100 = arith.constant 0 : index
    %c0_101 = arith.constant 0 : index
    %237 = vector.load %arg4[%c1_98, %c0_99, %c0_100, %c0_101] : memref<5x2x8x1xf32, #tpu.memory_space<vmem>>, vector<1x1x8x1xf32>
    %238 = vector.shape_cast %237 : vector<1x1x8x1xf32> to vector<8x1xf32>
    %c64_i32_102 = arith.constant 64 : i32
    %c0_i32_103 = arith.constant 0 : i32
    %239 = arith.cmpi eq, %c64_i32_102, %c0_i32_103 : i32
    %c1_i32_104 = arith.constant 1 : i32
    %240 = arith.select %239, %c1_i32_104, %c64_i32_102 : i32
    %241 = vector.broadcast %240 : i32 to vector<1x128xi32>
    %242 = arith.remsi %0, %241 : vector<1x128xi32>
    %c0_i32_105 = arith.constant 0 : i32
    %243 = vector.broadcast %c0_i32_105 : i32 to vector<1x128xi32>
    %244 = arith.cmpi ne, %242, %243 : vector<1x128xi32>
    %c0_i32_106 = arith.constant 0 : i32
    %245 = vector.broadcast %c0_i32_106 : i32 to vector<1x128xi32>
    %246 = arith.cmpi slt, %242, %245 : vector<1x128xi32>
    %c0_i32_107 = arith.constant 0 : i32
    %247 = arith.cmpi slt, %240, %c0_i32_107 : i32
    %248 = vector.broadcast %247 : i1 to vector<1x128xi1>
    %249 = vector.broadcast %248 : vector<1x128xi1> to vector<1x128xi1>
    %250 = arith.xori %246, %249 : vector<1x128xi1>
    %251 = arith.andi %250, %244 : vector<1x128xi1>
    %252 = vector.broadcast %240 : i32 to vector<1x128xi32>
    %253 = arith.addi %242, %252 : vector<1x128xi32>
    %254 = arith.select %251, %253, %242 : vector<1x128xi1>, vector<1x128xi32>
    %c0_i32_108 = arith.constant 0 : i32
    %255 = vector.broadcast %c0_i32_108 : i32 to vector<1x128xi32>
    %256 = arith.cmpi eq, %254, %255 : vector<1x128xi32>
    %257 = vector.extract_strided_slice %234 {offsets = [0, 126], sizes = [8, 2], strides = [1, 1]} : vector<8x128xf32> to vector<8x2xf32>
    %258 = vector.extract_strided_slice %234 {offsets = [0, 0], sizes = [8, 126], strides = [1, 1]} : vector<8x128xf32> to vector<8x126xf32>
    %259 = tpu.concatenate %257, %258 in 1 : vector<8x2xf32>, vector<8x126xf32> -> vector<8x128xf32>
    %cst_109 = arith.constant 0.000000e+00 : f32
    %260 = vector.shape_cast %256 : vector<1x128xi1> to vector<1x128xi1>
    %261 = vector.broadcast %260 : vector<1x128xi1> to vector<8x128xi1>
    %262 = vector.broadcast %cst_109 : f32 to vector<8x128xf32>
    %263 = arith.select %261, %262, %259 : vector<8x128xi1>, vector<8x128xf32>
    %c64_i32_110 = arith.constant 64 : i32
    %c0_i32_111 = arith.constant 0 : i32
    %264 = arith.cmpi eq, %c64_i32_110, %c0_i32_111 : i32
    %c1_i32_112 = arith.constant 1 : i32
    %265 = arith.select %264, %c1_i32_112, %c64_i32_110 : i32
    %266 = vector.broadcast %265 : i32 to vector<1x128xi32>
    %267 = arith.remsi %0, %266 : vector<1x128xi32>
    %c0_i32_113 = arith.constant 0 : i32
    %268 = vector.broadcast %c0_i32_113 : i32 to vector<1x128xi32>
    %269 = arith.cmpi ne, %267, %268 : vector<1x128xi32>
    %c0_i32_114 = arith.constant 0 : i32
    %270 = vector.broadcast %c0_i32_114 : i32 to vector<1x128xi32>
    %271 = arith.cmpi slt, %267, %270 : vector<1x128xi32>
    %c0_i32_115 = arith.constant 0 : i32
    %272 = arith.cmpi slt, %265, %c0_i32_115 : i32
    %273 = vector.broadcast %272 : i1 to vector<1x128xi1>
    %274 = vector.broadcast %273 : vector<1x128xi1> to vector<1x128xi1>
    %275 = arith.xori %271, %274 : vector<1x128xi1>
    %276 = arith.andi %275, %269 : vector<1x128xi1>
    %277 = vector.broadcast %265 : i32 to vector<1x128xi32>
    %278 = arith.addi %267, %277 : vector<1x128xi32>
    %279 = arith.select %276, %278, %267 : vector<1x128xi1>, vector<1x128xi32>
    %c62_i32 = arith.constant 62 : i32
    %280 = vector.broadcast %c62_i32 : i32 to vector<1x128xi32>
    %281 = arith.cmpi eq, %279, %280 : vector<1x128xi32>
    %282 = vector.extract_strided_slice %234 {offsets = [0, 2], sizes = [8, 126], strides = [1, 1]} : vector<8x128xf32> to vector<8x126xf32>
    %283 = vector.extract_strided_slice %234 {offsets = [0, 0], sizes = [8, 2], strides = [1, 1]} : vector<8x128xf32> to vector<8x2xf32>
    %284 = tpu.concatenate %282, %283 in 1 : vector<8x126xf32>, vector<8x2xf32> -> vector<8x128xf32>
    %cst_116 = arith.constant 0.000000e+00 : f32
    %285 = vector.shape_cast %281 : vector<1x128xi1> to vector<1x128xi1>
    %286 = vector.broadcast %285 : vector<1x128xi1> to vector<8x128xi1>
    %287 = vector.broadcast %cst_116 : f32 to vector<8x128xf32>
    %288 = arith.select %286, %287, %284 : vector<8x128xi1>, vector<8x128xf32>
    %289 = tpu.concatenate %263, %234, %288 in 0 : vector<8x128xf32>, vector<8x128xf32>, vector<8x128xf32> -> vector<24x128xf32>
    %cst_117 = arith.constant dense<0.000000e+00> : vector<8x128xf32>
    %290 = tpu.matmul %236, %289, %cst_117 {dimension_numbers = #tpu.dot_dimension_numbers<[1], [0], [0], [1], [0, 0, 1, 1], [], []>} : vector<8x24xf32>, vector<24x128xf32>, vector<8x128xf32> -> vector<8x128xf32>
    %291 = vector.broadcast %238 : vector<8x1xf32> to vector<8x128xf32>
    %292 = arith.addf %290, %291 : vector<8x128xf32>
    %c1_118 = arith.constant 1 : index
    %c0_119 = arith.constant 0 : index
    %c0_120 = arith.constant 0 : index
    %c0_121 = arith.constant 0 : index
    %293 = vector.load %arg5[%c1_118, %c0_119, %c0_120, %c0_121] : memref<5x2x8x1xf32, #tpu.memory_space<vmem>>, vector<1x1x8x1xf32>
    %294 = vector.shape_cast %293 : vector<1x1x8x1xf32> to vector<8x1xf32>
    %c1_122 = arith.constant 1 : index
    %c0_123 = arith.constant 0 : index
    %c0_124 = arith.constant 0 : index
    %c0_125 = arith.constant 0 : index
    %295 = vector.load %arg6[%c1_122, %c0_123, %c0_124, %c0_125] : memref<5x2x8x1xf32, #tpu.memory_space<vmem>>, vector<1x1x8x1xf32>
    %296 = vector.shape_cast %295 : vector<1x1x8x1xf32> to vector<8x1xf32>
    %c2_i32 = arith.constant 2 : i32
    %c0_i32_126 = arith.constant 0 : i32
    %297 = arith.cmpi eq, %c2_i32, %c0_i32_126 : i32
    %c1_i32_127 = arith.constant 1 : i32
    %298 = arith.select %297, %c1_i32_127, %c2_i32 : i32
    %299 = vector.broadcast %298 : i32 to vector<1x128xi32>
    %300 = arith.remsi %0, %299 : vector<1x128xi32>
    %c0_i32_128 = arith.constant 0 : i32
    %301 = vector.broadcast %c0_i32_128 : i32 to vector<1x128xi32>
    %302 = arith.cmpi ne, %300, %301 : vector<1x128xi32>
    %c0_i32_129 = arith.constant 0 : i32
    %303 = vector.broadcast %c0_i32_129 : i32 to vector<1x128xi32>
    %304 = arith.cmpi slt, %300, %303 : vector<1x128xi32>
    %c0_i32_130 = arith.constant 0 : i32
    %305 = arith.cmpi slt, %298, %c0_i32_130 : i32
    %306 = vector.broadcast %305 : i1 to vector<1x128xi1>
    %307 = vector.broadcast %306 : vector<1x128xi1> to vector<1x128xi1>
    %308 = arith.xori %304, %307 : vector<1x128xi1>
    %309 = arith.andi %308, %302 : vector<1x128xi1>
    %310 = vector.broadcast %298 : i32 to vector<1x128xi32>
    %311 = arith.addi %300, %310 : vector<1x128xi32>
    %312 = arith.select %309, %311, %300 : vector<1x128xi1>, vector<1x128xi32>
    %c0_i32_131 = arith.constant 0 : i32
    %313 = vector.broadcast %c0_i32_131 : i32 to vector<1x128xi32>
    %314 = arith.cmpi eq, %312, %313 : vector<1x128xi32>
    %cst_132 = arith.constant 0.000000e+00 : f32
    %315 = vector.shape_cast %314 : vector<1x128xi1> to vector<1x128xi1>
    %316 = vector.broadcast %315 : vector<1x128xi1> to vector<8x128xi1>
    %317 = vector.broadcast %cst_132 : f32 to vector<8x128xf32>
    %318 = arith.select %316, %292, %317 : vector<8x128xi1>, vector<8x128xf32>
    %cst_133 = arith.constant dense<0.000000e+00> : vector<8xf32>
    %319 = vector.multi_reduction <add>, %318, %cst_133 [1] : vector<8x128xf32> to vector<8xf32>
    %320 = vector.shape_cast %319 : vector<8xf32> to vector<8x1xf32>
    %321 = arith.mulf %318, %292 : vector<8x128xf32>
    %cst_134 = arith.constant dense<0.000000e+00> : vector<8xf32>
    %322 = vector.multi_reduction <add>, %321, %cst_134 [1] : vector<8x128xf32> to vector<8xf32>
    %323 = vector.shape_cast %322 : vector<8xf32> to vector<8x1xf32>
    %cst_135 = arith.constant 1.562500e-02 : f32
    %324 = vector.broadcast %cst_135 : f32 to vector<8x1xf32>
    %325 = arith.mulf %320, %324 : vector<8x1xf32>
    %cst_136 = arith.constant 1.562500e-02 : f32
    %326 = vector.broadcast %cst_136 : f32 to vector<8x1xf32>
    %327 = arith.mulf %323, %326 : vector<8x1xf32>
    %328 = arith.mulf %325, %325 : vector<8x1xf32>
    %329 = arith.subf %327, %328 : vector<8x1xf32>
    %cst_137 = arith.constant 9.99999974E-6 : f32
    %330 = vector.broadcast %cst_137 : f32 to vector<8x1xf32>
    %331 = arith.addf %329, %330 : vector<8x1xf32>
    %332 = math.rsqrt %331 : vector<8x1xf32>
    %333 = arith.mulf %294, %332 : vector<8x1xf32>
    %334 = arith.mulf %325, %333 : vector<8x1xf32>
    %335 = arith.subf %296, %334 : vector<8x1xf32>
    %336 = vector.broadcast %333 : vector<8x1xf32> to vector<8x128xf32>
    %337 = arith.mulf %292, %336 : vector<8x128xf32>
    %338 = vector.broadcast %335 : vector<8x1xf32> to vector<8x128xf32>
    %339 = arith.addf %337, %338 : vector<8x128xf32>
    %cst_138 = arith.constant 0.00999999977 : f32
    %340 = vector.broadcast %cst_138 : f32 to vector<8x128xf32>
    %341 = arith.mulf %340, %339 : vector<8x128xf32>
    %342 = arith.maximumf %339, %341 : vector<8x128xf32>
    %c1_139 = arith.constant 1 : index
    %c1_140 = arith.constant 1 : index
    %c0_141 = arith.constant 0 : index
    %c0_142 = arith.constant 0 : index
    %343 = vector.load %arg3[%c1_139, %c1_140, %c0_141, %c0_142] : memref<5x2x8x24xf32, #tpu.memory_space<vmem>>, vector<1x1x8x24xf32>
    %344 = vector.shape_cast %343 : vector<1x1x8x24xf32> to vector<8x24xf32>
    %c1_143 = arith.constant 1 : index
    %c1_144 = arith.constant 1 : index
    %c0_145 = arith.constant 0 : index
    %c0_146 = arith.constant 0 : index
    %345 = vector.load %arg4[%c1_143, %c1_144, %c0_145, %c0_146] : memref<5x2x8x1xf32, #tpu.memory_space<vmem>>, vector<1x1x8x1xf32>
    %346 = vector.shape_cast %345 : vector<1x1x8x1xf32> to vector<8x1xf32>
    %c64_i32_147 = arith.constant 64 : i32
    %c0_i32_148 = arith.constant 0 : i32
    %347 = arith.cmpi eq, %c64_i32_147, %c0_i32_148 : i32
    %c1_i32_149 = arith.constant 1 : i32
    %348 = arith.select %347, %c1_i32_149, %c64_i32_147 : i32
    %349 = vector.broadcast %348 : i32 to vector<1x128xi32>
    %350 = arith.remsi %0, %349 : vector<1x128xi32>
    %c0_i32_150 = arith.constant 0 : i32
    %351 = vector.broadcast %c0_i32_150 : i32 to vector<1x128xi32>
    %352 = arith.cmpi ne, %350, %351 : vector<1x128xi32>
    %c0_i32_151 = arith.constant 0 : i32
    %353 = vector.broadcast %c0_i32_151 : i32 to vector<1x128xi32>
    %354 = arith.cmpi slt, %350, %353 : vector<1x128xi32>
    %c0_i32_152 = arith.constant 0 : i32
    %355 = arith.cmpi slt, %348, %c0_i32_152 : i32
    %356 = vector.broadcast %355 : i1 to vector<1x128xi1>
    %357 = vector.broadcast %356 : vector<1x128xi1> to vector<1x128xi1>
    %358 = arith.xori %354, %357 : vector<1x128xi1>
    %359 = arith.andi %358, %352 : vector<1x128xi1>
    %360 = vector.broadcast %348 : i32 to vector<1x128xi32>
    %361 = arith.addi %350, %360 : vector<1x128xi32>
    %362 = arith.select %359, %361, %350 : vector<1x128xi1>, vector<1x128xi32>
    %c0_i32_153 = arith.constant 0 : i32
    %363 = vector.broadcast %c0_i32_153 : i32 to vector<1x128xi32>
    %364 = arith.cmpi eq, %362, %363 : vector<1x128xi32>
    %365 = vector.extract_strided_slice %342 {offsets = [0, 126], sizes = [8, 2], strides = [1, 1]} : vector<8x128xf32> to vector<8x2xf32>
    %366 = vector.extract_strided_slice %342 {offsets = [0, 0], sizes = [8, 126], strides = [1, 1]} : vector<8x128xf32> to vector<8x126xf32>
    %367 = tpu.concatenate %365, %366 in 1 : vector<8x2xf32>, vector<8x126xf32> -> vector<8x128xf32>
    %cst_154 = arith.constant 0.000000e+00 : f32
    %368 = vector.shape_cast %364 : vector<1x128xi1> to vector<1x128xi1>
    %369 = vector.broadcast %368 : vector<1x128xi1> to vector<8x128xi1>
    %370 = vector.broadcast %cst_154 : f32 to vector<8x128xf32>
    %371 = arith.select %369, %370, %367 : vector<8x128xi1>, vector<8x128xf32>
    %c64_i32_155 = arith.constant 64 : i32
    %c0_i32_156 = arith.constant 0 : i32
    %372 = arith.cmpi eq, %c64_i32_155, %c0_i32_156 : i32
    %c1_i32_157 = arith.constant 1 : i32
    %373 = arith.select %372, %c1_i32_157, %c64_i32_155 : i32
    %374 = vector.broadcast %373 : i32 to vector<1x128xi32>
    %375 = arith.remsi %0, %374 : vector<1x128xi32>
    %c0_i32_158 = arith.constant 0 : i32
    %376 = vector.broadcast %c0_i32_158 : i32 to vector<1x128xi32>
    %377 = arith.cmpi ne, %375, %376 : vector<1x128xi32>
    %c0_i32_159 = arith.constant 0 : i32
    %378 = vector.broadcast %c0_i32_159 : i32 to vector<1x128xi32>
    %379 = arith.cmpi slt, %375, %378 : vector<1x128xi32>
    %c0_i32_160 = arith.constant 0 : i32
    %380 = arith.cmpi slt, %373, %c0_i32_160 : i32
    %381 = vector.broadcast %380 : i1 to vector<1x128xi1>
    %382 = vector.broadcast %381 : vector<1x128xi1> to vector<1x128xi1>
    %383 = arith.xori %379, %382 : vector<1x128xi1>
    %384 = arith.andi %383, %377 : vector<1x128xi1>
    %385 = vector.broadcast %373 : i32 to vector<1x128xi32>
    %386 = arith.addi %375, %385 : vector<1x128xi32>
    %387 = arith.select %384, %386, %375 : vector<1x128xi1>, vector<1x128xi32>
    %c62_i32_161 = arith.constant 62 : i32
    %388 = vector.broadcast %c62_i32_161 : i32 to vector<1x128xi32>
    %389 = arith.cmpi eq, %387, %388 : vector<1x128xi32>
    %390 = vector.extract_strided_slice %342 {offsets = [0, 2], sizes = [8, 126], strides = [1, 1]} : vector<8x128xf32> to vector<8x126xf32>
    %391 = vector.extract_strided_slice %342 {offsets = [0, 0], sizes = [8, 2], strides = [1, 1]} : vector<8x128xf32> to vector<8x2xf32>
    %392 = tpu.concatenate %390, %391 in 1 : vector<8x126xf32>, vector<8x2xf32> -> vector<8x128xf32>
    %cst_162 = arith.constant 0.000000e+00 : f32
    %393 = vector.shape_cast %389 : vector<1x128xi1> to vector<1x128xi1>
    %394 = vector.broadcast %393 : vector<1x128xi1> to vector<8x128xi1>
    %395 = vector.broadcast %cst_162 : f32 to vector<8x128xf32>
    %396 = arith.select %394, %395, %392 : vector<8x128xi1>, vector<8x128xf32>
    %397 = tpu.concatenate %371, %342, %396 in 0 : vector<8x128xf32>, vector<8x128xf32>, vector<8x128xf32> -> vector<24x128xf32>
    %cst_163 = arith.constant dense<0.000000e+00> : vector<8x128xf32>
    %398 = tpu.matmul %344, %397, %cst_163 {dimension_numbers = #tpu.dot_dimension_numbers<[1], [0], [0], [1], [0, 0, 1, 1], [], []>} : vector<8x24xf32>, vector<24x128xf32>, vector<8x128xf32> -> vector<8x128xf32>
    %399 = vector.broadcast %346 : vector<8x1xf32> to vector<8x128xf32>
    %400 = arith.addf %398, %399 : vector<8x128xf32>
    %c1_164 = arith.constant 1 : index
    %c1_165 = arith.constant 1 : index
    %c0_166 = arith.constant 0 : index
    %c0_167 = arith.constant 0 : index
    %401 = vector.load %arg5[%c1_164, %c1_165, %c0_166, %c0_167] : memref<5x2x8x1xf32, #tpu.memory_space<vmem>>, vector<1x1x8x1xf32>
    %402 = vector.shape_cast %401 : vector<1x1x8x1xf32> to vector<8x1xf32>
    %c1_168 = arith.constant 1 : index
    %c1_169 = arith.constant 1 : index
    %c0_170 = arith.constant 0 : index
    %c0_171 = arith.constant 0 : index
    %403 = vector.load %arg6[%c1_168, %c1_169, %c0_170, %c0_171] : memref<5x2x8x1xf32, #tpu.memory_space<vmem>>, vector<1x1x8x1xf32>
    %404 = vector.shape_cast %403 : vector<1x1x8x1xf32> to vector<8x1xf32>
    %c2_i32_172 = arith.constant 2 : i32
    %c0_i32_173 = arith.constant 0 : i32
    %405 = arith.cmpi eq, %c2_i32_172, %c0_i32_173 : i32
    %c1_i32_174 = arith.constant 1 : i32
    %406 = arith.select %405, %c1_i32_174, %c2_i32_172 : i32
    %407 = vector.broadcast %406 : i32 to vector<1x128xi32>
    %408 = arith.remsi %0, %407 : vector<1x128xi32>
    %c0_i32_175 = arith.constant 0 : i32
    %409 = vector.broadcast %c0_i32_175 : i32 to vector<1x128xi32>
    %410 = arith.cmpi ne, %408, %409 : vector<1x128xi32>
    %c0_i32_176 = arith.constant 0 : i32
    %411 = vector.broadcast %c0_i32_176 : i32 to vector<1x128xi32>
    %412 = arith.cmpi slt, %408, %411 : vector<1x128xi32>
    %c0_i32_177 = arith.constant 0 : i32
    %413 = arith.cmpi slt, %406, %c0_i32_177 : i32
    %414 = vector.broadcast %413 : i1 to vector<1x128xi1>
    %415 = vector.broadcast %414 : vector<1x128xi1> to vector<1x128xi1>
    %416 = arith.xori %412, %415 : vector<1x128xi1>
    %417 = arith.andi %416, %410 : vector<1x128xi1>
    %418 = vector.broadcast %406 : i32 to vector<1x128xi32>
    %419 = arith.addi %408, %418 : vector<1x128xi32>
    %420 = arith.select %417, %419, %408 : vector<1x128xi1>, vector<1x128xi32>
    %c0_i32_178 = arith.constant 0 : i32
    %421 = vector.broadcast %c0_i32_178 : i32 to vector<1x128xi32>
    %422 = arith.cmpi eq, %420, %421 : vector<1x128xi32>
    %cst_179 = arith.constant 0.000000e+00 : f32
    %423 = vector.shape_cast %422 : vector<1x128xi1> to vector<1x128xi1>
    %424 = vector.broadcast %423 : vector<1x128xi1> to vector<8x128xi1>
    %425 = vector.broadcast %cst_179 : f32 to vector<8x128xf32>
    %426 = arith.select %424, %400, %425 : vector<8x128xi1>, vector<8x128xf32>
    %cst_180 = arith.constant dense<0.000000e+00> : vector<8xf32>
    %427 = vector.multi_reduction <add>, %426, %cst_180 [1] : vector<8x128xf32> to vector<8xf32>
    %428 = vector.shape_cast %427 : vector<8xf32> to vector<8x1xf32>
    %429 = arith.mulf %426, %400 : vector<8x128xf32>
    %cst_181 = arith.constant dense<0.000000e+00> : vector<8xf32>
    %430 = vector.multi_reduction <add>, %429, %cst_181 [1] : vector<8x128xf32> to vector<8xf32>
    %431 = vector.shape_cast %430 : vector<8xf32> to vector<8x1xf32>
    %cst_182 = arith.constant 1.562500e-02 : f32
    %432 = vector.broadcast %cst_182 : f32 to vector<8x1xf32>
    %433 = arith.mulf %428, %432 : vector<8x1xf32>
    %cst_183 = arith.constant 1.562500e-02 : f32
    %434 = vector.broadcast %cst_183 : f32 to vector<8x1xf32>
    %435 = arith.mulf %431, %434 : vector<8x1xf32>
    %436 = arith.mulf %433, %433 : vector<8x1xf32>
    %437 = arith.subf %435, %436 : vector<8x1xf32>
    %cst_184 = arith.constant 9.99999974E-6 : f32
    %438 = vector.broadcast %cst_184 : f32 to vector<8x1xf32>
    %439 = arith.addf %437, %438 : vector<8x1xf32>
    %440 = math.rsqrt %439 : vector<8x1xf32>
    %441 = arith.mulf %402, %440 : vector<8x1xf32>
    %442 = arith.mulf %433, %441 : vector<8x1xf32>
    %443 = arith.subf %404, %442 : vector<8x1xf32>
    %444 = vector.broadcast %441 : vector<8x1xf32> to vector<8x128xf32>
    %445 = arith.mulf %400, %444 : vector<8x128xf32>
    %446 = vector.broadcast %443 : vector<8x1xf32> to vector<8x128xf32>
    %447 = arith.addf %445, %446 : vector<8x128xf32>
    %448 = arith.addf %447, %234 : vector<8x128xf32>
    %cst_185 = arith.constant 0.00999999977 : f32
    %449 = vector.broadcast %cst_185 : f32 to vector<8x128xf32>
    %450 = arith.mulf %449, %448 : vector<8x128xf32>
    %451 = arith.maximumf %448, %450 : vector<8x128xf32>
    %452 = vector.extract_strided_slice %451 {offsets = [0, 2], sizes = [8, 126], strides = [1, 1]} : vector<8x128xf32> to vector<8x126xf32>
    %453 = vector.extract_strided_slice %451 {offsets = [0, 0], sizes = [8, 2], strides = [1, 1]} : vector<8x128xf32> to vector<8x2xf32>
    %454 = tpu.concatenate %452, %453 in 1 : vector<8x126xf32>, vector<8x2xf32> -> vector<8x128xf32>
    %455 = arith.maximumf %451, %454 : vector<8x128xf32>
    %c2 = arith.constant 2 : index
    %c0_186 = arith.constant 0 : index
    %c0_187 = arith.constant 0 : index
    %c0_188 = arith.constant 0 : index
    %456 = vector.load %arg3[%c2, %c0_186, %c0_187, %c0_188] : memref<5x2x8x24xf32, #tpu.memory_space<vmem>>, vector<1x1x8x24xf32>
    %457 = vector.shape_cast %456 : vector<1x1x8x24xf32> to vector<8x24xf32>
    %c2_189 = arith.constant 2 : index
    %c0_190 = arith.constant 0 : index
    %c0_191 = arith.constant 0 : index
    %c0_192 = arith.constant 0 : index
    %458 = vector.load %arg4[%c2_189, %c0_190, %c0_191, %c0_192] : memref<5x2x8x1xf32, #tpu.memory_space<vmem>>, vector<1x1x8x1xf32>
    %459 = vector.shape_cast %458 : vector<1x1x8x1xf32> to vector<8x1xf32>
    %c64_i32_193 = arith.constant 64 : i32
    %c0_i32_194 = arith.constant 0 : i32
    %460 = arith.cmpi eq, %c64_i32_193, %c0_i32_194 : i32
    %c1_i32_195 = arith.constant 1 : i32
    %461 = arith.select %460, %c1_i32_195, %c64_i32_193 : i32
    %462 = vector.broadcast %461 : i32 to vector<1x128xi32>
    %463 = arith.remsi %0, %462 : vector<1x128xi32>
    %c0_i32_196 = arith.constant 0 : i32
    %464 = vector.broadcast %c0_i32_196 : i32 to vector<1x128xi32>
    %465 = arith.cmpi ne, %463, %464 : vector<1x128xi32>
    %c0_i32_197 = arith.constant 0 : i32
    %466 = vector.broadcast %c0_i32_197 : i32 to vector<1x128xi32>
    %467 = arith.cmpi slt, %463, %466 : vector<1x128xi32>
    %c0_i32_198 = arith.constant 0 : i32
    %468 = arith.cmpi slt, %461, %c0_i32_198 : i32
    %469 = vector.broadcast %468 : i1 to vector<1x128xi1>
    %470 = vector.broadcast %469 : vector<1x128xi1> to vector<1x128xi1>
    %471 = arith.xori %467, %470 : vector<1x128xi1>
    %472 = arith.andi %471, %465 : vector<1x128xi1>
    %473 = vector.broadcast %461 : i32 to vector<1x128xi32>
    %474 = arith.addi %463, %473 : vector<1x128xi32>
    %475 = arith.select %472, %474, %463 : vector<1x128xi1>, vector<1x128xi32>
    %c0_i32_199 = arith.constant 0 : i32
    %476 = vector.broadcast %c0_i32_199 : i32 to vector<1x128xi32>
    %477 = arith.cmpi eq, %475, %476 : vector<1x128xi32>
    %478 = vector.extract_strided_slice %455 {offsets = [0, 124], sizes = [8, 4], strides = [1, 1]} : vector<8x128xf32> to vector<8x4xf32>
    %479 = vector.extract_strided_slice %455 {offsets = [0, 0], sizes = [8, 124], strides = [1, 1]} : vector<8x128xf32> to vector<8x124xf32>
    %480 = tpu.concatenate %478, %479 in 1 : vector<8x4xf32>, vector<8x124xf32> -> vector<8x128xf32>
    %cst_200 = arith.constant 0.000000e+00 : f32
    %481 = vector.shape_cast %477 : vector<1x128xi1> to vector<1x128xi1>
    %482 = vector.broadcast %481 : vector<1x128xi1> to vector<8x128xi1>
    %483 = vector.broadcast %cst_200 : f32 to vector<8x128xf32>
    %484 = arith.select %482, %483, %480 : vector<8x128xi1>, vector<8x128xf32>
    %c64_i32_201 = arith.constant 64 : i32
    %c0_i32_202 = arith.constant 0 : i32
    %485 = arith.cmpi eq, %c64_i32_201, %c0_i32_202 : i32
    %c1_i32_203 = arith.constant 1 : i32
    %486 = arith.select %485, %c1_i32_203, %c64_i32_201 : i32
    %487 = vector.broadcast %486 : i32 to vector<1x128xi32>
    %488 = arith.remsi %0, %487 : vector<1x128xi32>
    %c0_i32_204 = arith.constant 0 : i32
    %489 = vector.broadcast %c0_i32_204 : i32 to vector<1x128xi32>
    %490 = arith.cmpi ne, %488, %489 : vector<1x128xi32>
    %c0_i32_205 = arith.constant 0 : i32
    %491 = vector.broadcast %c0_i32_205 : i32 to vector<1x128xi32>
    %492 = arith.cmpi slt, %488, %491 : vector<1x128xi32>
    %c0_i32_206 = arith.constant 0 : i32
    %493 = arith.cmpi slt, %486, %c0_i32_206 : i32
    %494 = vector.broadcast %493 : i1 to vector<1x128xi1>
    %495 = vector.broadcast %494 : vector<1x128xi1> to vector<1x128xi1>
    %496 = arith.xori %492, %495 : vector<1x128xi1>
    %497 = arith.andi %496, %490 : vector<1x128xi1>
    %498 = vector.broadcast %486 : i32 to vector<1x128xi32>
    %499 = arith.addi %488, %498 : vector<1x128xi32>
    %500 = arith.select %497, %499, %488 : vector<1x128xi1>, vector<1x128xi32>
    %c60_i32 = arith.constant 60 : i32
    %501 = vector.broadcast %c60_i32 : i32 to vector<1x128xi32>
    %502 = arith.cmpi eq, %500, %501 : vector<1x128xi32>
    %503 = vector.extract_strided_slice %455 {offsets = [0, 4], sizes = [8, 124], strides = [1, 1]} : vector<8x128xf32> to vector<8x124xf32>
    %504 = vector.extract_strided_slice %455 {offsets = [0, 0], sizes = [8, 4], strides = [1, 1]} : vector<8x128xf32> to vector<8x4xf32>
    %505 = tpu.concatenate %503, %504 in 1 : vector<8x124xf32>, vector<8x4xf32> -> vector<8x128xf32>
    %cst_207 = arith.constant 0.000000e+00 : f32
    %506 = vector.shape_cast %502 : vector<1x128xi1> to vector<1x128xi1>
    %507 = vector.broadcast %506 : vector<1x128xi1> to vector<8x128xi1>
    %508 = vector.broadcast %cst_207 : f32 to vector<8x128xf32>
    %509 = arith.select %507, %508, %505 : vector<8x128xi1>, vector<8x128xf32>
    %510 = tpu.concatenate %484, %455, %509 in 0 : vector<8x128xf32>, vector<8x128xf32>, vector<8x128xf32> -> vector<24x128xf32>
    %cst_208 = arith.constant dense<0.000000e+00> : vector<8x128xf32>
    %511 = tpu.matmul %457, %510, %cst_208 {dimension_numbers = #tpu.dot_dimension_numbers<[1], [0], [0], [1], [0, 0, 1, 1], [], []>} : vector<8x24xf32>, vector<24x128xf32>, vector<8x128xf32> -> vector<8x128xf32>
    %512 = vector.broadcast %459 : vector<8x1xf32> to vector<8x128xf32>
    %513 = arith.addf %511, %512 : vector<8x128xf32>
    %c2_209 = arith.constant 2 : index
    %c0_210 = arith.constant 0 : index
    %c0_211 = arith.constant 0 : index
    %c0_212 = arith.constant 0 : index
    %514 = vector.load %arg5[%c2_209, %c0_210, %c0_211, %c0_212] : memref<5x2x8x1xf32, #tpu.memory_space<vmem>>, vector<1x1x8x1xf32>
    %515 = vector.shape_cast %514 : vector<1x1x8x1xf32> to vector<8x1xf32>
    %c2_213 = arith.constant 2 : index
    %c0_214 = arith.constant 0 : index
    %c0_215 = arith.constant 0 : index
    %c0_216 = arith.constant 0 : index
    %516 = vector.load %arg6[%c2_213, %c0_214, %c0_215, %c0_216] : memref<5x2x8x1xf32, #tpu.memory_space<vmem>>, vector<1x1x8x1xf32>
    %517 = vector.shape_cast %516 : vector<1x1x8x1xf32> to vector<8x1xf32>
    %c4_i32 = arith.constant 4 : i32
    %c0_i32_217 = arith.constant 0 : i32
    %518 = arith.cmpi eq, %c4_i32, %c0_i32_217 : i32
    %c1_i32_218 = arith.constant 1 : i32
    %519 = arith.select %518, %c1_i32_218, %c4_i32 : i32
    %520 = vector.broadcast %519 : i32 to vector<1x128xi32>
    %521 = arith.remsi %0, %520 : vector<1x128xi32>
    %c0_i32_219 = arith.constant 0 : i32
    %522 = vector.broadcast %c0_i32_219 : i32 to vector<1x128xi32>
    %523 = arith.cmpi ne, %521, %522 : vector<1x128xi32>
    %c0_i32_220 = arith.constant 0 : i32
    %524 = vector.broadcast %c0_i32_220 : i32 to vector<1x128xi32>
    %525 = arith.cmpi slt, %521, %524 : vector<1x128xi32>
    %c0_i32_221 = arith.constant 0 : i32
    %526 = arith.cmpi slt, %519, %c0_i32_221 : i32
    %527 = vector.broadcast %526 : i1 to vector<1x128xi1>
    %528 = vector.broadcast %527 : vector<1x128xi1> to vector<1x128xi1>
    %529 = arith.xori %525, %528 : vector<1x128xi1>
    %530 = arith.andi %529, %523 : vector<1x128xi1>
    %531 = vector.broadcast %519 : i32 to vector<1x128xi32>
    %532 = arith.addi %521, %531 : vector<1x128xi32>
    %533 = arith.select %530, %532, %521 : vector<1x128xi1>, vector<1x128xi32>
    %c0_i32_222 = arith.constant 0 : i32
    %534 = vector.broadcast %c0_i32_222 : i32 to vector<1x128xi32>
    %535 = arith.cmpi eq, %533, %534 : vector<1x128xi32>
    %cst_223 = arith.constant 0.000000e+00 : f32
    %536 = vector.shape_cast %535 : vector<1x128xi1> to vector<1x128xi1>
    %537 = vector.broadcast %536 : vector<1x128xi1> to vector<8x128xi1>
    %538 = vector.broadcast %cst_223 : f32 to vector<8x128xf32>
    %539 = arith.select %537, %513, %538 : vector<8x128xi1>, vector<8x128xf32>
    %cst_224 = arith.constant dense<0.000000e+00> : vector<8xf32>
    %540 = vector.multi_reduction <add>, %539, %cst_224 [1] : vector<8x128xf32> to vector<8xf32>
    %541 = vector.shape_cast %540 : vector<8xf32> to vector<8x1xf32>
    %542 = arith.mulf %539, %513 : vector<8x128xf32>
    %cst_225 = arith.constant dense<0.000000e+00> : vector<8xf32>
    %543 = vector.multi_reduction <add>, %542, %cst_225 [1] : vector<8x128xf32> to vector<8xf32>
    %544 = vector.shape_cast %543 : vector<8xf32> to vector<8x1xf32>
    %cst_226 = arith.constant 3.125000e-02 : f32
    %545 = vector.broadcast %cst_226 : f32 to vector<8x1xf32>
    %546 = arith.mulf %541, %545 : vector<8x1xf32>
    %cst_227 = arith.constant 3.125000e-02 : f32
    %547 = vector.broadcast %cst_227 : f32 to vector<8x1xf32>
    %548 = arith.mulf %544, %547 : vector<8x1xf32>
    %549 = arith.mulf %546, %546 : vector<8x1xf32>
    %550 = arith.subf %548, %549 : vector<8x1xf32>
    %cst_228 = arith.constant 9.99999974E-6 : f32
    %551 = vector.broadcast %cst_228 : f32 to vector<8x1xf32>
    %552 = arith.addf %550, %551 : vector<8x1xf32>
    %553 = math.rsqrt %552 : vector<8x1xf32>
    %554 = arith.mulf %515, %553 : vector<8x1xf32>
    %555 = arith.mulf %546, %554 : vector<8x1xf32>
    %556 = arith.subf %517, %555 : vector<8x1xf32>
    %557 = vector.broadcast %554 : vector<8x1xf32> to vector<8x128xf32>
    %558 = arith.mulf %513, %557 : vector<8x128xf32>
    %559 = vector.broadcast %556 : vector<8x1xf32> to vector<8x128xf32>
    %560 = arith.addf %558, %559 : vector<8x128xf32>
    %cst_229 = arith.constant 0.00999999977 : f32
    %561 = vector.broadcast %cst_229 : f32 to vector<8x128xf32>
    %562 = arith.mulf %561, %560 : vector<8x128xf32>
    %563 = arith.maximumf %560, %562 : vector<8x128xf32>
    %c2_230 = arith.constant 2 : index
    %c1_231 = arith.constant 1 : index
    %c0_232 = arith.constant 0 : index
    %c0_233 = arith.constant 0 : index
    %564 = vector.load %arg3[%c2_230, %c1_231, %c0_232, %c0_233] : memref<5x2x8x24xf32, #tpu.memory_space<vmem>>, vector<1x1x8x24xf32>
    %565 = vector.shape_cast %564 : vector<1x1x8x24xf32> to vector<8x24xf32>
    %c2_234 = arith.constant 2 : index
    %c1_235 = arith.constant 1 : index
    %c0_236 = arith.constant 0 : index
    %c0_237 = arith.constant 0 : index
    %566 = vector.load %arg4[%c2_234, %c1_235, %c0_236, %c0_237] : memref<5x2x8x1xf32, #tpu.memory_space<vmem>>, vector<1x1x8x1xf32>
    %567 = vector.shape_cast %566 : vector<1x1x8x1xf32> to vector<8x1xf32>
    %c64_i32_238 = arith.constant 64 : i32
    %c0_i32_239 = arith.constant 0 : i32
    %568 = arith.cmpi eq, %c64_i32_238, %c0_i32_239 : i32
    %c1_i32_240 = arith.constant 1 : i32
    %569 = arith.select %568, %c1_i32_240, %c64_i32_238 : i32
    %570 = vector.broadcast %569 : i32 to vector<1x128xi32>
    %571 = arith.remsi %0, %570 : vector<1x128xi32>
    %c0_i32_241 = arith.constant 0 : i32
    %572 = vector.broadcast %c0_i32_241 : i32 to vector<1x128xi32>
    %573 = arith.cmpi ne, %571, %572 : vector<1x128xi32>
    %c0_i32_242 = arith.constant 0 : i32
    %574 = vector.broadcast %c0_i32_242 : i32 to vector<1x128xi32>
    %575 = arith.cmpi slt, %571, %574 : vector<1x128xi32>
    %c0_i32_243 = arith.constant 0 : i32
    %576 = arith.cmpi slt, %569, %c0_i32_243 : i32
    %577 = vector.broadcast %576 : i1 to vector<1x128xi1>
    %578 = vector.broadcast %577 : vector<1x128xi1> to vector<1x128xi1>
    %579 = arith.xori %575, %578 : vector<1x128xi1>
    %580 = arith.andi %579, %573 : vector<1x128xi1>
    %581 = vector.broadcast %569 : i32 to vector<1x128xi32>
    %582 = arith.addi %571, %581 : vector<1x128xi32>
    %583 = arith.select %580, %582, %571 : vector<1x128xi1>, vector<1x128xi32>
    %c0_i32_244 = arith.constant 0 : i32
    %584 = vector.broadcast %c0_i32_244 : i32 to vector<1x128xi32>
    %585 = arith.cmpi eq, %583, %584 : vector<1x128xi32>
    %586 = vector.extract_strided_slice %563 {offsets = [0, 124], sizes = [8, 4], strides = [1, 1]} : vector<8x128xf32> to vector<8x4xf32>
    %587 = vector.extract_strided_slice %563 {offsets = [0, 0], sizes = [8, 124], strides = [1, 1]} : vector<8x128xf32> to vector<8x124xf32>
    %588 = tpu.concatenate %586, %587 in 1 : vector<8x4xf32>, vector<8x124xf32> -> vector<8x128xf32>
    %cst_245 = arith.constant 0.000000e+00 : f32
    %589 = vector.shape_cast %585 : vector<1x128xi1> to vector<1x128xi1>
    %590 = vector.broadcast %589 : vector<1x128xi1> to vector<8x128xi1>
    %591 = vector.broadcast %cst_245 : f32 to vector<8x128xf32>
    %592 = arith.select %590, %591, %588 : vector<8x128xi1>, vector<8x128xf32>
    %c64_i32_246 = arith.constant 64 : i32
    %c0_i32_247 = arith.constant 0 : i32
    %593 = arith.cmpi eq, %c64_i32_246, %c0_i32_247 : i32
    %c1_i32_248 = arith.constant 1 : i32
    %594 = arith.select %593, %c1_i32_248, %c64_i32_246 : i32
    %595 = vector.broadcast %594 : i32 to vector<1x128xi32>
    %596 = arith.remsi %0, %595 : vector<1x128xi32>
    %c0_i32_249 = arith.constant 0 : i32
    %597 = vector.broadcast %c0_i32_249 : i32 to vector<1x128xi32>
    %598 = arith.cmpi ne, %596, %597 : vector<1x128xi32>
    %c0_i32_250 = arith.constant 0 : i32
    %599 = vector.broadcast %c0_i32_250 : i32 to vector<1x128xi32>
    %600 = arith.cmpi slt, %596, %599 : vector<1x128xi32>
    %c0_i32_251 = arith.constant 0 : i32
    %601 = arith.cmpi slt, %594, %c0_i32_251 : i32
    %602 = vector.broadcast %601 : i1 to vector<1x128xi1>
    %603 = vector.broadcast %602 : vector<1x128xi1> to vector<1x128xi1>
    %604 = arith.xori %600, %603 : vector<1x128xi1>
    %605 = arith.andi %604, %598 : vector<1x128xi1>
    %606 = vector.broadcast %594 : i32 to vector<1x128xi32>
    %607 = arith.addi %596, %606 : vector<1x128xi32>
    %608 = arith.select %605, %607, %596 : vector<1x128xi1>, vector<1x128xi32>
    %c60_i32_252 = arith.constant 60 : i32
    %609 = vector.broadcast %c60_i32_252 : i32 to vector<1x128xi32>
    %610 = arith.cmpi eq, %608, %609 : vector<1x128xi32>
    %611 = vector.extract_strided_slice %563 {offsets = [0, 4], sizes = [8, 124], strides = [1, 1]} : vector<8x128xf32> to vector<8x124xf32>
    %612 = vector.extract_strided_slice %563 {offsets = [0, 0], sizes = [8, 4], strides = [1, 1]} : vector<8x128xf32> to vector<8x4xf32>
    %613 = tpu.concatenate %611, %612 in 1 : vector<8x124xf32>, vector<8x4xf32> -> vector<8x128xf32>
    %cst_253 = arith.constant 0.000000e+00 : f32
    %614 = vector.shape_cast %610 : vector<1x128xi1> to vector<1x128xi1>
    %615 = vector.broadcast %614 : vector<1x128xi1> to vector<8x128xi1>
    %616 = vector.broadcast %cst_253 : f32 to vector<8x128xf32>
    %617 = arith.select %615, %616, %613 : vector<8x128xi1>, vector<8x128xf32>
    %618 = tpu.concatenate %592, %563, %617 in 0 : vector<8x128xf32>, vector<8x128xf32>, vector<8x128xf32> -> vector<24x128xf32>
    %cst_254 = arith.constant dense<0.000000e+00> : vector<8x128xf32>
    %619 = tpu.matmul %565, %618, %cst_254 {dimension_numbers = #tpu.dot_dimension_numbers<[1], [0], [0], [1], [0, 0, 1, 1], [], []>} : vector<8x24xf32>, vector<24x128xf32>, vector<8x128xf32> -> vector<8x128xf32>
    %620 = vector.broadcast %567 : vector<8x1xf32> to vector<8x128xf32>
    %621 = arith.addf %619, %620 : vector<8x128xf32>
    %c2_255 = arith.constant 2 : index
    %c1_256 = arith.constant 1 : index
    %c0_257 = arith.constant 0 : index
    %c0_258 = arith.constant 0 : index
    %622 = vector.load %arg5[%c2_255, %c1_256, %c0_257, %c0_258] : memref<5x2x8x1xf32, #tpu.memory_space<vmem>>, vector<1x1x8x1xf32>
    %623 = vector.shape_cast %622 : vector<1x1x8x1xf32> to vector<8x1xf32>
    %c2_259 = arith.constant 2 : index
    %c1_260 = arith.constant 1 : index
    %c0_261 = arith.constant 0 : index
    %c0_262 = arith.constant 0 : index
    %624 = vector.load %arg6[%c2_259, %c1_260, %c0_261, %c0_262] : memref<5x2x8x1xf32, #tpu.memory_space<vmem>>, vector<1x1x8x1xf32>
    %625 = vector.shape_cast %624 : vector<1x1x8x1xf32> to vector<8x1xf32>
    %c4_i32_263 = arith.constant 4 : i32
    %c0_i32_264 = arith.constant 0 : i32
    %626 = arith.cmpi eq, %c4_i32_263, %c0_i32_264 : i32
    %c1_i32_265 = arith.constant 1 : i32
    %627 = arith.select %626, %c1_i32_265, %c4_i32_263 : i32
    %628 = vector.broadcast %627 : i32 to vector<1x128xi32>
    %629 = arith.remsi %0, %628 : vector<1x128xi32>
    %c0_i32_266 = arith.constant 0 : i32
    %630 = vector.broadcast %c0_i32_266 : i32 to vector<1x128xi32>
    %631 = arith.cmpi ne, %629, %630 : vector<1x128xi32>
    %c0_i32_267 = arith.constant 0 : i32
    %632 = vector.broadcast %c0_i32_267 : i32 to vector<1x128xi32>
    %633 = arith.cmpi slt, %629, %632 : vector<1x128xi32>
    %c0_i32_268 = arith.constant 0 : i32
    %634 = arith.cmpi slt, %627, %c0_i32_268 : i32
    %635 = vector.broadcast %634 : i1 to vector<1x128xi1>
    %636 = vector.broadcast %635 : vector<1x128xi1> to vector<1x128xi1>
    %637 = arith.xori %633, %636 : vector<1x128xi1>
    %638 = arith.andi %637, %631 : vector<1x128xi1>
    %639 = vector.broadcast %627 : i32 to vector<1x128xi32>
    %640 = arith.addi %629, %639 : vector<1x128xi32>
    %641 = arith.select %638, %640, %629 : vector<1x128xi1>, vector<1x128xi32>
    %c0_i32_269 = arith.constant 0 : i32
    %642 = vector.broadcast %c0_i32_269 : i32 to vector<1x128xi32>
    %643 = arith.cmpi eq, %641, %642 : vector<1x128xi32>
    %cst_270 = arith.constant 0.000000e+00 : f32
    %644 = vector.shape_cast %643 : vector<1x128xi1> to vector<1x128xi1>
    %645 = vector.broadcast %644 : vector<1x128xi1> to vector<8x128xi1>
    %646 = vector.broadcast %cst_270 : f32 to vector<8x128xf32>
    %647 = arith.select %645, %621, %646 : vector<8x128xi1>, vector<8x128xf32>
    %cst_271 = arith.constant dense<0.000000e+00> : vector<8xf32>
    %648 = vector.multi_reduction <add>, %647, %cst_271 [1] : vector<8x128xf32> to vector<8xf32>
    %649 = vector.shape_cast %648 : vector<8xf32> to vector<8x1xf32>
    %650 = arith.mulf %647, %621 : vector<8x128xf32>
    %cst_272 = arith.constant dense<0.000000e+00> : vector<8xf32>
    %651 = vector.multi_reduction <add>, %650, %cst_272 [1] : vector<8x128xf32> to vector<8xf32>
    %652 = vector.shape_cast %651 : vector<8xf32> to vector<8x1xf32>
    %cst_273 = arith.constant 3.125000e-02 : f32
    %653 = vector.broadcast %cst_273 : f32 to vector<8x1xf32>
    %654 = arith.mulf %649, %653 : vector<8x1xf32>
    %cst_274 = arith.constant 3.125000e-02 : f32
    %655 = vector.broadcast %cst_274 : f32 to vector<8x1xf32>
    %656 = arith.mulf %652, %655 : vector<8x1xf32>
    %657 = arith.mulf %654, %654 : vector<8x1xf32>
    %658 = arith.subf %656, %657 : vector<8x1xf32>
    %cst_275 = arith.constant 9.99999974E-6 : f32
    %659 = vector.broadcast %cst_275 : f32 to vector<8x1xf32>
    %660 = arith.addf %658, %659 : vector<8x1xf32>
    %661 = math.rsqrt %660 : vector<8x1xf32>
    %662 = arith.mulf %623, %661 : vector<8x1xf32>
    %663 = arith.mulf %654, %662 : vector<8x1xf32>
    %664 = arith.subf %625, %663 : vector<8x1xf32>
    %665 = vector.broadcast %662 : vector<8x1xf32> to vector<8x128xf32>
    %666 = arith.mulf %621, %665 : vector<8x128xf32>
    %667 = vector.broadcast %664 : vector<8x1xf32> to vector<8x128xf32>
    %668 = arith.addf %666, %667 : vector<8x128xf32>
    %669 = arith.addf %668, %455 : vector<8x128xf32>
    %cst_276 = arith.constant 0.00999999977 : f32
    %670 = vector.broadcast %cst_276 : f32 to vector<8x128xf32>
    %671 = arith.mulf %670, %669 : vector<8x128xf32>
    %672 = arith.maximumf %669, %671 : vector<8x128xf32>
    %673 = vector.extract_strided_slice %672 {offsets = [0, 4], sizes = [8, 124], strides = [1, 1]} : vector<8x128xf32> to vector<8x124xf32>
    %674 = vector.extract_strided_slice %672 {offsets = [0, 0], sizes = [8, 4], strides = [1, 1]} : vector<8x128xf32> to vector<8x4xf32>
    %675 = tpu.concatenate %673, %674 in 1 : vector<8x124xf32>, vector<8x4xf32> -> vector<8x128xf32>
    %676 = arith.maximumf %672, %675 : vector<8x128xf32>
    %c3 = arith.constant 3 : index
    %c0_277 = arith.constant 0 : index
    %c0_278 = arith.constant 0 : index
    %c0_279 = arith.constant 0 : index
    %677 = vector.load %arg3[%c3, %c0_277, %c0_278, %c0_279] : memref<5x2x8x24xf32, #tpu.memory_space<vmem>>, vector<1x1x8x24xf32>
    %678 = vector.shape_cast %677 : vector<1x1x8x24xf32> to vector<8x24xf32>
    %c3_280 = arith.constant 3 : index
    %c0_281 = arith.constant 0 : index
    %c0_282 = arith.constant 0 : index
    %c0_283 = arith.constant 0 : index
    %679 = vector.load %arg4[%c3_280, %c0_281, %c0_282, %c0_283] : memref<5x2x8x1xf32, #tpu.memory_space<vmem>>, vector<1x1x8x1xf32>
    %680 = vector.shape_cast %679 : vector<1x1x8x1xf32> to vector<8x1xf32>
    %c64_i32_284 = arith.constant 64 : i32
    %c0_i32_285 = arith.constant 0 : i32
    %681 = arith.cmpi eq, %c64_i32_284, %c0_i32_285 : i32
    %c1_i32_286 = arith.constant 1 : i32
    %682 = arith.select %681, %c1_i32_286, %c64_i32_284 : i32
    %683 = vector.broadcast %682 : i32 to vector<1x128xi32>
    %684 = arith.remsi %0, %683 : vector<1x128xi32>
    %c0_i32_287 = arith.constant 0 : i32
    %685 = vector.broadcast %c0_i32_287 : i32 to vector<1x128xi32>
    %686 = arith.cmpi ne, %684, %685 : vector<1x128xi32>
    %c0_i32_288 = arith.constant 0 : i32
    %687 = vector.broadcast %c0_i32_288 : i32 to vector<1x128xi32>
    %688 = arith.cmpi slt, %684, %687 : vector<1x128xi32>
    %c0_i32_289 = arith.constant 0 : i32
    %689 = arith.cmpi slt, %682, %c0_i32_289 : i32
    %690 = vector.broadcast %689 : i1 to vector<1x128xi1>
    %691 = vector.broadcast %690 : vector<1x128xi1> to vector<1x128xi1>
    %692 = arith.xori %688, %691 : vector<1x128xi1>
    %693 = arith.andi %692, %686 : vector<1x128xi1>
    %694 = vector.broadcast %682 : i32 to vector<1x128xi32>
    %695 = arith.addi %684, %694 : vector<1x128xi32>
    %696 = arith.select %693, %695, %684 : vector<1x128xi1>, vector<1x128xi32>
    %c0_i32_290 = arith.constant 0 : i32
    %697 = vector.broadcast %c0_i32_290 : i32 to vector<1x128xi32>
    %698 = arith.cmpi eq, %696, %697 : vector<1x128xi32>
    %699 = vector.extract_strided_slice %676 {offsets = [0, 120], sizes = [8, 8], strides = [1, 1]} : vector<8x128xf32> to vector<8x8xf32>
    %700 = vector.extract_strided_slice %676 {offsets = [0, 0], sizes = [8, 120], strides = [1, 1]} : vector<8x128xf32> to vector<8x120xf32>
    %701 = tpu.concatenate %699, %700 in 1 : vector<8x8xf32>, vector<8x120xf32> -> vector<8x128xf32>
    %cst_291 = arith.constant 0.000000e+00 : f32
    %702 = vector.shape_cast %698 : vector<1x128xi1> to vector<1x128xi1>
    %703 = vector.broadcast %702 : vector<1x128xi1> to vector<8x128xi1>
    %704 = vector.broadcast %cst_291 : f32 to vector<8x128xf32>
    %705 = arith.select %703, %704, %701 : vector<8x128xi1>, vector<8x128xf32>
    %c64_i32_292 = arith.constant 64 : i32
    %c0_i32_293 = arith.constant 0 : i32
    %706 = arith.cmpi eq, %c64_i32_292, %c0_i32_293 : i32
    %c1_i32_294 = arith.constant 1 : i32
    %707 = arith.select %706, %c1_i32_294, %c64_i32_292 : i32
    %708 = vector.broadcast %707 : i32 to vector<1x128xi32>
    %709 = arith.remsi %0, %708 : vector<1x128xi32>
    %c0_i32_295 = arith.constant 0 : i32
    %710 = vector.broadcast %c0_i32_295 : i32 to vector<1x128xi32>
    %711 = arith.cmpi ne, %709, %710 : vector<1x128xi32>
    %c0_i32_296 = arith.constant 0 : i32
    %712 = vector.broadcast %c0_i32_296 : i32 to vector<1x128xi32>
    %713 = arith.cmpi slt, %709, %712 : vector<1x128xi32>
    %c0_i32_297 = arith.constant 0 : i32
    %714 = arith.cmpi slt, %707, %c0_i32_297 : i32
    %715 = vector.broadcast %714 : i1 to vector<1x128xi1>
    %716 = vector.broadcast %715 : vector<1x128xi1> to vector<1x128xi1>
    %717 = arith.xori %713, %716 : vector<1x128xi1>
    %718 = arith.andi %717, %711 : vector<1x128xi1>
    %719 = vector.broadcast %707 : i32 to vector<1x128xi32>
    %720 = arith.addi %709, %719 : vector<1x128xi32>
    %721 = arith.select %718, %720, %709 : vector<1x128xi1>, vector<1x128xi32>
    %c56_i32 = arith.constant 56 : i32
    %722 = vector.broadcast %c56_i32 : i32 to vector<1x128xi32>
    %723 = arith.cmpi eq, %721, %722 : vector<1x128xi32>
    %724 = vector.extract_strided_slice %676 {offsets = [0, 8], sizes = [8, 120], strides = [1, 1]} : vector<8x128xf32> to vector<8x120xf32>
    %725 = vector.extract_strided_slice %676 {offsets = [0, 0], sizes = [8, 8], strides = [1, 1]} : vector<8x128xf32> to vector<8x8xf32>
    %726 = tpu.concatenate %724, %725 in 1 : vector<8x120xf32>, vector<8x8xf32> -> vector<8x128xf32>
    %cst_298 = arith.constant 0.000000e+00 : f32
    %727 = vector.shape_cast %723 : vector<1x128xi1> to vector<1x128xi1>
    %728 = vector.broadcast %727 : vector<1x128xi1> to vector<8x128xi1>
    %729 = vector.broadcast %cst_298 : f32 to vector<8x128xf32>
    %730 = arith.select %728, %729, %726 : vector<8x128xi1>, vector<8x128xf32>
    %731 = tpu.concatenate %705, %676, %730 in 0 : vector<8x128xf32>, vector<8x128xf32>, vector<8x128xf32> -> vector<24x128xf32>
    %cst_299 = arith.constant dense<0.000000e+00> : vector<8x128xf32>
    %732 = tpu.matmul %678, %731, %cst_299 {dimension_numbers = #tpu.dot_dimension_numbers<[1], [0], [0], [1], [0, 0, 1, 1], [], []>} : vector<8x24xf32>, vector<24x128xf32>, vector<8x128xf32> -> vector<8x128xf32>
    %733 = vector.broadcast %680 : vector<8x1xf32> to vector<8x128xf32>
    %734 = arith.addf %732, %733 : vector<8x128xf32>
    %c3_300 = arith.constant 3 : index
    %c0_301 = arith.constant 0 : index
    %c0_302 = arith.constant 0 : index
    %c0_303 = arith.constant 0 : index
    %735 = vector.load %arg5[%c3_300, %c0_301, %c0_302, %c0_303] : memref<5x2x8x1xf32, #tpu.memory_space<vmem>>, vector<1x1x8x1xf32>
    %736 = vector.shape_cast %735 : vector<1x1x8x1xf32> to vector<8x1xf32>
    %c3_304 = arith.constant 3 : index
    %c0_305 = arith.constant 0 : index
    %c0_306 = arith.constant 0 : index
    %c0_307 = arith.constant 0 : index
    %737 = vector.load %arg6[%c3_304, %c0_305, %c0_306, %c0_307] : memref<5x2x8x1xf32, #tpu.memory_space<vmem>>, vector<1x1x8x1xf32>
    %738 = vector.shape_cast %737 : vector<1x1x8x1xf32> to vector<8x1xf32>
    %c8_i32 = arith.constant 8 : i32
    %c0_i32_308 = arith.constant 0 : i32
    %739 = arith.cmpi eq, %c8_i32, %c0_i32_308 : i32
    %c1_i32_309 = arith.constant 1 : i32
    %740 = arith.select %739, %c1_i32_309, %c8_i32 : i32
    %741 = vector.broadcast %740 : i32 to vector<1x128xi32>
    %742 = arith.remsi %0, %741 : vector<1x128xi32>
    %c0_i32_310 = arith.constant 0 : i32
    %743 = vector.broadcast %c0_i32_310 : i32 to vector<1x128xi32>
    %744 = arith.cmpi ne, %742, %743 : vector<1x128xi32>
    %c0_i32_311 = arith.constant 0 : i32
    %745 = vector.broadcast %c0_i32_311 : i32 to vector<1x128xi32>
    %746 = arith.cmpi slt, %742, %745 : vector<1x128xi32>
    %c0_i32_312 = arith.constant 0 : i32
    %747 = arith.cmpi slt, %740, %c0_i32_312 : i32
    %748 = vector.broadcast %747 : i1 to vector<1x128xi1>
    %749 = vector.broadcast %748 : vector<1x128xi1> to vector<1x128xi1>
    %750 = arith.xori %746, %749 : vector<1x128xi1>
    %751 = arith.andi %750, %744 : vector<1x128xi1>
    %752 = vector.broadcast %740 : i32 to vector<1x128xi32>
    %753 = arith.addi %742, %752 : vector<1x128xi32>
    %754 = arith.select %751, %753, %742 : vector<1x128xi1>, vector<1x128xi32>
    %c0_i32_313 = arith.constant 0 : i32
    %755 = vector.broadcast %c0_i32_313 : i32 to vector<1x128xi32>
    %756 = arith.cmpi eq, %754, %755 : vector<1x128xi32>
    %cst_314 = arith.constant 0.000000e+00 : f32
    %757 = vector.shape_cast %756 : vector<1x128xi1> to vector<1x128xi1>
    %758 = vector.broadcast %757 : vector<1x128xi1> to vector<8x128xi1>
    %759 = vector.broadcast %cst_314 : f32 to vector<8x128xf32>
    %760 = arith.select %758, %734, %759 : vector<8x128xi1>, vector<8x128xf32>
    %cst_315 = arith.constant dense<0.000000e+00> : vector<8xf32>
    %761 = vector.multi_reduction <add>, %760, %cst_315 [1] : vector<8x128xf32> to vector<8xf32>
    %762 = vector.shape_cast %761 : vector<8xf32> to vector<8x1xf32>
    %763 = arith.mulf %760, %734 : vector<8x128xf32>
    %cst_316 = arith.constant dense<0.000000e+00> : vector<8xf32>
    %764 = vector.multi_reduction <add>, %763, %cst_316 [1] : vector<8x128xf32> to vector<8xf32>
    %765 = vector.shape_cast %764 : vector<8xf32> to vector<8x1xf32>
    %cst_317 = arith.constant 6.250000e-02 : f32
    %766 = vector.broadcast %cst_317 : f32 to vector<8x1xf32>
    %767 = arith.mulf %762, %766 : vector<8x1xf32>
    %cst_318 = arith.constant 6.250000e-02 : f32
    %768 = vector.broadcast %cst_318 : f32 to vector<8x1xf32>
    %769 = arith.mulf %765, %768 : vector<8x1xf32>
    %770 = arith.mulf %767, %767 : vector<8x1xf32>
    %771 = arith.subf %769, %770 : vector<8x1xf32>
    %cst_319 = arith.constant 9.99999974E-6 : f32
    %772 = vector.broadcast %cst_319 : f32 to vector<8x1xf32>
    %773 = arith.addf %771, %772 : vector<8x1xf32>
    %774 = math.rsqrt %773 : vector<8x1xf32>
    %775 = arith.mulf %736, %774 : vector<8x1xf32>
    %776 = arith.mulf %767, %775 : vector<8x1xf32>
    %777 = arith.subf %738, %776 : vector<8x1xf32>
    %778 = vector.broadcast %775 : vector<8x1xf32> to vector<8x128xf32>
    %779 = arith.mulf %734, %778 : vector<8x128xf32>
    %780 = vector.broadcast %777 : vector<8x1xf32> to vector<8x128xf32>
    %781 = arith.addf %779, %780 : vector<8x128xf32>
    %cst_320 = arith.constant 0.00999999977 : f32
    %782 = vector.broadcast %cst_320 : f32 to vector<8x128xf32>
    %783 = arith.mulf %782, %781 : vector<8x128xf32>
    %784 = arith.maximumf %781, %783 : vector<8x128xf32>
    %c3_321 = arith.constant 3 : index
    %c1_322 = arith.constant 1 : index
    %c0_323 = arith.constant 0 : index
    %c0_324 = arith.constant 0 : index
    %785 = vector.load %arg3[%c3_321, %c1_322, %c0_323, %c0_324] : memref<5x2x8x24xf32, #tpu.memory_space<vmem>>, vector<1x1x8x24xf32>
    %786 = vector.shape_cast %785 : vector<1x1x8x24xf32> to vector<8x24xf32>
    %c3_325 = arith.constant 3 : index
    %c1_326 = arith.constant 1 : index
    %c0_327 = arith.constant 0 : index
    %c0_328 = arith.constant 0 : index
    %787 = vector.load %arg4[%c3_325, %c1_326, %c0_327, %c0_328] : memref<5x2x8x1xf32, #tpu.memory_space<vmem>>, vector<1x1x8x1xf32>
    %788 = vector.shape_cast %787 : vector<1x1x8x1xf32> to vector<8x1xf32>
    %c64_i32_329 = arith.constant 64 : i32
    %c0_i32_330 = arith.constant 0 : i32
    %789 = arith.cmpi eq, %c64_i32_329, %c0_i32_330 : i32
    %c1_i32_331 = arith.constant 1 : i32
    %790 = arith.select %789, %c1_i32_331, %c64_i32_329 : i32
    %791 = vector.broadcast %790 : i32 to vector<1x128xi32>
    %792 = arith.remsi %0, %791 : vector<1x128xi32>
    %c0_i32_332 = arith.constant 0 : i32
    %793 = vector.broadcast %c0_i32_332 : i32 to vector<1x128xi32>
    %794 = arith.cmpi ne, %792, %793 : vector<1x128xi32>
    %c0_i32_333 = arith.constant 0 : i32
    %795 = vector.broadcast %c0_i32_333 : i32 to vector<1x128xi32>
    %796 = arith.cmpi slt, %792, %795 : vector<1x128xi32>
    %c0_i32_334 = arith.constant 0 : i32
    %797 = arith.cmpi slt, %790, %c0_i32_334 : i32
    %798 = vector.broadcast %797 : i1 to vector<1x128xi1>
    %799 = vector.broadcast %798 : vector<1x128xi1> to vector<1x128xi1>
    %800 = arith.xori %796, %799 : vector<1x128xi1>
    %801 = arith.andi %800, %794 : vector<1x128xi1>
    %802 = vector.broadcast %790 : i32 to vector<1x128xi32>
    %803 = arith.addi %792, %802 : vector<1x128xi32>
    %804 = arith.select %801, %803, %792 : vector<1x128xi1>, vector<1x128xi32>
    %c0_i32_335 = arith.constant 0 : i32
    %805 = vector.broadcast %c0_i32_335 : i32 to vector<1x128xi32>
    %806 = arith.cmpi eq, %804, %805 : vector<1x128xi32>
    %807 = vector.extract_strided_slice %784 {offsets = [0, 120], sizes = [8, 8], strides = [1, 1]} : vector<8x128xf32> to vector<8x8xf32>
    %808 = vector.extract_strided_slice %784 {offsets = [0, 0], sizes = [8, 120], strides = [1, 1]} : vector<8x128xf32> to vector<8x120xf32>
    %809 = tpu.concatenate %807, %808 in 1 : vector<8x8xf32>, vector<8x120xf32> -> vector<8x128xf32>
    %cst_336 = arith.constant 0.000000e+00 : f32
    %810 = vector.shape_cast %806 : vector<1x128xi1> to vector<1x128xi1>
    %811 = vector.broadcast %810 : vector<1x128xi1> to vector<8x128xi1>
    %812 = vector.broadcast %cst_336 : f32 to vector<8x128xf32>
    %813 = arith.select %811, %812, %809 : vector<8x128xi1>, vector<8x128xf32>
    %c64_i32_337 = arith.constant 64 : i32
    %c0_i32_338 = arith.constant 0 : i32
    %814 = arith.cmpi eq, %c64_i32_337, %c0_i32_338 : i32
    %c1_i32_339 = arith.constant 1 : i32
    %815 = arith.select %814, %c1_i32_339, %c64_i32_337 : i32
    %816 = vector.broadcast %815 : i32 to vector<1x128xi32>
    %817 = arith.remsi %0, %816 : vector<1x128xi32>
    %c0_i32_340 = arith.constant 0 : i32
    %818 = vector.broadcast %c0_i32_340 : i32 to vector<1x128xi32>
    %819 = arith.cmpi ne, %817, %818 : vector<1x128xi32>
    %c0_i32_341 = arith.constant 0 : i32
    %820 = vector.broadcast %c0_i32_341 : i32 to vector<1x128xi32>
    %821 = arith.cmpi slt, %817, %820 : vector<1x128xi32>
    %c0_i32_342 = arith.constant 0 : i32
    %822 = arith.cmpi slt, %815, %c0_i32_342 : i32
    %823 = vector.broadcast %822 : i1 to vector<1x128xi1>
    %824 = vector.broadcast %823 : vector<1x128xi1> to vector<1x128xi1>
    %825 = arith.xori %821, %824 : vector<1x128xi1>
    %826 = arith.andi %825, %819 : vector<1x128xi1>
    %827 = vector.broadcast %815 : i32 to vector<1x128xi32>
    %828 = arith.addi %817, %827 : vector<1x128xi32>
    %829 = arith.select %826, %828, %817 : vector<1x128xi1>, vector<1x128xi32>
    %c56_i32_343 = arith.constant 56 : i32
    %830 = vector.broadcast %c56_i32_343 : i32 to vector<1x128xi32>
    %831 = arith.cmpi eq, %829, %830 : vector<1x128xi32>
    %832 = vector.extract_strided_slice %784 {offsets = [0, 8], sizes = [8, 120], strides = [1, 1]} : vector<8x128xf32> to vector<8x120xf32>
    %833 = vector.extract_strided_slice %784 {offsets = [0, 0], sizes = [8, 8], strides = [1, 1]} : vector<8x128xf32> to vector<8x8xf32>
    %834 = tpu.concatenate %832, %833 in 1 : vector<8x120xf32>, vector<8x8xf32> -> vector<8x128xf32>
    %cst_344 = arith.constant 0.000000e+00 : f32
    %835 = vector.shape_cast %831 : vector<1x128xi1> to vector<1x128xi1>
    %836 = vector.broadcast %835 : vector<1x128xi1> to vector<8x128xi1>
    %837 = vector.broadcast %cst_344 : f32 to vector<8x128xf32>
    %838 = arith.select %836, %837, %834 : vector<8x128xi1>, vector<8x128xf32>
    %839 = tpu.concatenate %813, %784, %838 in 0 : vector<8x128xf32>, vector<8x128xf32>, vector<8x128xf32> -> vector<24x128xf32>
    %cst_345 = arith.constant dense<0.000000e+00> : vector<8x128xf32>
    %840 = tpu.matmul %786, %839, %cst_345 {dimension_numbers = #tpu.dot_dimension_numbers<[1], [0], [0], [1], [0, 0, 1, 1], [], []>} : vector<8x24xf32>, vector<24x128xf32>, vector<8x128xf32> -> vector<8x128xf32>
    %841 = vector.broadcast %788 : vector<8x1xf32> to vector<8x128xf32>
    %842 = arith.addf %840, %841 : vector<8x128xf32>
    %c3_346 = arith.constant 3 : index
    %c1_347 = arith.constant 1 : index
    %c0_348 = arith.constant 0 : index
    %c0_349 = arith.constant 0 : index
    %843 = vector.load %arg5[%c3_346, %c1_347, %c0_348, %c0_349] : memref<5x2x8x1xf32, #tpu.memory_space<vmem>>, vector<1x1x8x1xf32>
    %844 = vector.shape_cast %843 : vector<1x1x8x1xf32> to vector<8x1xf32>
    %c3_350 = arith.constant 3 : index
    %c1_351 = arith.constant 1 : index
    %c0_352 = arith.constant 0 : index
    %c0_353 = arith.constant 0 : index
    %845 = vector.load %arg6[%c3_350, %c1_351, %c0_352, %c0_353] : memref<5x2x8x1xf32, #tpu.memory_space<vmem>>, vector<1x1x8x1xf32>
    %846 = vector.shape_cast %845 : vector<1x1x8x1xf32> to vector<8x1xf32>
    %c8_i32_354 = arith.constant 8 : i32
    %c0_i32_355 = arith.constant 0 : i32
    %847 = arith.cmpi eq, %c8_i32_354, %c0_i32_355 : i32
    %c1_i32_356 = arith.constant 1 : i32
    %848 = arith.select %847, %c1_i32_356, %c8_i32_354 : i32
    %849 = vector.broadcast %848 : i32 to vector<1x128xi32>
    %850 = arith.remsi %0, %849 : vector<1x128xi32>
    %c0_i32_357 = arith.constant 0 : i32
    %851 = vector.broadcast %c0_i32_357 : i32 to vector<1x128xi32>
    %852 = arith.cmpi ne, %850, %851 : vector<1x128xi32>
    %c0_i32_358 = arith.constant 0 : i32
    %853 = vector.broadcast %c0_i32_358 : i32 to vector<1x128xi32>
    %854 = arith.cmpi slt, %850, %853 : vector<1x128xi32>
    %c0_i32_359 = arith.constant 0 : i32
    %855 = arith.cmpi slt, %848, %c0_i32_359 : i32
    %856 = vector.broadcast %855 : i1 to vector<1x128xi1>
    %857 = vector.broadcast %856 : vector<1x128xi1> to vector<1x128xi1>
    %858 = arith.xori %854, %857 : vector<1x128xi1>
    %859 = arith.andi %858, %852 : vector<1x128xi1>
    %860 = vector.broadcast %848 : i32 to vector<1x128xi32>
    %861 = arith.addi %850, %860 : vector<1x128xi32>
    %862 = arith.select %859, %861, %850 : vector<1x128xi1>, vector<1x128xi32>
    %c0_i32_360 = arith.constant 0 : i32
    %863 = vector.broadcast %c0_i32_360 : i32 to vector<1x128xi32>
    %864 = arith.cmpi eq, %862, %863 : vector<1x128xi32>
    %cst_361 = arith.constant 0.000000e+00 : f32
    %865 = vector.shape_cast %864 : vector<1x128xi1> to vector<1x128xi1>
    %866 = vector.broadcast %865 : vector<1x128xi1> to vector<8x128xi1>
    %867 = vector.broadcast %cst_361 : f32 to vector<8x128xf32>
    %868 = arith.select %866, %842, %867 : vector<8x128xi1>, vector<8x128xf32>
    %cst_362 = arith.constant dense<0.000000e+00> : vector<8xf32>
    %869 = vector.multi_reduction <add>, %868, %cst_362 [1] : vector<8x128xf32> to vector<8xf32>
    %870 = vector.shape_cast %869 : vector<8xf32> to vector<8x1xf32>
    %871 = arith.mulf %868, %842 : vector<8x128xf32>
    %cst_363 = arith.constant dense<0.000000e+00> : vector<8xf32>
    %872 = vector.multi_reduction <add>, %871, %cst_363 [1] : vector<8x128xf32> to vector<8xf32>
    %873 = vector.shape_cast %872 : vector<8xf32> to vector<8x1xf32>
    %cst_364 = arith.constant 6.250000e-02 : f32
    %874 = vector.broadcast %cst_364 : f32 to vector<8x1xf32>
    %875 = arith.mulf %870, %874 : vector<8x1xf32>
    %cst_365 = arith.constant 6.250000e-02 : f32
    %876 = vector.broadcast %cst_365 : f32 to vector<8x1xf32>
    %877 = arith.mulf %873, %876 : vector<8x1xf32>
    %878 = arith.mulf %875, %875 : vector<8x1xf32>
    %879 = arith.subf %877, %878 : vector<8x1xf32>
    %cst_366 = arith.constant 9.99999974E-6 : f32
    %880 = vector.broadcast %cst_366 : f32 to vector<8x1xf32>
    %881 = arith.addf %879, %880 : vector<8x1xf32>
    %882 = math.rsqrt %881 : vector<8x1xf32>
    %883 = arith.mulf %844, %882 : vector<8x1xf32>
    %884 = arith.mulf %875, %883 : vector<8x1xf32>
    %885 = arith.subf %846, %884 : vector<8x1xf32>
    %886 = vector.broadcast %883 : vector<8x1xf32> to vector<8x128xf32>
    %887 = arith.mulf %842, %886 : vector<8x128xf32>
    %888 = vector.broadcast %885 : vector<8x1xf32> to vector<8x128xf32>
    %889 = arith.addf %887, %888 : vector<8x128xf32>
    %890 = arith.addf %889, %676 : vector<8x128xf32>
    %cst_367 = arith.constant 0.00999999977 : f32
    %891 = vector.broadcast %cst_367 : f32 to vector<8x128xf32>
    %892 = arith.mulf %891, %890 : vector<8x128xf32>
    %893 = arith.maximumf %890, %892 : vector<8x128xf32>
    %894 = vector.extract_strided_slice %893 {offsets = [0, 8], sizes = [8, 120], strides = [1, 1]} : vector<8x128xf32> to vector<8x120xf32>
    %895 = vector.extract_strided_slice %893 {offsets = [0, 0], sizes = [8, 8], strides = [1, 1]} : vector<8x128xf32> to vector<8x8xf32>
    %896 = tpu.concatenate %894, %895 in 1 : vector<8x120xf32>, vector<8x8xf32> -> vector<8x128xf32>
    %897 = arith.maximumf %893, %896 : vector<8x128xf32>
    %c4 = arith.constant 4 : index
    %c0_368 = arith.constant 0 : index
    %c0_369 = arith.constant 0 : index
    %c0_370 = arith.constant 0 : index
    %898 = vector.load %arg3[%c4, %c0_368, %c0_369, %c0_370] : memref<5x2x8x24xf32, #tpu.memory_space<vmem>>, vector<1x1x8x24xf32>
    %899 = vector.shape_cast %898 : vector<1x1x8x24xf32> to vector<8x24xf32>
    %c4_371 = arith.constant 4 : index
    %c0_372 = arith.constant 0 : index
    %c0_373 = arith.constant 0 : index
    %c0_374 = arith.constant 0 : index
    %900 = vector.load %arg4[%c4_371, %c0_372, %c0_373, %c0_374] : memref<5x2x8x1xf32, #tpu.memory_space<vmem>>, vector<1x1x8x1xf32>
    %901 = vector.shape_cast %900 : vector<1x1x8x1xf32> to vector<8x1xf32>
    %c64_i32_375 = arith.constant 64 : i32
    %c0_i32_376 = arith.constant 0 : i32
    %902 = arith.cmpi eq, %c64_i32_375, %c0_i32_376 : i32
    %c1_i32_377 = arith.constant 1 : i32
    %903 = arith.select %902, %c1_i32_377, %c64_i32_375 : i32
    %904 = vector.broadcast %903 : i32 to vector<1x128xi32>
    %905 = arith.remsi %0, %904 : vector<1x128xi32>
    %c0_i32_378 = arith.constant 0 : i32
    %906 = vector.broadcast %c0_i32_378 : i32 to vector<1x128xi32>
    %907 = arith.cmpi ne, %905, %906 : vector<1x128xi32>
    %c0_i32_379 = arith.constant 0 : i32
    %908 = vector.broadcast %c0_i32_379 : i32 to vector<1x128xi32>
    %909 = arith.cmpi slt, %905, %908 : vector<1x128xi32>
    %c0_i32_380 = arith.constant 0 : i32
    %910 = arith.cmpi slt, %903, %c0_i32_380 : i32
    %911 = vector.broadcast %910 : i1 to vector<1x128xi1>
    %912 = vector.broadcast %911 : vector<1x128xi1> to vector<1x128xi1>
    %913 = arith.xori %909, %912 : vector<1x128xi1>
    %914 = arith.andi %913, %907 : vector<1x128xi1>
    %915 = vector.broadcast %903 : i32 to vector<1x128xi32>
    %916 = arith.addi %905, %915 : vector<1x128xi32>
    %917 = arith.select %914, %916, %905 : vector<1x128xi1>, vector<1x128xi32>
    %c0_i32_381 = arith.constant 0 : i32
    %918 = vector.broadcast %c0_i32_381 : i32 to vector<1x128xi32>
    %919 = arith.cmpi eq, %917, %918 : vector<1x128xi32>
    %920 = vector.extract_strided_slice %897 {offsets = [0, 112], sizes = [8, 16], strides = [1, 1]} : vector<8x128xf32> to vector<8x16xf32>
    %921 = vector.extract_strided_slice %897 {offsets = [0, 0], sizes = [8, 112], strides = [1, 1]} : vector<8x128xf32> to vector<8x112xf32>
    %922 = tpu.concatenate %920, %921 in 1 : vector<8x16xf32>, vector<8x112xf32> -> vector<8x128xf32>
    %cst_382 = arith.constant 0.000000e+00 : f32
    %923 = vector.shape_cast %919 : vector<1x128xi1> to vector<1x128xi1>
    %924 = vector.broadcast %923 : vector<1x128xi1> to vector<8x128xi1>
    %925 = vector.broadcast %cst_382 : f32 to vector<8x128xf32>
    %926 = arith.select %924, %925, %922 : vector<8x128xi1>, vector<8x128xf32>
    %c64_i32_383 = arith.constant 64 : i32
    %c0_i32_384 = arith.constant 0 : i32
    %927 = arith.cmpi eq, %c64_i32_383, %c0_i32_384 : i32
    %c1_i32_385 = arith.constant 1 : i32
    %928 = arith.select %927, %c1_i32_385, %c64_i32_383 : i32
    %929 = vector.broadcast %928 : i32 to vector<1x128xi32>
    %930 = arith.remsi %0, %929 : vector<1x128xi32>
    %c0_i32_386 = arith.constant 0 : i32
    %931 = vector.broadcast %c0_i32_386 : i32 to vector<1x128xi32>
    %932 = arith.cmpi ne, %930, %931 : vector<1x128xi32>
    %c0_i32_387 = arith.constant 0 : i32
    %933 = vector.broadcast %c0_i32_387 : i32 to vector<1x128xi32>
    %934 = arith.cmpi slt, %930, %933 : vector<1x128xi32>
    %c0_i32_388 = arith.constant 0 : i32
    %935 = arith.cmpi slt, %928, %c0_i32_388 : i32
    %936 = vector.broadcast %935 : i1 to vector<1x128xi1>
    %937 = vector.broadcast %936 : vector<1x128xi1> to vector<1x128xi1>
    %938 = arith.xori %934, %937 : vector<1x128xi1>
    %939 = arith.andi %938, %932 : vector<1x128xi1>
    %940 = vector.broadcast %928 : i32 to vector<1x128xi32>
    %941 = arith.addi %930, %940 : vector<1x128xi32>
    %942 = arith.select %939, %941, %930 : vector<1x128xi1>, vector<1x128xi32>
    %c48_i32 = arith.constant 48 : i32
    %943 = vector.broadcast %c48_i32 : i32 to vector<1x128xi32>
    %944 = arith.cmpi eq, %942, %943 : vector<1x128xi32>
    %945 = vector.extract_strided_slice %897 {offsets = [0, 16], sizes = [8, 112], strides = [1, 1]} : vector<8x128xf32> to vector<8x112xf32>
    %946 = vector.extract_strided_slice %897 {offsets = [0, 0], sizes = [8, 16], strides = [1, 1]} : vector<8x128xf32> to vector<8x16xf32>
    %947 = tpu.concatenate %945, %946 in 1 : vector<8x112xf32>, vector<8x16xf32> -> vector<8x128xf32>
    %cst_389 = arith.constant 0.000000e+00 : f32
    %948 = vector.shape_cast %944 : vector<1x128xi1> to vector<1x128xi1>
    %949 = vector.broadcast %948 : vector<1x128xi1> to vector<8x128xi1>
    %950 = vector.broadcast %cst_389 : f32 to vector<8x128xf32>
    %951 = arith.select %949, %950, %947 : vector<8x128xi1>, vector<8x128xf32>
    %952 = tpu.concatenate %926, %897, %951 in 0 : vector<8x128xf32>, vector<8x128xf32>, vector<8x128xf32> -> vector<24x128xf32>
    %cst_390 = arith.constant dense<0.000000e+00> : vector<8x128xf32>
    %953 = tpu.matmul %899, %952, %cst_390 {dimension_numbers = #tpu.dot_dimension_numbers<[1], [0], [0], [1], [0, 0, 1, 1], [], []>} : vector<8x24xf32>, vector<24x128xf32>, vector<8x128xf32> -> vector<8x128xf32>
    %954 = vector.broadcast %901 : vector<8x1xf32> to vector<8x128xf32>
    %955 = arith.addf %953, %954 : vector<8x128xf32>
    %c4_391 = arith.constant 4 : index
    %c0_392 = arith.constant 0 : index
    %c0_393 = arith.constant 0 : index
    %c0_394 = arith.constant 0 : index
    %956 = vector.load %arg5[%c4_391, %c0_392, %c0_393, %c0_394] : memref<5x2x8x1xf32, #tpu.memory_space<vmem>>, vector<1x1x8x1xf32>
    %957 = vector.shape_cast %956 : vector<1x1x8x1xf32> to vector<8x1xf32>
    %c4_395 = arith.constant 4 : index
    %c0_396 = arith.constant 0 : index
    %c0_397 = arith.constant 0 : index
    %c0_398 = arith.constant 0 : index
    %958 = vector.load %arg6[%c4_395, %c0_396, %c0_397, %c0_398] : memref<5x2x8x1xf32, #tpu.memory_space<vmem>>, vector<1x1x8x1xf32>
    %959 = vector.shape_cast %958 : vector<1x1x8x1xf32> to vector<8x1xf32>
    %c16_i32 = arith.constant 16 : i32
    %c0_i32_399 = arith.constant 0 : i32
    %960 = arith.cmpi eq, %c16_i32, %c0_i32_399 : i32
    %c1_i32_400 = arith.constant 1 : i32
    %961 = arith.select %960, %c1_i32_400, %c16_i32 : i32
    %962 = vector.broadcast %961 : i32 to vector<1x128xi32>
    %963 = arith.remsi %0, %962 : vector<1x128xi32>
    %c0_i32_401 = arith.constant 0 : i32
    %964 = vector.broadcast %c0_i32_401 : i32 to vector<1x128xi32>
    %965 = arith.cmpi ne, %963, %964 : vector<1x128xi32>
    %c0_i32_402 = arith.constant 0 : i32
    %966 = vector.broadcast %c0_i32_402 : i32 to vector<1x128xi32>
    %967 = arith.cmpi slt, %963, %966 : vector<1x128xi32>
    %c0_i32_403 = arith.constant 0 : i32
    %968 = arith.cmpi slt, %961, %c0_i32_403 : i32
    %969 = vector.broadcast %968 : i1 to vector<1x128xi1>
    %970 = vector.broadcast %969 : vector<1x128xi1> to vector<1x128xi1>
    %971 = arith.xori %967, %970 : vector<1x128xi1>
    %972 = arith.andi %971, %965 : vector<1x128xi1>
    %973 = vector.broadcast %961 : i32 to vector<1x128xi32>
    %974 = arith.addi %963, %973 : vector<1x128xi32>
    %975 = arith.select %972, %974, %963 : vector<1x128xi1>, vector<1x128xi32>
    %c0_i32_404 = arith.constant 0 : i32
    %976 = vector.broadcast %c0_i32_404 : i32 to vector<1x128xi32>
    %977 = arith.cmpi eq, %975, %976 : vector<1x128xi32>
    %cst_405 = arith.constant 0.000000e+00 : f32
    %978 = vector.shape_cast %977 : vector<1x128xi1> to vector<1x128xi1>
    %979 = vector.broadcast %978 : vector<1x128xi1> to vector<8x128xi1>
    %980 = vector.broadcast %cst_405 : f32 to vector<8x128xf32>
    %981 = arith.select %979, %955, %980 : vector<8x128xi1>, vector<8x128xf32>
    %cst_406 = arith.constant dense<0.000000e+00> : vector<8xf32>
    %982 = vector.multi_reduction <add>, %981, %cst_406 [1] : vector<8x128xf32> to vector<8xf32>
    %983 = vector.shape_cast %982 : vector<8xf32> to vector<8x1xf32>
    %984 = arith.mulf %981, %955 : vector<8x128xf32>
    %cst_407 = arith.constant dense<0.000000e+00> : vector<8xf32>
    %985 = vector.multi_reduction <add>, %984, %cst_407 [1] : vector<8x128xf32> to vector<8xf32>
    %986 = vector.shape_cast %985 : vector<8xf32> to vector<8x1xf32>
    %cst_408 = arith.constant 1.250000e-01 : f32
    %987 = vector.broadcast %cst_408 : f32 to vector<8x1xf32>
    %988 = arith.mulf %983, %987 : vector<8x1xf32>
    %cst_409 = arith.constant 1.250000e-01 : f32
    %989 = vector.broadcast %cst_409 : f32 to vector<8x1xf32>
    %990 = arith.mulf %986, %989 : vector<8x1xf32>
    %991 = arith.mulf %988, %988 : vector<8x1xf32>
    %992 = arith.subf %990, %991 : vector<8x1xf32>
    %cst_410 = arith.constant 9.99999974E-6 : f32
    %993 = vector.broadcast %cst_410 : f32 to vector<8x1xf32>
    %994 = arith.addf %992, %993 : vector<8x1xf32>
    %995 = math.rsqrt %994 : vector<8x1xf32>
    %996 = arith.mulf %957, %995 : vector<8x1xf32>
    %997 = arith.mulf %988, %996 : vector<8x1xf32>
    %998 = arith.subf %959, %997 : vector<8x1xf32>
    %999 = vector.broadcast %996 : vector<8x1xf32> to vector<8x128xf32>
    %1000 = arith.mulf %955, %999 : vector<8x128xf32>
    %1001 = vector.broadcast %998 : vector<8x1xf32> to vector<8x128xf32>
    %1002 = arith.addf %1000, %1001 : vector<8x128xf32>
    %cst_411 = arith.constant 0.00999999977 : f32
    %1003 = vector.broadcast %cst_411 : f32 to vector<8x128xf32>
    %1004 = arith.mulf %1003, %1002 : vector<8x128xf32>
    %1005 = arith.maximumf %1002, %1004 : vector<8x128xf32>
    %c4_412 = arith.constant 4 : index
    %c1_413 = arith.constant 1 : index
    %c0_414 = arith.constant 0 : index
    %c0_415 = arith.constant 0 : index
    %1006 = vector.load %arg3[%c4_412, %c1_413, %c0_414, %c0_415] : memref<5x2x8x24xf32, #tpu.memory_space<vmem>>, vector<1x1x8x24xf32>
    %1007 = vector.shape_cast %1006 : vector<1x1x8x24xf32> to vector<8x24xf32>
    %c4_416 = arith.constant 4 : index
    %c1_417 = arith.constant 1 : index
    %c0_418 = arith.constant 0 : index
    %c0_419 = arith.constant 0 : index
    %1008 = vector.load %arg4[%c4_416, %c1_417, %c0_418, %c0_419] : memref<5x2x8x1xf32, #tpu.memory_space<vmem>>, vector<1x1x8x1xf32>
    %1009 = vector.shape_cast %1008 : vector<1x1x8x1xf32> to vector<8x1xf32>
    %c64_i32_420 = arith.constant 64 : i32
    %c0_i32_421 = arith.constant 0 : i32
    %1010 = arith.cmpi eq, %c64_i32_420, %c0_i32_421 : i32
    %c1_i32_422 = arith.constant 1 : i32
    %1011 = arith.select %1010, %c1_i32_422, %c64_i32_420 : i32
    %1012 = vector.broadcast %1011 : i32 to vector<1x128xi32>
    %1013 = arith.remsi %0, %1012 : vector<1x128xi32>
    %c0_i32_423 = arith.constant 0 : i32
    %1014 = vector.broadcast %c0_i32_423 : i32 to vector<1x128xi32>
    %1015 = arith.cmpi ne, %1013, %1014 : vector<1x128xi32>
    %c0_i32_424 = arith.constant 0 : i32
    %1016 = vector.broadcast %c0_i32_424 : i32 to vector<1x128xi32>
    %1017 = arith.cmpi slt, %1013, %1016 : vector<1x128xi32>
    %c0_i32_425 = arith.constant 0 : i32
    %1018 = arith.cmpi slt, %1011, %c0_i32_425 : i32
    %1019 = vector.broadcast %1018 : i1 to vector<1x128xi1>
    %1020 = vector.broadcast %1019 : vector<1x128xi1> to vector<1x128xi1>
    %1021 = arith.xori %1017, %1020 : vector<1x128xi1>
    %1022 = arith.andi %1021, %1015 : vector<1x128xi1>
    %1023 = vector.broadcast %1011 : i32 to vector<1x128xi32>
    %1024 = arith.addi %1013, %1023 : vector<1x128xi32>
    %1025 = arith.select %1022, %1024, %1013 : vector<1x128xi1>, vector<1x128xi32>
    %c0_i32_426 = arith.constant 0 : i32
    %1026 = vector.broadcast %c0_i32_426 : i32 to vector<1x128xi32>
    %1027 = arith.cmpi eq, %1025, %1026 : vector<1x128xi32>
    %1028 = vector.extract_strided_slice %1005 {offsets = [0, 112], sizes = [8, 16], strides = [1, 1]} : vector<8x128xf32> to vector<8x16xf32>
    %1029 = vector.extract_strided_slice %1005 {offsets = [0, 0], sizes = [8, 112], strides = [1, 1]} : vector<8x128xf32> to vector<8x112xf32>
    %1030 = tpu.concatenate %1028, %1029 in 1 : vector<8x16xf32>, vector<8x112xf32> -> vector<8x128xf32>
    %cst_427 = arith.constant 0.000000e+00 : f32
    %1031 = vector.shape_cast %1027 : vector<1x128xi1> to vector<1x128xi1>
    %1032 = vector.broadcast %1031 : vector<1x128xi1> to vector<8x128xi1>
    %1033 = vector.broadcast %cst_427 : f32 to vector<8x128xf32>
    %1034 = arith.select %1032, %1033, %1030 : vector<8x128xi1>, vector<8x128xf32>
    %c64_i32_428 = arith.constant 64 : i32
    %c0_i32_429 = arith.constant 0 : i32
    %1035 = arith.cmpi eq, %c64_i32_428, %c0_i32_429 : i32
    %c1_i32_430 = arith.constant 1 : i32
    %1036 = arith.select %1035, %c1_i32_430, %c64_i32_428 : i32
    %1037 = vector.broadcast %1036 : i32 to vector<1x128xi32>
    %1038 = arith.remsi %0, %1037 : vector<1x128xi32>
    %c0_i32_431 = arith.constant 0 : i32
    %1039 = vector.broadcast %c0_i32_431 : i32 to vector<1x128xi32>
    %1040 = arith.cmpi ne, %1038, %1039 : vector<1x128xi32>
    %c0_i32_432 = arith.constant 0 : i32
    %1041 = vector.broadcast %c0_i32_432 : i32 to vector<1x128xi32>
    %1042 = arith.cmpi slt, %1038, %1041 : vector<1x128xi32>
    %c0_i32_433 = arith.constant 0 : i32
    %1043 = arith.cmpi slt, %1036, %c0_i32_433 : i32
    %1044 = vector.broadcast %1043 : i1 to vector<1x128xi1>
    %1045 = vector.broadcast %1044 : vector<1x128xi1> to vector<1x128xi1>
    %1046 = arith.xori %1042, %1045 : vector<1x128xi1>
    %1047 = arith.andi %1046, %1040 : vector<1x128xi1>
    %1048 = vector.broadcast %1036 : i32 to vector<1x128xi32>
    %1049 = arith.addi %1038, %1048 : vector<1x128xi32>
    %1050 = arith.select %1047, %1049, %1038 : vector<1x128xi1>, vector<1x128xi32>
    %c48_i32_434 = arith.constant 48 : i32
    %1051 = vector.broadcast %c48_i32_434 : i32 to vector<1x128xi32>
    %1052 = arith.cmpi eq, %1050, %1051 : vector<1x128xi32>
    %1053 = vector.extract_strided_slice %1005 {offsets = [0, 16], sizes = [8, 112], strides = [1, 1]} : vector<8x128xf32> to vector<8x112xf32>
    %1054 = vector.extract_strided_slice %1005 {offsets = [0, 0], sizes = [8, 16], strides = [1, 1]} : vector<8x128xf32> to vector<8x16xf32>
    %1055 = tpu.concatenate %1053, %1054 in 1 : vector<8x112xf32>, vector<8x16xf32> -> vector<8x128xf32>
    %cst_435 = arith.constant 0.000000e+00 : f32
    %1056 = vector.shape_cast %1052 : vector<1x128xi1> to vector<1x128xi1>
    %1057 = vector.broadcast %1056 : vector<1x128xi1> to vector<8x128xi1>
    %1058 = vector.broadcast %cst_435 : f32 to vector<8x128xf32>
    %1059 = arith.select %1057, %1058, %1055 : vector<8x128xi1>, vector<8x128xf32>
    %1060 = tpu.concatenate %1034, %1005, %1059 in 0 : vector<8x128xf32>, vector<8x128xf32>, vector<8x128xf32> -> vector<24x128xf32>
    %cst_436 = arith.constant dense<0.000000e+00> : vector<8x128xf32>
    %1061 = tpu.matmul %1007, %1060, %cst_436 {dimension_numbers = #tpu.dot_dimension_numbers<[1], [0], [0], [1], [0, 0, 1, 1], [], []>} : vector<8x24xf32>, vector<24x128xf32>, vector<8x128xf32> -> vector<8x128xf32>
    %1062 = vector.broadcast %1009 : vector<8x1xf32> to vector<8x128xf32>
    %1063 = arith.addf %1061, %1062 : vector<8x128xf32>
    %c4_437 = arith.constant 4 : index
    %c1_438 = arith.constant 1 : index
    %c0_439 = arith.constant 0 : index
    %c0_440 = arith.constant 0 : index
    %1064 = vector.load %arg5[%c4_437, %c1_438, %c0_439, %c0_440] : memref<5x2x8x1xf32, #tpu.memory_space<vmem>>, vector<1x1x8x1xf32>
    %1065 = vector.shape_cast %1064 : vector<1x1x8x1xf32> to vector<8x1xf32>
    %c4_441 = arith.constant 4 : index
    %c1_442 = arith.constant 1 : index
    %c0_443 = arith.constant 0 : index
    %c0_444 = arith.constant 0 : index
    %1066 = vector.load %arg6[%c4_441, %c1_442, %c0_443, %c0_444] : memref<5x2x8x1xf32, #tpu.memory_space<vmem>>, vector<1x1x8x1xf32>
    %1067 = vector.shape_cast %1066 : vector<1x1x8x1xf32> to vector<8x1xf32>
    %c16_i32_445 = arith.constant 16 : i32
    %c0_i32_446 = arith.constant 0 : i32
    %1068 = arith.cmpi eq, %c16_i32_445, %c0_i32_446 : i32
    %c1_i32_447 = arith.constant 1 : i32
    %1069 = arith.select %1068, %c1_i32_447, %c16_i32_445 : i32
    %1070 = vector.broadcast %1069 : i32 to vector<1x128xi32>
    %1071 = arith.remsi %0, %1070 : vector<1x128xi32>
    %c0_i32_448 = arith.constant 0 : i32
    %1072 = vector.broadcast %c0_i32_448 : i32 to vector<1x128xi32>
    %1073 = arith.cmpi ne, %1071, %1072 : vector<1x128xi32>
    %c0_i32_449 = arith.constant 0 : i32
    %1074 = vector.broadcast %c0_i32_449 : i32 to vector<1x128xi32>
    %1075 = arith.cmpi slt, %1071, %1074 : vector<1x128xi32>
    %c0_i32_450 = arith.constant 0 : i32
    %1076 = arith.cmpi slt, %1069, %c0_i32_450 : i32
    %1077 = vector.broadcast %1076 : i1 to vector<1x128xi1>
    %1078 = vector.broadcast %1077 : vector<1x128xi1> to vector<1x128xi1>
    %1079 = arith.xori %1075, %1078 : vector<1x128xi1>
    %1080 = arith.andi %1079, %1073 : vector<1x128xi1>
    %1081 = vector.broadcast %1069 : i32 to vector<1x128xi32>
    %1082 = arith.addi %1071, %1081 : vector<1x128xi32>
    %1083 = arith.select %1080, %1082, %1071 : vector<1x128xi1>, vector<1x128xi32>
    %c0_i32_451 = arith.constant 0 : i32
    %1084 = vector.broadcast %c0_i32_451 : i32 to vector<1x128xi32>
    %1085 = arith.cmpi eq, %1083, %1084 : vector<1x128xi32>
    %cst_452 = arith.constant 0.000000e+00 : f32
    %1086 = vector.shape_cast %1085 : vector<1x128xi1> to vector<1x128xi1>
    %1087 = vector.broadcast %1086 : vector<1x128xi1> to vector<8x128xi1>
    %1088 = vector.broadcast %cst_452 : f32 to vector<8x128xf32>
    %1089 = arith.select %1087, %1063, %1088 : vector<8x128xi1>, vector<8x128xf32>
    %cst_453 = arith.constant dense<0.000000e+00> : vector<8xf32>
    %1090 = vector.multi_reduction <add>, %1089, %cst_453 [1] : vector<8x128xf32> to vector<8xf32>
    %1091 = vector.shape_cast %1090 : vector<8xf32> to vector<8x1xf32>
    %1092 = arith.mulf %1089, %1063 : vector<8x128xf32>
    %cst_454 = arith.constant dense<0.000000e+00> : vector<8xf32>
    %1093 = vector.multi_reduction <add>, %1092, %cst_454 [1] : vector<8x128xf32> to vector<8xf32>
    %1094 = vector.shape_cast %1093 : vector<8xf32> to vector<8x1xf32>
    %cst_455 = arith.constant 1.250000e-01 : f32
    %1095 = vector.broadcast %cst_455 : f32 to vector<8x1xf32>
    %1096 = arith.mulf %1091, %1095 : vector<8x1xf32>
    %cst_456 = arith.constant 1.250000e-01 : f32
    %1097 = vector.broadcast %cst_456 : f32 to vector<8x1xf32>
    %1098 = arith.mulf %1094, %1097 : vector<8x1xf32>
    %1099 = arith.mulf %1096, %1096 : vector<8x1xf32>
    %1100 = arith.subf %1098, %1099 : vector<8x1xf32>
    %cst_457 = arith.constant 9.99999974E-6 : f32
    %1101 = vector.broadcast %cst_457 : f32 to vector<8x1xf32>
    %1102 = arith.addf %1100, %1101 : vector<8x1xf32>
    %1103 = math.rsqrt %1102 : vector<8x1xf32>
    %1104 = arith.mulf %1065, %1103 : vector<8x1xf32>
    %1105 = arith.mulf %1096, %1104 : vector<8x1xf32>
    %1106 = arith.subf %1067, %1105 : vector<8x1xf32>
    %1107 = vector.broadcast %1104 : vector<8x1xf32> to vector<8x128xf32>
    %1108 = arith.mulf %1063, %1107 : vector<8x128xf32>
    %1109 = vector.broadcast %1106 : vector<8x1xf32> to vector<8x128xf32>
    %1110 = arith.addf %1108, %1109 : vector<8x128xf32>
    %1111 = arith.addf %1110, %897 : vector<8x128xf32>
    %cst_458 = arith.constant 0.00999999977 : f32
    %1112 = vector.broadcast %cst_458 : f32 to vector<8x128xf32>
    %1113 = arith.mulf %1112, %1111 : vector<8x128xf32>
    %1114 = arith.maximumf %1111, %1113 : vector<8x128xf32>
    %1115 = vector.extract_strided_slice %1114 {offsets = [0, 16], sizes = [8, 112], strides = [1, 1]} : vector<8x128xf32> to vector<8x112xf32>
    %1116 = vector.extract_strided_slice %1114 {offsets = [0, 0], sizes = [8, 16], strides = [1, 1]} : vector<8x128xf32> to vector<8x16xf32>
    %1117 = tpu.concatenate %1115, %1116 in 1 : vector<8x112xf32>, vector<8x16xf32> -> vector<8x128xf32>
    %1118 = arith.maximumf %1114, %1117 : vector<8x128xf32>
    %1119 = tpu.iota {dimensions = array<i32: 0>} : vector<128x2xi32>
    %1120 = tpu.iota {dimensions = array<i32: 1>} : vector<128x2xi32>
    %c0_459 = arith.constant 0 : index
    %c0_460 = arith.constant 0 : index
    %1121 = vector.load %arg8[%c0_459, %c0_460] : memref<8x1xf32, #tpu.memory_space<vmem>>, vector<8x1xf32>
    %c64_i32_461 = arith.constant 64 : i32
    %1122 = vector.broadcast %c64_i32_461 : i32 to vector<128x2xi32>
    %1123 = arith.muli %1120, %1122 : vector<128x2xi32>
    %c0_i32_462 = arith.constant 0 : i32
    %1124 = vector.broadcast %c0_i32_462 : i32 to vector<128x2xi32>
    %1125 = arith.addi %1123, %1124 : vector<128x2xi32>
    %1126 = arith.cmpi eq, %1119, %1125 : vector<128x2xi32>
    %1127 = arith.extui %1126 : vector<128x2xi1> to vector<128x2xi32>
    %1128 = arith.sitofp %1127 : vector<128x2xi32> to vector<128x2xf32>
    %cst_463 = arith.constant dense<0.000000e+00> : vector<8x2xf32>
    %1129 = tpu.matmul %1118, %1128, %cst_463 {dimension_numbers = #tpu.dot_dimension_numbers<[1], [0], [0], [1], [0, 0, 1, 1], [], []>} : vector<8x128xf32>, vector<128x2xf32>, vector<8x2xf32> -> vector<8x2xf32>
    %c0_464 = arith.constant 0 : index
    %c0_465 = arith.constant 0 : index
    %c0_466 = arith.constant 0 : index
    %1130 = vector.load %arg7[%c0_464, %c0_465, %c0_466] : memref<2x8x8xf32, #tpu.memory_space<vmem>>, vector<1x8x8xf32>
    %1131 = vector.shape_cast %1130 : vector<1x8x8xf32> to vector<8x8xf32>
    %cst_467 = arith.constant dense<0.000000e+00> : vector<8x2xf32>
    %1132 = tpu.matmul %1131, %1129, %cst_467 {dimension_numbers = #tpu.dot_dimension_numbers<[1], [0], [0], [1], [0, 0, 1, 1], [], []>} : vector<8x8xf32>, vector<8x2xf32>, vector<8x2xf32> -> vector<8x2xf32>
    %1133 = vector.broadcast %1121 : vector<8x1xf32> to vector<8x2xf32>
    %1134 = arith.addf %1133, %1132 : vector<8x2xf32>
    %c64_i32_468 = arith.constant 64 : i32
    %1135 = vector.broadcast %c64_i32_468 : i32 to vector<128x2xi32>
    %1136 = arith.muli %1120, %1135 : vector<128x2xi32>
    %c32_i32 = arith.constant 32 : i32
    %1137 = vector.broadcast %c32_i32 : i32 to vector<128x2xi32>
    %1138 = arith.addi %1136, %1137 : vector<128x2xi32>
    %1139 = arith.cmpi eq, %1119, %1138 : vector<128x2xi32>
    %1140 = arith.extui %1139 : vector<128x2xi1> to vector<128x2xi32>
    %1141 = arith.sitofp %1140 : vector<128x2xi32> to vector<128x2xf32>
    %cst_469 = arith.constant dense<0.000000e+00> : vector<8x2xf32>
    %1142 = tpu.matmul %1118, %1141, %cst_469 {dimension_numbers = #tpu.dot_dimension_numbers<[1], [0], [0], [1], [0, 0, 1, 1], [], []>} : vector<8x128xf32>, vector<128x2xf32>, vector<8x2xf32> -> vector<8x2xf32>
    %c1_470 = arith.constant 1 : index
    %c0_471 = arith.constant 0 : index
    %c0_472 = arith.constant 0 : index
    %1143 = vector.load %arg7[%c1_470, %c0_471, %c0_472] : memref<2x8x8xf32, #tpu.memory_space<vmem>>, vector<1x8x8xf32>
    %1144 = vector.shape_cast %1143 : vector<1x8x8xf32> to vector<8x8xf32>
    %cst_473 = arith.constant dense<0.000000e+00> : vector<8x2xf32>
    %1145 = tpu.matmul %1144, %1142, %cst_473 {dimension_numbers = #tpu.dot_dimension_numbers<[1], [0], [0], [1], [0, 0, 1, 1], [], []>} : vector<8x8xf32>, vector<8x2xf32>, vector<8x2xf32> -> vector<8x2xf32>
    %1146 = arith.addf %1134, %1145 : vector<8x2xf32>
    %c0_474 = arith.constant 0 : index
    %c0_475 = arith.constant 0 : index
    %1147 = vector.load %arg9[%c0_474, %c0_475] : memref<8x2xf32, #tpu.memory_space<vmem>>, vector<8x2xf32>
    tpu.vector_store %arg9[%c0_474, %c0_475], %1146 {strides = array<i32>} : memref<8x2xf32, #tpu.memory_space<vmem>>, vector<8x2xf32>,
    return
  }
}

</mosaic_0001>

<llo_original>
// kernel: encoder_pallas.1
$region0: #{encoder_pallas.1}
  #allocation0 [shape = 'u32[]', space=smem, size = 0x4, offset = 0x4, fixed_abs, tag = 'smem constant byte address 0x4 - core index']
  #allocation1 [shape = 'u32[72,128]{1,0:T(1,128)}', space=vmem, size = 0x9000, scoped, tag = 'internal scratch']
  %s0 = inlined_call_operand.vmem [shape: f32[2,128], index: 0, kind: input, shape index: {}]
  %s1 = inlined_call_operand.vmem [shape: f32[8,6], index: 1, kind: input, shape index: {}]
  %s2 = inlined_call_operand.vmem [shape: f32[8,1], index: 2, kind: input, shape index: {}]
  %s3 = inlined_call_operand.vmem [shape: f32[5,2,8,24], index: 3, kind: input, shape index: {}]
  %s4 = inlined_call_operand.vmem [shape: f32[5,2,8,1], index: 4, kind: input, shape index: {}]
  %s5 = inlined_call_operand.vmem [shape: f32[5,2,8,1], index: 5, kind: input, shape index: {}]
  %s6 = inlined_call_operand.vmem [shape: f32[5,2,8,1], index: 6, kind: input, shape index: {}]
  %s7 = inlined_call_operand.vmem [shape: f32[2,8,8], index: 7, kind: input, shape index: {}]
  %s8 = inlined_call_operand.vmem [shape: f32[8,1], index: 8, kind: input, shape index: {}]
  %s9 = inlined_call_operand.vmem [shape: f32[8,2], index: 9, kind: output, shape index: {}]
  %s10 = sld [smem:[#allocation0]]
  $region46: #{encoder_pallas.1} parent=0
    _
  %s12 = ssub.s32 1, %s10
  %s13 = scalar_select 0, %s12, %s10
  // Predicated region
  $region2: #{encoder_pallas.1} parent=0 // pred_check
    _
  $region3: #{encoder_pallas.1} parent=0 // pred_check_branch
    %15 = sbr.rel (0) target = $region5
  $region4: #{encoder_pallas.1} parent=0 // pred_region
    _
  $region5: #{encoder_pallas.1} parent=0 // pred_fallthru
    _
  // Predicated region
  $region6: #{encoder_pallas.1} parent=0 // pred_check
    _
  $region7: #{encoder_pallas.1} parent=0 // pred_check_branch
    %17 = sbr.rel (0) target = $region9
  $region8: #{encoder_pallas.1} parent=0 // pred_region
    _
  $region9: #{encoder_pallas.1} parent=0 // pred_fallthru
    _
  // Predicated region
  $region10: #{encoder_pallas.1} parent=0 // pred_check
    _
  $region11: #{encoder_pallas.1} parent=0 // pred_check_branch
    %19 = sbr.rel (0) target = $region13
  $region12: #{encoder_pallas.1} parent=0 // pred_region
    _
  $region13: #{encoder_pallas.1} parent=0 // pred_fallthru
    _
  // Predicated region
  $region14: #{encoder_pallas.1} parent=0 // pred_check
    _
  $region15: #{encoder_pallas.1} parent=0 // pred_check_branch
    %21 = sbr.rel (0) target = $region17
  $region16: #{encoder_pallas.1} parent=0 // pred_region
    _
  $region17: #{encoder_pallas.1} parent=0 // pred_fallthru
    _
  // Predicated region
  $region18: #{encoder_pallas.1} parent=0 // pred_check
    _
  $region19: #{encoder_pallas.1} parent=0 // pred_check_branch
    %23 = sbr.rel (0) target = $region21
  $region20: #{encoder_pallas.1} parent=0 // pred_region
    _
  $region21: #{encoder_pallas.1} parent=0 // pred_fallthru
    _
  // Predicated region
  $region22: #{encoder_pallas.1} parent=0 // pred_check
    _
  $region23: #{encoder_pallas.1} parent=0 // pred_check_branch
    %25 = sbr.rel (0) target = $region25
  $region24: #{encoder_pallas.1} parent=0 // pred_region
    _
  $region25: #{encoder_pallas.1} parent=0 // pred_fallthru
    _
  // Predicated region
  $region26: #{encoder_pallas.1} parent=0 // pred_check
    _
  $region27: #{encoder_pallas.1} parent=0 // pred_check_branch
    %27 = sbr.rel (0) target = $region29
  $region28: #{encoder_pallas.1} parent=0 // pred_region
    _
  $region29: #{encoder_pallas.1} parent=0 // pred_fallthru
    _
  // Predicated region
  $region30: #{encoder_pallas.1} parent=0 // pred_check
    _
  $region31: #{encoder_pallas.1} parent=0 // pred_check_branch
    %29 = sbr.rel (0) target = $region33
  $region32: #{encoder_pallas.1} parent=0 // pred_region
    _
  $region33: #{encoder_pallas.1} parent=0 // pred_fallthru
    _
  // Predicated region
  $region34: #{encoder_pallas.1} parent=0 // pred_check
    _
  $region35: #{encoder_pallas.1} parent=0 // pred_check_branch
    %31 = sbr.rel (0) target = $region37
  $region36: #{encoder_pallas.1} parent=0 // pred_region
    _
  $region37: #{encoder_pallas.1} parent=0 // pred_fallthru
    _
  %v32 = vlaneseq
  %v33 = vand.u32 %v32, 127
  %v34 = vld [vmem:[%s0] sm:$0x3]
  %v35 = vld [vmem:[%s1] sm:$0xff]
  %v36 = vld [vmem:[%s2] sm:$0xff]
  %vm37 = vcmp.lt.s32.totalorder %v33, 0
  %v38 = vsub.s32 0, %v33
  %v39 = vsel %vm37, %v38, %v33
  %v40 = vshrl.u32 %v39, 6
  %v41 = vand.u32 %v39, 63
  %v42 = vsub.s32 0, %v41
  %v43 = vsel %vm37, %v42, %v41
  %vm44 = vcmp.ne.s32.totalorder %v43, 0
  %vm45 = vcmp.lt.s32.totalorder %v43, 0
  %vm46 = vmand %vm45, %vm44
  %v47 = vadd.s32 %v43, 64
  %v48 = vsel %vm46, %v47, %v43
  %vm49 = vcmp.eq.s32.totalorder %v48, 0
  %51 = vrot.lane.b32.xlu0 %v34, 1
  %v52 = vpop.permute.xlu0 %51
  %v54 = vsel %vm49, 1, 0
  %vm55 = vcmp.eq.s32.totalorder %v54, 1
  %v56 = vsel %vm55, 0.0, %v52
  %vm57 = vcmp.eq.s32.totalorder %v48, 63
  %58 = vrot.lane.b32.xlu0 %v34, 127
  %v59 = vpop.permute.xlu0 %58
  %v61 = vsel %vm57, 1, 0
  %vm62 = vcmp.eq.s32.totalorder %v61, 1
  %v63 = vsel %vm62, 0.0, %v59
  %v64 = vrot.slane %v34, 6
  %v67 = vrot.slane %v63, 4
  %vm69 = vcmask 1041408
  %v70 = vsel %vm69, %v56, %v64
  %vm71 = vcmask 1043456
  %v72 = vsel %vm71, %v70, %v67
  %74 = vset.pattern.permute.xlu0 0
  %75 = vperm.xlu0 %74, %v36
  %v76 = vpop.permute.xlu0 %75
  %vm78 = vcmask 48128
  %v80 = vsel %vm78, %v35, 0
  %vm82 = vcmask 1045504
  %v84 = vsel %vm82, %v72, 0
  %86 = vmatpush.msra.mxu0 0.0
  %87 = vmatpush.msra.mxu0 0.0
  %88 = vmatpush.msra.mxu0 0.0
  %89 = vmatpush.msra.mxu0 0.0
  %90 = vmatpush.msra.mxu0 0.0
  %91 = vmatpush.msra.mxu0 0.0
  %92 = vmatpush.msra.mxu0 0.0
  %93 = vmatpush.msra.mxu0 0.0
  %94 = vmatpush.msra.mxu0 0.0
  %95 = vmatpush.msra.mxu0 0.0
  %96 = vmatpush.msra.mxu0 0.0
  %97 = vmatpush.msra.mxu0 0.0
  %98 = vmatpush.msra.mxu0 0.0
  %99 = vmatpush.msra.mxu0 0.0
  %100 = vmatpush.msra.mxu0 0.0
  %101 = vmatpush.msra.mxu0 %v84
  %102 = vmatmul.f32.gmra.mxu0 %v80
  %v103 = vpop.f32.mrf.mxu0
  %v104 = vadd.f32 %v76, %v103
  %105 = vdwg.mxu0
  %v106 = vld [vmem:[%s3] sm:$0xff]
  %v107 = vld [vmem:[%s4] sm:$0xff]
  %109 = vrot.lane.b32.xlu0 %v104, 1
  %v110 = vpop.permute.xlu0 %109
  %v112 = vsel %vm55, 0.0, %v110
  %113 = vrot.lane.b32.xlu0 %v104, 127
  %v114 = vpop.permute.xlu0 %113
  %v116 = vsel %vm62, 0.0, %v114
  %118 = vset.pattern.permute.xlu0 0
  %119 = vperm.xlu0 %118, %v107
  %v120 = vpop.permute.xlu0 %119
  %vm122 = vcmask 195584
  %v124 = vsel %vm122, %v106, 0
  %126 = vmatpush.msra.mxu0 0.0
  %127 = vmatpush.msra.mxu0 0.0
  %128 = vmatpush.msra.mxu0 0.0
  %129 = vmatpush.msra.mxu0 0.0
  %130 = vmatpush.msra.mxu0 0.0
  %131 = vmatpush.msra.mxu0 0.0
  %132 = vmatpush.msra.mxu0 0.0
  %133 = vmatpush.msra.mxu0 0.0
  %134 = vmatpush.msra.mxu0 0.0
  %135 = vmatpush.msra.mxu0 0.0
  %136 = vmatpush.msra.mxu0 0.0
  %137 = vmatpush.msra.mxu0 0.0
  %138 = vmatpush.msra.mxu0 0.0
  %139 = vmatpush.msra.mxu0 %v116
  %140 = vmatpush.msra.mxu0 %v104
  %141 = vmatpush.msra.mxu0 %v112
  %142 = vmatmul.f32.gmra.mxu0 %v124
  %v143 = vpop.f32.mrf.mxu0
  %v144 = vadd.f32 %v120, %v143
  %145 = vdwg.mxu0
  %v146 = vld [vmem:[%s5] sm:$0xff]
  %v147 = vld [vmem:[%s6] sm:$0xff]
  %148 = vadd.xlane.f32.xlu0 %v144
  %v149 = vpop.xlane.xlu0 %148
  %v150 = vmul.f32 %v144, %v144
  %151 = vadd.xlane.f32.xlu0 %v150
  %v152 = vpop.xlane.xlu0 %151
  %v153 = vmul.f32 %v149, 0.0078125
  %v154 = vmul.f32 %v152, 0.0078125
  %v155 = vmul.f32 %v153, %v153
  %v156 = vsub.f32 %v154, %v155
  %v157 = vadd.f32 %v156, 1e-05
  %v158 = vrsqrt.pop %v157
  %v159 = vmul.f32 %v158, %v157
  %v160 = vmul.f32 %v159, %v158
  %v161 = vmul.f32 0.5, %v160
  %v162 = vsub.f32 1.5, %v161
  %v163 = vmul.f32 %v158, %v162
  %vm164 = vweird.f32 %v157
  %vm165 = vweird.f32 %v158
  %vm166 = vmor %vm164, %vm165
  %v167 = vsel %vm166, %v158, %v163
  %v168 = vmul.f32 %v146, %v167
  %v169 = vmul.f32 %v153, %v168
  %v170 = vsub.f32 %v147, %v169
  %172 = vset.pattern.permute.xlu0 0
  %173 = vperm.xlu0 %172, %v168
  %v174 = vpop.permute.xlu0 %173
  %v176 = vmul.f32 %v144, %v174
  %178 = vset.pattern.permute.xlu0 0
  %179 = vperm.xlu0 %178, %v170
  %v180 = vpop.permute.xlu0 %179
  %v182 = vadd.f32 %v176, %v180
  %v183 = vmul.f32 %v182, 0.01
  %v184 = vmax.f32 %v182, %v183
  %s185 = scalar_lea.vmem %s3, 8
  %v186 = vld [vmem:[%s185] sm:$0xff]
  %s187 = scalar_lea.vmem %s4, 8
  %v188 = vld [vmem:[%s187] sm:$0xff]
  %190 = vrot.lane.b32.xlu0 %v184, 1
  %v191 = vpop.permute.xlu0 %190
  %v193 = vsel %vm55, 0.0, %v191
  %194 = vrot.lane.b32.xlu0 %v184, 127
  %v195 = vpop.permute.xlu0 %194
  %v197 = vsel %vm62, 0.0, %v195
  %199 = vset.pattern.permute.xlu0 0
  %200 = vperm.xlu0 %199, %v188
  %v201 = vpop.permute.xlu0 %200
  %v204 = vsel %vm122, %v186, 0
  %206 = vmatpush.msra.mxu0 0.0
  %207 = vmatpush.msra.mxu0 0.0
  %208 = vmatpush.msra.mxu0 0.0
  %209 = vmatpush.msra.mxu0 0.0
  %210 = vmatpush.msra.mxu0 0.0
  %211 = vmatpush.msra.mxu0 0.0
  %212 = vmatpush.msra.mxu0 0.0
  %213 = vmatpush.msra.mxu0 0.0
  %214 = vmatpush.msra.mxu0 0.0
  %215 = vmatpush.msra.mxu0 0.0
  %216 = vmatpush.msra.mxu0 0.0
  %217 = vmatpush.msra.mxu0 0.0
  %218 = vmatpush.msra.mxu0 0.0
  %219 = vmatpush.msra.mxu0 %v197
  %220 = vmatpush.msra.mxu0 %v184
  %221 = vmatpush.msra.mxu0 %v193
  %222 = vmatmul.f32.gmra.mxu0 %v204
  %v223 = vpop.f32.mrf.mxu0
  %v224 = vadd.f32 %v201, %v223
  %225 = vdwg.mxu0
  %s226 = scalar_lea.vmem %s5, 8
  %v227 = vld [vmem:[%s226] sm:$0xff]
  %s228 = scalar_lea.vmem %s6, 8
  %v229 = vld [vmem:[%s228] sm:$0xff]
  %230 = vadd.xlane.f32.xlu0 %v224
  %v231 = vpop.xlane.xlu0 %230
  %v232 = vmul.f32 %v224, %v224
  %233 = vadd.xlane.f32.xlu0 %v232
  %v234 = vpop.xlane.xlu0 %233
  %v235 = vmul.f32 %v231, 0.0078125
  %v236 = vmul.f32 %v234, 0.0078125
  %v237 = vmul.f32 %v235, %v235
  %v238 = vsub.f32 %v236, %v237
  %v239 = vadd.f32 %v238, 1e-05
  %v240 = vrsqrt.pop %v239
  %v241 = vmul.f32 %v240, %v239
  %v242 = vmul.f32 %v241, %v240
  %v243 = vmul.f32 0.5, %v242
  %v244 = vsub.f32 1.5, %v243
  %v245 = vmul.f32 %v240, %v244
  %vm246 = vweird.f32 %v239
  %vm247 = vweird.f32 %v240
  %vm248 = vmor %vm246, %vm247
  %v249 = vsel %vm248, %v240, %v245
  %v250 = vmul.f32 %v227, %v249
  %v251 = vmul.f32 %v235, %v250
  %v252 = vsub.f32 %v229, %v251
  %254 = vset.pattern.permute.xlu0 0
  %255 = vperm.xlu0 %254, %v250
  %v256 = vpop.permute.xlu0 %255
  %v258 = vmul.f32 %v224, %v256
  %260 = vset.pattern.permute.xlu0 0
  %261 = vperm.xlu0 %260, %v252
  %v262 = vpop.permute.xlu0 %261
  %v264 = vadd.f32 %v258, %v262
  %v265 = vadd.f32 %v264, %v104
  %v266 = vmul.f32 %v265, 0.01
  %v267 = vmax.f32 %v265, %v266
  %269 = vrot.lane.b32.xlu0 %v267, 127
  %v270 = vpop.permute.xlu0 %269
  %v272 = vmax.f32 %v267, %v270
  %s273 = scalar_lea.vmem %s3, 16
  %v274 = vld [vmem:[%s273] sm:$0xff]
  %s275 = scalar_lea.vmem %s4, 16
  %v276 = vld [vmem:[%s275] sm:$0xff]
  %278 = vrot.lane.b32.xlu0 %v272, 2
  %v279 = vpop.permute.xlu0 %278
  %vm281 = vcmask 15360
  %v282 = vsel %vm55, 0.0, %v279
  %vm283 = vcmp.eq.s32.totalorder %v48, 62
  %284 = vrot.lane.b32.xlu0 %v272, 126
  %v285 = vpop.permute.xlu0 %284
  %v287 = vsel %vm283, 1, 0
  %vm288 = vcmp.eq.s32.totalorder %v287, 1
  %v289 = vsel %vm288, 0.0, %v285
  %291 = vset.pattern.permute.xlu0 0
  %292 = vperm.xlu0 %291, %v276
  %v293 = vpop.permute.xlu0 %292
  %v296 = vsel %vm122, %v274, 0
  %298 = vmatpush.msra.mxu0 0.0
  %299 = vmatpush.msra.mxu0 0.0
  %300 = vmatpush.msra.mxu0 0.0
  %301 = vmatpush.msra.mxu0 0.0
  %302 = vmatpush.msra.mxu0 0.0
  %303 = vmatpush.msra.mxu0 0.0
  %304 = vmatpush.msra.mxu0 0.0
  %305 = vmatpush.msra.mxu0 0.0
  %306 = vmatpush.msra.mxu0 0.0
  %307 = vmatpush.msra.mxu0 0.0
  %308 = vmatpush.msra.mxu0 0.0
  %309 = vmatpush.msra.mxu0 0.0
  %310 = vmatpush.msra.mxu0 0.0
  %311 = vmatpush.msra.mxu0 %v289
  %312 = vmatpush.msra.mxu0 %v272
  %313 = vmatpush.msra.mxu0 %v282
  %314 = vmatmul.f32.gmra.mxu0 %v296
  %v315 = vpop.f32.mrf.mxu0
  %v316 = vadd.f32 %v293, %v315
  %317 = vdwg.mxu0
  %s318 = scalar_lea.vmem %s5, 16
  %v319 = vld [vmem:[%s318] sm:$0xff]
  %s320 = scalar_lea.vmem %s6, 16
  %v321 = vld [vmem:[%s320] sm:$0xff]
  %vm322 = vcmp.lt.s32.totalorder %v33, 0
  %v323 = vsub.s32 0, %v33
  %v324 = vsel %vm322, %v323, %v33
  %v325 = vshrl.u32 %v324, 1
  %v326 = vand.u32 %v324, 1
  %v327 = vsub.s32 0, %v326
  %v328 = vsel %vm322, %v327, %v326
  %vm329 = vcmp.ne.s32.totalorder %v328, 0
  %vm330 = vcmp.lt.s32.totalorder %v328, 0
  %vm331 = vmand %vm330, %vm329
  %v332 = vadd.s32 %v328, 2
  %v333 = vsel %vm331, %v332, %v328
  %vm334 = vcmp.eq.s32.totalorder %v333, 0
  %v335 = vsel %vm334, 1, 0
  %vm336 = vcmp.eq.s32.totalorder %v335, 1
  %v337 = vsel %vm336, %v316, 0.0
  %338 = vadd.xlane.f32.xlu0 %v337
  %v339 = vpop.xlane.xlu0 %338
  %v340 = vmul.f32 %v337, %v316
  %341 = vadd.xlane.f32.xlu0 %v340
  %v342 = vpop.xlane.xlu0 %341
  %v343 = vmul.f32 %v339, 0.015625
  %v344 = vmul.f32 %v342, 0.015625
  %v345 = vmul.f32 %v343, %v343
  %v346 = vsub.f32 %v344, %v345
  %v347 = vadd.f32 %v346, 1e-05
  %v348 = vrsqrt.pop %v347
  %v349 = vmul.f32 %v348, %v347
  %v350 = vmul.f32 %v349, %v348
  %v351 = vmul.f32 0.5, %v350
  %v352 = vsub.f32 1.5, %v351
  %v353 = vmul.f32 %v348, %v352
  %vm354 = vweird.f32 %v347
  %vm355 = vweird.f32 %v348
  %vm356 = vmor %vm354, %vm355
  %v357 = vsel %vm356, %v348, %v353
  %v358 = vmul.f32 %v319, %v357
  %v359 = vmul.f32 %v343, %v358
  %v360 = vsub.f32 %v321, %v359
  %362 = vset.pattern.permute.xlu0 0
  %363 = vperm.xlu0 %362, %v358
  %v364 = vpop.permute.xlu0 %363
  %v366 = vmul.f32 %v316, %v364
  %368 = vset.pattern.permute.xlu0 0
  %369 = vperm.xlu0 %368, %v360
  %v370 = vpop.permute.xlu0 %369
  %v372 = vadd.f32 %v366, %v370
  %v373 = vmul.f32 %v372, 0.01
  %v374 = vmax.f32 %v372, %v373
  %s375 = scalar_lea.vmem %s3, 24
  %v376 = vld [vmem:[%s375] sm:$0xff]
  %s377 = scalar_lea.vmem %s4, 24
  %v378 = vld [vmem:[%s377] sm:$0xff]
  %380 = vrot.lane.b32.xlu0 %v374, 2
  %v381 = vpop.permute.xlu0 %380
  %v383 = vsel %vm55, 0.0, %v381
  %384 = vrot.lane.b32.xlu0 %v374, 126
  %v385 = vpop.permute.xlu0 %384
  %v387 = vsel %vm288, 0.0, %v385
  %389 = vset.pattern.permute.xlu0 0
  %390 = vperm.xlu0 %389, %v378
  %v391 = vpop.permute.xlu0 %390
  %v394 = vsel %vm122, %v376, 0
  %396 = vmatpush.msra.mxu0 0.0
  %397 = vmatpush.msra.mxu0 0.0
  %398 = vmatpush.msra.mxu0 0.0
  %399 = vmatpush.msra.mxu0 0.0
  %400 = vmatpush.msra.mxu0 0.0
  %401 = vmatpush.msra.mxu0 0.0
  %402 = vmatpush.msra.mxu0 0.0
  %403 = vmatpush.msra.mxu0 0.0
  %404 = vmatpush.msra.mxu0 0.0
  %405 = vmatpush.msra.mxu0 0.0
  %406 = vmatpush.msra.mxu0 0.0
  %407 = vmatpush.msra.mxu0 0.0
  %408 = vmatpush.msra.mxu0 0.0
  %409 = vmatpush.msra.mxu0 %v387
  %410 = vmatpush.msra.mxu0 %v374
  %411 = vmatpush.msra.mxu0 %v383
  %412 = vmatmul.f32.gmra.mxu0 %v394
  %v413 = vpop.f32.mrf.mxu0
  %v414 = vadd.f32 %v391, %v413
  %415 = vdwg.mxu0
  %s416 = scalar_lea.vmem %s5, 24
  %v417 = vld [vmem:[%s416] sm:$0xff]
  %s418 = scalar_lea.vmem %s6, 24
  %v419 = vld [vmem:[%s418] sm:$0xff]
  %v420 = vsel %vm336, %v414, 0.0
  %421 = vadd.xlane.f32.xlu0 %v420
  %v422 = vpop.xlane.xlu0 %421
  %v423 = vmul.f32 %v420, %v414
  %424 = vadd.xlane.f32.xlu0 %v423
  %v425 = vpop.xlane.xlu0 %424
  %v426 = vmul.f32 %v422, 0.015625
  %v427 = vmul.f32 %v425, 0.015625
  %v428 = vmul.f32 %v426, %v426
  %v429 = vsub.f32 %v427, %v428
  %v430 = vadd.f32 %v429, 1e-05
  %v431 = vrsqrt.pop %v430
  %v432 = vmul.f32 %v431, %v430
  %v433 = vmul.f32 %v432, %v431
  %v434 = vmul.f32 0.5, %v433
  %v435 = vsub.f32 1.5, %v434
  %v436 = vmul.f32 %v431, %v435
  %vm437 = vweird.f32 %v430
  %vm438 = vweird.f32 %v431
  %vm439 = vmor %vm437, %vm438
  %v440 = vsel %vm439, %v431, %v436
  %v441 = vmul.f32 %v417, %v440
  %v442 = vmul.f32 %v426, %v441
  %v443 = vsub.f32 %v419, %v442
  %445 = vset.pattern.permute.xlu0 0
  %446 = vperm.xlu0 %445, %v441
  %v447 = vpop.permute.xlu0 %446
  %v449 = vmul.f32 %v414, %v447
  %451 = vset.pattern.permute.xlu0 0
  %452 = vperm.xlu0 %451, %v443
  %v453 = vpop.permute.xlu0 %452
  %v455 = vadd.f32 %v449, %v453
  %v456 = vadd.f32 %v455, %v272
  %v457 = vmul.f32 %v456, 0.01
  %v458 = vmax.f32 %v456, %v457
  %460 = vrot.lane.b32.xlu0 %v458, 126
  %v461 = vpop.permute.xlu0 %460
  %v463 = vmax.f32 %v458, %v461
  %s464 = scalar_lea.vmem %s3, 32
  %v465 = vld [vmem:[%s464] sm:$0xff]
  %s466 = scalar_lea.vmem %s4, 32
  %v467 = vld [vmem:[%s466] sm:$0xff]
  %469 = vrot.lane.b32.xlu0 %v463, 4
  %v470 = vpop.permute.xlu0 %469
  %v472 = vsel %vm55, 0.0, %v470
  %vm473 = vcmp.eq.s32.totalorder %v48, 60
  %474 = vrot.lane.b32.xlu0 %v463, 124
  %v475 = vpop.permute.xlu0 %474
  %v477 = vsel %vm473, 1, 0
  %vm478 = vcmp.eq.s32.totalorder %v477, 1
  %v479 = vsel %vm478, 0.0, %v475
  %481 = vset.pattern.permute.xlu0 0
  %482 = vperm.xlu0 %481, %v467
  %v483 = vpop.permute.xlu0 %482
  %v486 = vsel %vm122, %v465, 0
  %488 = vmatpush.msra.mxu0 0.0
  %489 = vmatpush.msra.mxu0 0.0
  %490 = vmatpush.msra.mxu0 0.0
  %491 = vmatpush.msra.mxu0 0.0
  %492 = vmatpush.msra.mxu0 0.0
  %493 = vmatpush.msra.mxu0 0.0
  %494 = vmatpush.msra.mxu0 0.0
  %495 = vmatpush.msra.mxu0 0.0
  %496 = vmatpush.msra.mxu0 0.0
  %497 = vmatpush.msra.mxu0 0.0
  %498 = vmatpush.msra.mxu0 0.0
  %499 = vmatpush.msra.mxu0 0.0
  %500 = vmatpush.msra.mxu0 0.0
  %501 = vmatpush.msra.mxu0 %v479
  %502 = vmatpush.msra.mxu0 %v463
  %503 = vmatpush.msra.mxu0 %v472
  %504 = vmatmul.f32.gmra.mxu0 %v486
  %v505 = vpop.f32.mrf.mxu0
  %v506 = vadd.f32 %v483, %v505
  %507 = vdwg.mxu0
  %s508 = scalar_lea.vmem %s5, 32
  %v509 = vld [vmem:[%s508] sm:$0xff]
  %s510 = scalar_lea.vmem %s6, 32
  %v511 = vld [vmem:[%s510] sm:$0xff]
  %vm512 = vcmp.lt.s32.totalorder %v33, 0
  %v513 = vsub.s32 0, %v33
  %v514 = vsel %vm512, %v513, %v33
  %v515 = vshrl.u32 %v514, 2
  %v516 = vand.u32 %v514, 3
  %v517 = vsub.s32 0, %v516
  %v518 = vsel %vm512, %v517, %v516
  %vm519 = vcmp.ne.s32.totalorder %v518, 0
  %vm520 = vcmp.lt.s32.totalorder %v518, 0
  %vm521 = vmand %vm520, %vm519
  %v522 = vadd.s32 %v518, 4
  %v523 = vsel %vm521, %v522, %v518
  %vm524 = vcmp.eq.s32.totalorder %v523, 0
  %v525 = vsel %vm524, 1, 0
  %vm526 = vcmp.eq.s32.totalorder %v525, 1
  %v527 = vsel %vm526, %v506, 0.0
  %528 = vadd.xlane.f32.xlu0 %v527
  %v529 = vpop.xlane.xlu0 %528
  %v530 = vmul.f32 %v527, %v506
  %531 = vadd.xlane.f32.xlu0 %v530
  %v532 = vpop.xlane.xlu0 %531
  %v533 = vmul.f32 %v529, 0.03125
  %v534 = vmul.f32 %v532, 0.03125
  %v535 = vmul.f32 %v533, %v533
  %v536 = vsub.f32 %v534, %v535
  %v537 = vadd.f32 %v536, 1e-05
  %v538 = vrsqrt.pop %v537
  %v539 = vmul.f32 %v538, %v537
  %v540 = vmul.f32 %v539, %v538
  %v541 = vmul.f32 0.5, %v540
  %v542 = vsub.f32 1.5, %v541
  %v543 = vmul.f32 %v538, %v542
  %vm544 = vweird.f32 %v537
  %vm545 = vweird.f32 %v538
  %vm546 = vmor %vm544, %vm545
  %v547 = vsel %vm546, %v538, %v543
  %v548 = vmul.f32 %v509, %v547
  %v549 = vmul.f32 %v533, %v548
  %v550 = vsub.f32 %v511, %v549
  %552 = vset.pattern.permute.xlu0 0
  %553 = vperm.xlu0 %552, %v548
  %v554 = vpop.permute.xlu0 %553
  %v556 = vmul.f32 %v506, %v554
  %558 = vset.pattern.permute.xlu0 0
  %559 = vperm.xlu0 %558, %v550
  %v560 = vpop.permute.xlu0 %559
  %v562 = vadd.f32 %v556, %v560
  %v563 = vmul.f32 %v562, 0.01
  %v564 = vmax.f32 %v562, %v563
  %s565 = scalar_lea.vmem %s3, 40
  %v566 = vld [vmem:[%s565] sm:$0xff]
  %s567 = scalar_lea.vmem %s4, 40
  %v568 = vld [vmem:[%s567] sm:$0xff]
  %570 = vrot.lane.b32.xlu0 %v564, 4
  %v571 = vpop.permute.xlu0 %570
  %v573 = vsel %vm55, 0.0, %v571
  %574 = vrot.lane.b32.xlu0 %v564, 124
  %v575 = vpop.permute.xlu0 %574
  %v577 = vsel %vm478, 0.0, %v575
  %579 = vset.pattern.permute.xlu0 0
  %580 = vperm.xlu0 %579, %v568
  %v581 = vpop.permute.xlu0 %580
  %v584 = vsel %vm122, %v566, 0
  %586 = vmatpush.msra.mxu0 0.0
  %587 = vmatpush.msra.mxu0 0.0
  %588 = vmatpush.msra.mxu0 0.0
  %589 = vmatpush.msra.mxu0 0.0
  %590 = vmatpush.msra.mxu0 0.0
  %591 = vmatpush.msra.mxu0 0.0
  %592 = vmatpush.msra.mxu0 0.0
  %593 = vmatpush.msra.mxu0 0.0
  %594 = vmatpush.msra.mxu0 0.0
  %595 = vmatpush.msra.mxu0 0.0
  %596 = vmatpush.msra.mxu0 0.0
  %597 = vmatpush.msra.mxu0 0.0
  %598 = vmatpush.msra.mxu0 0.0
  %599 = vmatpush.msra.mxu0 %v577
  %600 = vmatpush.msra.mxu0 %v564
  %601 = vmatpush.msra.mxu0 %v573
  %602 = vmatmul.f32.gmra.mxu0 %v584
  %v603 = vpop.f32.mrf.mxu0
  %v604 = vadd.f32 %v581, %v603
  %605 = vdwg.mxu0
  %s606 = scalar_lea.vmem %s5, 40
  %v607 = vld [vmem:[%s606] sm:$0xff]
  %s608 = scalar_lea.vmem %s6, 40
  %v609 = vld [vmem:[%s608] sm:$0xff]
  %v610 = vsel %vm526, %v604, 0.0
  %611 = vadd.xlane.f32.xlu0 %v610
  %v612 = vpop.xlane.xlu0 %611
  %v613 = vmul.f32 %v610, %v604
  %614 = vadd.xlane.f32.xlu0 %v613
  %v615 = vpop.xlane.xlu0 %614
  %v616 = vmul.f32 %v612, 0.03125
  %v617 = vmul.f32 %v615, 0.03125
  %v618 = vmul.f32 %v616, %v616
  %v619 = vsub.f32 %v617, %v618
  %v620 = vadd.f32 %v619, 1e-05
  %v621 = vrsqrt.pop %v620
  %v622 = vmul.f32 %v621, %v620
  %v623 = vmul.f32 %v622, %v621
  %v624 = vmul.f32 0.5, %v623
  %v625 = vsub.f32 1.5, %v624
  %v626 = vmul.f32 %v621, %v625
  %vm627 = vweird.f32 %v620
  %vm628 = vweird.f32 %v621
  %vm629 = vmor %vm627, %vm628
  %v630 = vsel %vm629, %v621, %v626
  %v631 = vmul.f32 %v607, %v630
  %v632 = vmul.f32 %v616, %v631
  %v633 = vsub.f32 %v609, %v632
  %635 = vset.pattern.permute.xlu0 0
  %636 = vperm.xlu0 %635, %v631
  %v637 = vpop.permute.xlu0 %636
  %v639 = vmul.f32 %v604, %v637
  %641 = vset.pattern.permute.xlu0 0
  %642 = vperm.xlu0 %641, %v633
  %v643 = vpop.permute.xlu0 %642
  %v645 = vadd.f32 %v639, %v643
  %v646 = vadd.f32 %v645, %v463
  %v647 = vmul.f32 %v646, 0.01
  %v648 = vmax.f32 %v646, %v647
  %650 = vrot.lane.b32.xlu0 %v648, 124
  %v651 = vpop.permute.xlu0 %650
  %v653 = vmax.f32 %v648, %v651
  %s654 = scalar_lea.vmem %s3, 48
  %v655 = vld [vmem:[%s654] sm:$0xff]
  %s656 = scalar_lea.vmem %s4, 48
  %v657 = vld [vmem:[%s656] sm:$0xff]
  %659 = vrot.lane.b32.xlu0 %v653, 8
  %v660 = vpop.permute.xlu0 %659
  %vm662 = vcmask 64512
  %v663 = vsel %vm55, 0.0, %v660
  %vm664 = vcmp.eq.s32.totalorder %v48, 56
  %665 = vrot.lane.b32.xlu0 %v653, 120
  %v666 = vpop.permute.xlu0 %665
  %v668 = vsel %vm664, 1, 0
  %vm669 = vcmp.eq.s32.totalorder %v668, 1
  %v670 = vsel %vm669, 0.0, %v666
  %672 = vset.pattern.permute.xlu0 0
  %673 = vperm.xlu0 %672, %v657
  %v674 = vpop.permute.xlu0 %673
  %v677 = vsel %vm122, %v655, 0
  %679 = vmatpush.msra.mxu0 0.0
  %680 = vmatpush.msra.mxu0 0.0
  %681 = vmatpush.msra.mxu0 0.0
  %682 = vmatpush.msra.mxu0 0.0
  %683 = vmatpush.msra.mxu0 0.0
  %684 = vmatpush.msra.mxu0 0.0
  %685 = vmatpush.msra.mxu0 0.0
  %686 = vmatpush.msra.mxu0 0.0
  %687 = vmatpush.msra.mxu0 0.0
  %688 = vmatpush.msra.mxu0 0.0
  %689 = vmatpush.msra.mxu0 0.0
  %690 = vmatpush.msra.mxu0 0.0
  %691 = vmatpush.msra.mxu0 0.0
  %692 = vmatpush.msra.mxu0 %v670
  %693 = vmatpush.msra.mxu0 %v653
  %694 = vmatpush.msra.mxu0 %v663
  %695 = vmatmul.f32.gmra.mxu0 %v677
  %v696 = vpop.f32.mrf.mxu0
  %v697 = vadd.f32 %v674, %v696
  %698 = vdwg.mxu0
  %s699 = scalar_lea.vmem %s5, 48
  %v700 = vld [vmem:[%s699] sm:$0xff]
  %s701 = scalar_lea.vmem %s6, 48
  %v702 = vld [vmem:[%s701] sm:$0xff]
  %vm703 = vcmp.lt.s32.totalorder %v33, 0
  %v704 = vsub.s32 0, %v33
  %v705 = vsel %vm703, %v704, %v33
  %v706 = vshrl.u32 %v705, 3
  %v707 = vand.u32 %v705, 7
  %v708 = vsub.s32 0, %v707
  %v709 = vsel %vm703, %v708, %v707
  %vm710 = vcmp.ne.s32.totalorder %v709, 0
  %vm711 = vcmp.lt.s32.totalorder %v709, 0
  %vm712 = vmand %vm711, %vm710
  %v713 = vadd.s32 %v709, 8
  %v714 = vsel %vm712, %v713, %v709
  %vm715 = vcmp.eq.s32.totalorder %v714, 0
  %v716 = vsel %vm715, 1, 0
  %vm717 = vcmp.eq.s32.totalorder %v716, 1
  %v718 = vsel %vm717, %v697, 0.0
  %719 = vadd.xlane.f32.xlu0 %v718
  %v720 = vpop.xlane.xlu0 %719
  %v721 = vmul.f32 %v718, %v697
  %722 = vadd.xlane.f32.xlu0 %v721
  %v723 = vpop.xlane.xlu0 %722
  %v724 = vmul.f32 %v720, 0.0625
  %v725 = vmul.f32 %v723, 0.0625
  %v726 = vmul.f32 %v724, %v724
  %v727 = vsub.f32 %v725, %v726
  %v728 = vadd.f32 %v727, 1e-05
  %v729 = vrsqrt.pop %v728
  %v730 = vmul.f32 %v729, %v728
  %v731 = vmul.f32 %v730, %v729
  %v732 = vmul.f32 0.5, %v731
  %v733 = vsub.f32 1.5, %v732
  %v734 = vmul.f32 %v729, %v733
  %vm735 = vweird.f32 %v728
  %vm736 = vweird.f32 %v729
  %vm737 = vmor %vm735, %vm736
  %v738 = vsel %vm737, %v729, %v734
  %v739 = vmul.f32 %v700, %v738
  %v740 = vmul.f32 %v724, %v739
  %v741 = vsub.f32 %v702, %v740
  %743 = vset.pattern.permute.xlu0 0
  %744 = vperm.xlu0 %743, %v739
  %v745 = vpop.permute.xlu0 %744
  %v747 = vmul.f32 %v697, %v745
  %749 = vset.pattern.permute.xlu0 0
  %750 = vperm.xlu0 %749, %v741
  %v751 = vpop.permute.xlu0 %750
  %v753 = vadd.f32 %v747, %v751
  %v754 = vmul.f32 %v753, 0.01
  %v755 = vmax.f32 %v753, %v754
  %s756 = scalar_lea.vmem %s3, 56
  %v757 = vld [vmem:[%s756] sm:$0xff]
  %s758 = scalar_lea.vmem %s4, 56
  %v759 = vld [vmem:[%s758] sm:$0xff]
  %761 = vrot.lane.b32.xlu0 %v755, 8
  %v762 = vpop.permute.xlu0 %761
  %v764 = vsel %vm55, 0.0, %v762
  %765 = vrot.lane.b32.xlu0 %v755, 120
  %v766 = vpop.permute.xlu0 %765
  %v768 = vsel %vm669, 0.0, %v766
  %770 = vset.pattern.permute.xlu0 0
  %771 = vperm.xlu0 %770, %v759
  %v772 = vpop.permute.xlu0 %771
  %v775 = vsel %vm122, %v757, 0
  %777 = vmatpush.msra.mxu0 0.0
  %778 = vmatpush.msra.mxu0 0.0
  %779 = vmatpush.msra.mxu0 0.0
  %780 = vmatpush.msra.mxu0 0.0
  %781 = vmatpush.msra.mxu0 0.0
  %782 = vmatpush.msra.mxu0 0.0
  %783 = vmatpush.msra.mxu0 0.0
  %784 = vmatpush.msra.mxu0 0.0
  %785 = vmatpush.msra.mxu0 0.0
  %786 = vmatpush.msra.mxu0 0.0
  %787 = vmatpush.msra.mxu0 0.0
  %788 = vmatpush.msra.mxu0 0.0
  %789 = vmatpush.msra.mxu0 0.0
  %790 = vmatpush.msra.mxu0 %v768
  %791 = vmatpush.msra.mxu0 %v755
  %792 = vmatpush.msra.mxu0 %v764
  %793 = vmatmul.f32.gmra.mxu0 %v775
  %v794 = vpop.f32.mrf.mxu0
  %v795 = vadd.f32 %v772, %v794
  %796 = vdwg.mxu0
  %s797 = scalar_lea.vmem %s5, 56
  %v798 = vld [vmem:[%s797] sm:$0xff]
  %s799 = scalar_lea.vmem %s6, 56
  %v800 = vld [vmem:[%s799] sm:$0xff]
  %v801 = vsel %vm717, %v795, 0.0
  %802 = vadd.xlane.f32.xlu0 %v801
  %v803 = vpop.xlane.xlu0 %802
  %v804 = vmul.f32 %v801, %v795
  %805 = vadd.xlane.f32.xlu0 %v804
  %v806 = vpop.xlane.xlu0 %805
  %v807 = vmul.f32 %v803, 0.0625
  %v808 = vmul.f32 %v806, 0.0625
  %v809 = vmul.f32 %v807, %v807
  %v810 = vsub.f32 %v808, %v809
  %v811 = vadd.f32 %v810, 1e-05
  %v812 = vrsqrt.pop %v811
  %v813 = vmul.f32 %v812, %v811
  %v814 = vmul.f32 %v813, %v812
  %v815 = vmul.f32 0.5, %v814
  %v816 = vsub.f32 1.5, %v815
  %v817 = vmul.f32 %v812, %v816
  %vm818 = vweird.f32 %v811
  %vm819 = vweird.f32 %v812
  %vm820 = vmor %vm818, %vm819
  %v821 = vsel %vm820, %v812, %v817
  %v822 = vmul.f32 %v798, %v821
  %v823 = vmul.f32 %v807, %v822
  %v824 = vsub.f32 %v800, %v823
  %826 = vset.pattern.permute.xlu0 0
  %827 = vperm.xlu0 %826, %v822
  %v828 = vpop.permute.xlu0 %827
  %v830 = vmul.f32 %v795, %v828
  %832 = vset.pattern.permute.xlu0 0
  %833 = vperm.xlu0 %832, %v824
  %v834 = vpop.permute.xlu0 %833
  %v836 = vadd.f32 %v830, %v834
  %v837 = vadd.f32 %v836, %v653
  %v838 = vmul.f32 %v837, 0.01
  %v839 = vmax.f32 %v837, %v838
  %841 = vrot.lane.b32.xlu0 %v839, 120
  %v842 = vpop.permute.xlu0 %841
  %v844 = vmax.f32 %v839, %v842
  %s845 = scalar_lea.vmem %s3, 64
  %v846 = vld [vmem:[%s845] sm:$0xff]
  %s847 = scalar_lea.vmem %s4, 64
  %v848 = vld [vmem:[%s847] sm:$0xff]
  %850 = vrot.lane.b32.xlu0 %v844, 16
  %v851 = vpop.permute.xlu0 %850
  %v853 = vsel %vm55, 0.0, %v851
  %vm854 = vcmp.eq.s32.totalorder %v48, 48
  %855 = vrot.lane.b32.xlu0 %v844, 112
  %v856 = vpop.permute.xlu0 %855
  %v858 = vsel %vm854, 1, 0
  %vm859 = vcmp.eq.s32.totalorder %v858, 1
  %v860 = vsel %vm859, 0.0, %v856
  %862 = vset.pattern.permute.xlu0 0
  %863 = vperm.xlu0 %862, %v848
  %v864 = vpop.permute.xlu0 %863
  %v867 = vsel %vm122, %v846, 0
  %869 = vmatpush.msra.mxu0 0.0
  %870 = vmatpush.msra.mxu0 0.0
  %871 = vmatpush.msra.mxu0 0.0
  %872 = vmatpush.msra.mxu0 0.0
  %873 = vmatpush.msra.mxu0 0.0
  %874 = vmatpush.msra.mxu0 0.0
  %875 = vmatpush.msra.mxu0 0.0
  %876 = vmatpush.msra.mxu0 0.0
  %877 = vmatpush.msra.mxu0 0.0
  %878 = vmatpush.msra.mxu0 0.0
  %879 = vmatpush.msra.mxu0 0.0
  %880 = vmatpush.msra.mxu0 0.0
  %881 = vmatpush.msra.mxu0 0.0
  %882 = vmatpush.msra.mxu0 %v860
  %883 = vmatpush.msra.mxu0 %v844
  %884 = vmatpush.msra.mxu0 %v853
  %885 = vmatmul.f32.gmra.mxu0 %v867
  %v886 = vpop.f32.mrf.mxu0
  %v887 = vadd.f32 %v864, %v886
  %888 = vdwg.mxu0
  %s889 = scalar_lea.vmem %s5, 64
  %v890 = vld [vmem:[%s889] sm:$0xff]
  %s891 = scalar_lea.vmem %s6, 64
  %v892 = vld [vmem:[%s891] sm:$0xff]
  %vm893 = vcmp.lt.s32.totalorder %v33, 0
  %v894 = vsub.s32 0, %v33
  %v895 = vsel %vm893, %v894, %v33
  %v896 = vshrl.u32 %v895, 4
  %v897 = vand.u32 %v895, 15
  %v898 = vsub.s32 0, %v897
  %v899 = vsel %vm893, %v898, %v897
  %vm900 = vcmp.ne.s32.totalorder %v899, 0
  %vm901 = vcmp.lt.s32.totalorder %v899, 0
  %vm902 = vmand %vm901, %vm900
  %v903 = vadd.s32 %v899, 16
  %v904 = vsel %vm902, %v903, %v899
  %vm905 = vcmp.eq.s32.totalorder %v904, 0
  %v906 = vsel %vm905, 1, 0
  %vm907 = vcmp.eq.s32.totalorder %v906, 1
  %v908 = vsel %vm907, %v887, 0.0
  %909 = vadd.xlane.f32.xlu0 %v908
  %v910 = vpop.xlane.xlu0 %909
  %v911 = vmul.f32 %v908, %v887
  %912 = vadd.xlane.f32.xlu0 %v911
  %v913 = vpop.xlane.xlu0 %912
  %v914 = vmul.f32 %v910, 0.125
  %v915 = vmul.f32 %v913, 0.125
  %v916 = vmul.f32 %v914, %v914
  %v917 = vsub.f32 %v915, %v916
  %v918 = vadd.f32 %v917, 1e-05
  %v919 = vrsqrt.pop %v918
  %v920 = vmul.f32 %v919, %v918
  %v921 = vmul.f32 %v920, %v919
  %v922 = vmul.f32 0.5, %v921
  %v923 = vsub.f32 1.5, %v922
  %v924 = vmul.f32 %v919, %v923
  %vm925 = vweird.f32 %v918
  %vm926 = vweird.f32 %v919
  %vm927 = vmor %vm925, %vm926
  %v928 = vsel %vm927, %v919, %v924
  %v929 = vmul.f32 %v890, %v928
  %v930 = vmul.f32 %v914, %v929
  %v931 = vsub.f32 %v892, %v930
  %933 = vset.pattern.permute.xlu0 0
  %934 = vperm.xlu0 %933, %v929
  %v935 = vpop.permute.xlu0 %934
  %v937 = vmul.f32 %v887, %v935
  %939 = vset.pattern.permute.xlu0 0
  %940 = vperm.xlu0 %939, %v931
  %v941 = vpop.permute.xlu0 %940
  %v943 = vadd.f32 %v937, %v941
  %v944 = vmul.f32 %v943, 0.01
  %v945 = vmax.f32 %v943, %v944
  %s946 = scalar_lea.vmem %s3, 72
  %v947 = vld [vmem:[%s946] sm:$0xff]
  %s948 = scalar_lea.vmem %s4, 72
  %v949 = vld [vmem:[%s948] sm:$0xff]
  %951 = vrot.lane.b32.xlu0 %v945, 16
  %v952 = vpop.permute.xlu0 %951
  %v954 = vsel %vm55, 0.0, %v952
  %955 = vrot.lane.b32.xlu0 %v945, 112
  %v956 = vpop.permute.xlu0 %955
  %v958 = vsel %vm859, 0.0, %v956
  %960 = vset.pattern.permute.xlu0 0
  %961 = vperm.xlu0 %960, %v949
  %v962 = vpop.permute.xlu0 %961
  %v965 = vsel %vm122, %v947, 0
  %967 = vmatpush.msra.mxu0 0.0
  %968 = vmatpush.msra.mxu0 0.0
  %969 = vmatpush.msra.mxu0 0.0
  %970 = vmatpush.msra.mxu0 0.0
  %971 = vmatpush.msra.mxu0 0.0
  %972 = vmatpush.msra.mxu0 0.0
  %973 = vmatpush.msra.mxu0 0.0
  %974 = vmatpush.msra.mxu0 0.0
  %975 = vmatpush.msra.mxu0 0.0
  %976 = vmatpush.msra.mxu0 0.0
  %977 = vmatpush.msra.mxu0 0.0
  %978 = vmatpush.msra.mxu0 0.0
  %979 = vmatpush.msra.mxu0 0.0
  %980 = vmatpush.msra.mxu0 %v958
  %981 = vmatpush.msra.mxu0 %v945
  %982 = vmatpush.msra.mxu0 %v954
  %983 = vmatmul.f32.gmra.mxu0 %v965
  %v984 = vpop.f32.mrf.mxu0
  %v985 = vadd.f32 %v962, %v984
  %986 = vdwg.mxu0
  %s987 = scalar_lea.vmem %s5, 72
  %v988 = vld [vmem:[%s987] sm:$0xff]
  %s989 = scalar_lea.vmem %s6, 72
  %v990 = vld [vmem:[%s989] sm:$0xff]
  %v991 = vsel %vm907, %v985, 0.0
  %992 = vadd.xlane.f32.xlu0 %v991
  %v993 = vpop.xlane.xlu0 %992
  %v994 = vmul.f32 %v991, %v985
  %995 = vadd.xlane.f32.xlu0 %v994
  %v996 = vpop.xlane.xlu0 %995
  %v997 = vmul.f32 %v993, 0.125
  %v998 = vmul.f32 %v996, 0.125
  %v999 = vmul.f32 %v997, %v997
  %v1000 = vsub.f32 %v998, %v999
  %v1001 = vadd.f32 %v1000, 1e-05
  %v1002 = vrsqrt.pop %v1001
  %v1003 = vmul.f32 %v1002, %v1001
  %v1004 = vmul.f32 %v1003, %v1002
  %v1005 = vmul.f32 0.5, %v1004
  %v1006 = vsub.f32 1.5, %v1005
  %v1007 = vmul.f32 %v1002, %v1006
  %vm1008 = vweird.f32 %v1001
  %vm1009 = vweird.f32 %v1002
  %vm1010 = vmor %vm1008, %vm1009
  %v1011 = vsel %vm1010, %v1002, %v1007
  %v1012 = vmul.f32 %v988, %v1011
  %v1013 = vmul.f32 %v997, %v1012
  %v1014 = vsub.f32 %v990, %v1013
  %1016 = vset.pattern.permute.xlu0 0
  %1017 = vperm.xlu0 %1016, %v1012
  %v1018 = vpop.permute.xlu0 %1017
  %v1020 = vmul.f32 %v985, %v1018
  %1022 = vset.pattern.permute.xlu0 0
  %1023 = vperm.xlu0 %1022, %v1014
  %v1024 = vpop.permute.xlu0 %1023
  %v1026 = vadd.f32 %v1020, %v1024
  %v1027 = vadd.f32 %v1026, %v844
  %v1028 = vmul.f32 %v1027, 0.01
  %v1029 = vmax.f32 %v1027, %v1028
  %1031 = vrot.lane.b32.xlu0 %v1029, 112
  %v1032 = vpop.permute.xlu0 %1031
  %v1034 = vmax.f32 %v1029, %v1032
  %v1035 = vlaneseq
  %v1036 = vshrl.u32 %v1035, 7
  %v1037 = vadd.s32 %v1036, 8
  %v1038 = vadd.s32 %v1036, 16
  %v1039 = vadd.s32 %v1036, 24
  %v1040 = vadd.s32 %v1036, 32
  %v1041 = vadd.s32 %v1036, 40
  %v1042 = vadd.s32 %v1036, 48
  %v1043 = vadd.s32 %v1036, 56
  %v1044 = vadd.s32 %v1036, 64
  %v1045 = vadd.s32 %v1036, 72
  %v1046 = vadd.s32 %v1036, 80
  %v1047 = vadd.s32 %v1036, 88
  %v1048 = vadd.s32 %v1036, 96
  %v1049 = vadd.s32 %v1036, 104
  %v1050 = vadd.s32 %v1036, 112
  %v1051 = vadd.s32 %v1036, 120
  %v1052 = vld [vmem:[%s8] sm:$0xff]
  %v1053 = vmul.u32 %v33, 64
  %vm1054 = vcmp.eq.s32.totalorder %v1036, %v1053
  %vm1055 = vcmp.eq.s32.totalorder %v1037, %v1053
  %vm1056 = vcmp.eq.s32.totalorder %v1038, %v1053
  %vm1057 = vcmp.eq.s32.totalorder %v1039, %v1053
  %vm1058 = vcmp.eq.s32.totalorder %v1040, %v1053
  %vm1059 = vcmp.eq.s32.totalorder %v1041, %v1053
  %vm1060 = vcmp.eq.s32.totalorder %v1042, %v1053
  %vm1061 = vcmp.eq.s32.totalorder %v1043, %v1053
  %vm1062 = vcmp.eq.s32.totalorder %v1044, %v1053
  %vm1063 = vcmp.eq.s32.totalorder %v1045, %v1053
  %vm1064 = vcmp.eq.s32.totalorder %v1046, %v1053
  %vm1065 = vcmp.eq.s32.totalorder %v1047, %v1053
  %vm1066 = vcmp.eq.s32.totalorder %v1048, %v1053
  %vm1067 = vcmp.eq.s32.totalorder %v1049, %v1053
  %vm1068 = vcmp.eq.s32.totalorder %v1050, %v1053
  %vm1069 = vcmp.eq.s32.totalorder %v1051, %v1053
  %v1070 = vsel %vm1054, 1, 0
  %v1071 = vsel %vm1055, 1, 0
  %v1072 = vsel %vm1056, 1, 0
  %v1073 = vsel %vm1057, 1, 0
  %v1074 = vsel %vm1058, 1, 0
  %v1075 = vsel %vm1059, 1, 0
  %v1076 = vsel %vm1060, 1, 0
  %v1077 = vsel %vm1061, 1, 0
  %v1078 = vsel %vm1062, 1, 0
  %v1079 = vsel %vm1063, 1, 0
  %v1080 = vsel %vm1064, 1, 0
  %v1081 = vsel %vm1065, 1, 0
  %v1082 = vsel %vm1066, 1, 0
  %v1083 = vsel %vm1067, 1, 0
  %v1084 = vsel %vm1068, 1, 0
  %v1085 = vsel %vm1069, 1, 0
  %v1086 = vcvt.s32.f32 %v1070
  %v1087 = vcvt.s32.f32 %v1071
  %v1088 = vcvt.s32.f32 %v1072
  %v1089 = vcvt.s32.f32 %v1073
  %v1090 = vcvt.s32.f32 %v1074
  %v1091 = vcvt.s32.f32 %v1075
  %v1092 = vcvt.s32.f32 %v1076
  %v1093 = vcvt.s32.f32 %v1077
  %v1094 = vcvt.s32.f32 %v1078
  %v1095 = vcvt.s32.f32 %v1079
  %v1096 = vcvt.s32.f32 %v1080
  %v1097 = vcvt.s32.f32 %v1081
  %v1098 = vcvt.s32.f32 %v1082
  %v1099 = vcvt.s32.f32 %v1083
  %v1100 = vcvt.s32.f32 %v1084
  %v1101 = vcvt.s32.f32 %v1085
  %1102 = vmatpush.msra.mxu0 %v1101
  %1103 = vmatpush.msra.mxu0 %v1100
  %1104 = vmatpush.msra.mxu0 %v1099
  %1105 = vmatpush.msra.mxu0 %v1098
  %1106 = vmatpush.msra.mxu0 %v1097
  %1107 = vmatpush.msra.mxu0 %v1096
  %1108 = vmatpush.msra.mxu0 %v1095
  %1109 = vmatpush.msra.mxu0 %v1094
  %1110 = vmatpush.msra.mxu0 %v1093
  %1111 = vmatpush.msra.mxu0 %v1092
  %1112 = vmatpush.msra.mxu0 %v1091
  %1113 = vmatpush.msra.mxu0 %v1090
  %1114 = vmatpush.msra.mxu0 %v1089
  %1115 = vmatpush.msra.mxu0 %v1088
  %1116 = vmatpush.msra.mxu0 %v1087
  %1117 = vmatpush.msra.mxu0 %v1086
  %1118 = vmatmul.f32.gmra.mxu0 %v1034
  %v1119 = vpop.f32.mrf.mxu0
  %v1120 = vadd.f32 0.0, %v1119
  %1121 = vdwg.mxu0
  %v1122 = vld [vmem:[%s7] sm:$0xff]
  %v1124 = vsel %vm662, %v1122, 0
  %1126 = vmatpush.msra.mxu0 0.0
  %1127 = vmatpush.msra.mxu0 0.0
  %1128 = vmatpush.msra.mxu0 0.0
  %1129 = vmatpush.msra.mxu0 0.0
  %1130 = vmatpush.msra.mxu0 0.0
  %1131 = vmatpush.msra.mxu0 0.0
  %1132 = vmatpush.msra.mxu0 0.0
  %1133 = vmatpush.msra.mxu0 0.0
  %1134 = vmatpush.msra.mxu0 0.0
  %1135 = vmatpush.msra.mxu0 0.0
  %1136 = vmatpush.msra.mxu0 0.0
  %1137 = vmatpush.msra.mxu0 0.0
  %1138 = vmatpush.msra.mxu0 0.0
  %1139 = vmatpush.msra.mxu0 0.0
  %1140 = vmatpush.msra.mxu0 0.0
  %1141 = vmatpush.msra.mxu0 %v1120
  %1142 = vmatmul.f32.gmra.mxu0 %v1124
  %v1143 = vpop.f32.mrf.mxu0
  %v1144 = vadd.f32 0.0, %v1143
  %1145 = vdwg.mxu0
  %1147 = vset.pattern.permute.xlu0 0
  %1148 = vperm.xlu0 %1147, %v1052
  %v1149 = vpop.permute.xlu0 %1148
  %v1151 = vadd.f32 %v1149, %v1144
  %v1152 = vadd.s32 %v1053, 32
  %vm1153 = vcmp.eq.s32.totalorder %v1036, %v1152
  %vm1154 = vcmp.eq.s32.totalorder %v1037, %v1152
  %vm1155 = vcmp.eq.s32.totalorder %v1038, %v1152
  %vm1156 = vcmp.eq.s32.totalorder %v1039, %v1152
  %vm1157 = vcmp.eq.s32.totalorder %v1040, %v1152
  %vm1158 = vcmp.eq.s32.totalorder %v1041, %v1152
  %vm1159 = vcmp.eq.s32.totalorder %v1042, %v1152
  %vm1160 = vcmp.eq.s32.totalorder %v1043, %v1152
  %vm1161 = vcmp.eq.s32.totalorder %v1044, %v1152
  %vm1162 = vcmp.eq.s32.totalorder %v1045, %v1152
  %vm1163 = vcmp.eq.s32.totalorder %v1046, %v1152
  %vm1164 = vcmp.eq.s32.totalorder %v1047, %v1152
  %vm1165 = vcmp.eq.s32.totalorder %v1048, %v1152
  %vm1166 = vcmp.eq.s32.totalorder %v1049, %v1152
  %vm1167 = vcmp.eq.s32.totalorder %v1050, %v1152
  %vm1168 = vcmp.eq.s32.totalorder %v1051, %v1152
  %v1169 = vsel %vm1153, 1, 0
  %v1170 = vsel %vm1154, 1, 0
  %v1171 = vsel %vm1155, 1, 0
  %v1172 = vsel %vm1156, 1, 0
  %v1173 = vsel %vm1157, 1, 0
  %v1174 = vsel %vm1158, 1, 0
  %v1175 = vsel %vm1159, 1, 0
  %v1176 = vsel %vm1160, 1, 0
  %v1177 = vsel %vm1161, 1, 0
  %v1178 = vsel %vm1162, 1, 0
  %v1179 = vsel %vm1163, 1, 0
  %v1180 = vsel %vm1164, 1, 0
  %v1181 = vsel %vm1165, 1, 0
  %v1182 = vsel %vm1166, 1, 0
  %v1183 = vsel %vm1167, 1, 0
  %v1184 = vsel %vm1168, 1, 0
  %v1185 = vcvt.s32.f32 %v1169
  %v1186 = vcvt.s32.f32 %v1170
  %v1187 = vcvt.s32.f32 %v1171
  %v1188 = vcvt.s32.f32 %v1172
  %v1189 = vcvt.s32.f32 %v1173
  %v1190 = vcvt.s32.f32 %v1174
  %v1191 = vcvt.s32.f32 %v1175
  %v1192 = vcvt.s32.f32 %v1176
  %v1193 = vcvt.s32.f32 %v1177
  %v1194 = vcvt.s32.f32 %v1178
  %v1195 = vcvt.s32.f32 %v1179
  %v1196 = vcvt.s32.f32 %v1180
  %v1197 = vcvt.s32.f32 %v1181
  %v1198 = vcvt.s32.f32 %v1182
  %v1199 = vcvt.s32.f32 %v1183
  %v1200 = vcvt.s32.f32 %v1184
  %1201 = vmatpush.msra.mxu0 %v1200
  %1202 = vmatpush.msra.mxu0 %v1199
  %1203 = vmatpush.msra.mxu0 %v1198
  %1204 = vmatpush.msra.mxu0 %v1197
  %1205 = vmatpush.msra.mxu0 %v1196
  %1206 = vmatpush.msra.mxu0 %v1195
  %1207 = vmatpush.msra.mxu0 %v1194
  %1208 = vmatpush.msra.mxu0 %v1193
  %1209 = vmatpush.msra.mxu0 %v1192
  %1210 = vmatpush.msra.mxu0 %v1191
  %1211 = vmatpush.msra.mxu0 %v1190
  %1212 = vmatpush.msra.mxu0 %v1189
  %1213 = vmatpush.msra.mxu0 %v1188
  %1214 = vmatpush.msra.mxu0 %v1187
  %1215 = vmatpush.msra.mxu0 %v1186
  %1216 = vmatpush.msra.mxu0 %v1185
  %1217 = vmatmul.f32.gmra.mxu0 %v1034
  %v1218 = vpop.f32.mrf.mxu0
  %v1219 = vadd.f32 0.0, %v1218
  %1220 = vdwg.mxu0
  %s1221 = scalar_lea.vmem %s7, 8
  %v1222 = vld [vmem:[%s1221] sm:$0xff]
  %v1224 = vsel %vm662, %v1222, 0
  %1226 = vmatpush.msra.mxu0 0.0
  %1227 = vmatpush.msra.mxu0 0.0
  %1228 = vmatpush.msra.mxu0 0.0
  %1229 = vmatpush.msra.mxu0 0.0
  %1230 = vmatpush.msra.mxu0 0.0
  %1231 = vmatpush.msra.mxu0 0.0
  %1232 = vmatpush.msra.mxu0 0.0
  %1233 = vmatpush.msra.mxu0 0.0
  %1234 = vmatpush.msra.mxu0 0.0
  %1235 = vmatpush.msra.mxu0 0.0
  %1236 = vmatpush.msra.mxu0 0.0
  %1237 = vmatpush.msra.mxu0 0.0
  %1238 = vmatpush.msra.mxu0 0.0
  %1239 = vmatpush.msra.mxu0 0.0
  %1240 = vmatpush.msra.mxu0 0.0
  %1241 = vmatpush.msra.mxu0 %v1219
  %1242 = vmatmul.f32.gmra.mxu0 %v1224
  %v1243 = vpop.f32.mrf.mxu0
  %v1244 = vadd.f32 0.0, %v1243
  %1245 = vdwg.mxu0
  %v1246 = vadd.f32 %v1151, %v1244
  %1247 = vst.msk [vmem:[%s9] sm:$0xff] %vm281, %v1246
  // Predicated region
  $region38: #{encoder_pallas.1} parent=0 // pred_check
    _
  $region39: #{encoder_pallas.1} parent=0 // pred_check_branch
    %1249 = sbr.rel (0) target = $region41
  $region40: #{encoder_pallas.1} parent=0 // pred_region
    _
  $region41: #{encoder_pallas.1} parent=0 // pred_fallthru
    _
  // Predicated region
  $region42: #{encoder_pallas.1} parent=0 // pred_check
    _
  $region43: #{encoder_pallas.1} parent=0 // pred_check_branch
    %1251 = sbr.rel (0) target = $region45
  $region44: #{encoder_pallas.1} parent=0 // pred_region
    _
  $region45: #{encoder_pallas.1} parent=0 // pred_fallthru
    _

</llo_original>
